<compile_context>
chip_gen: v6e
topology: v6e:2x2x1
jax: 0.10.0
libtpu: 0.0.40
codegen_flags: <defaults>
</compile_context>

<pallas_src>
import jax
import jax.numpy as jnp
from jax import lax
from jax.experimental import pallas as pl
from jax.experimental.pallas import tpu as pltpu

RMS_EPS = 1.1920929e-07  # torch.finfo(torch.float32).eps (norm math is done in fp32)


# ---------------------------------------------------------------------------
# Kernels
# ---------------------------------------------------------------------------
def _residual_kernel(x_ref, mod_ref, w_ref, b_ref, o_ref):
    # Blocks (after batch squeeze): x (TS,D) bf16, mod (3,D) bf16 [scale;shift;gate],
    # w (D,D) bf16 (pre-transposed so y = tmp @ w), b (1,D) bf16, o (TS,D) bf16.
    x = x_ref[...].astype(jnp.float32)

    # RMSNorm over the last (lane) dim, no elementwise affine, fp32 math.
    ms = jnp.mean(x * x, axis=-1, keepdims=True)
    normed = x * lax.rsqrt(ms + RMS_EPS)

    mod = mod_ref[...].astype(jnp.float32)                       # (3, D)
    tmp = (normed * (mod[0:1, :] + 1.0) + mod[1:2, :]).astype(jnp.bfloat16)

    # Feed the MXU in bf16 with fp32 accumulation.
    y = jnp.dot(tmp, w_ref[...], preferred_element_type=jnp.float32)
    y = y + b_ref[...].astype(jnp.float32)

    # Re-read the bf16 x tile for the residual add so the fp32 copy of x is not kept
    # live across the matmul (smaller fp32 live range / less spill at large tiles).
    o_ref[...] = (x_ref[...].astype(jnp.float32) + y * mod[2:3, :]).astype(o_ref.dtype)


def _residual_kernel_coltiled(x_ref, mod_ref, w_ref, b_ref, o_ref, tmp_ref):
    # Column-tiled kernel for large D.  Blocks: x (TS,D), mod (3,D), w (D,TN), b (1,TN),
    # o (TS,TN).  tmp_ref is a persistent (TS,D) bf16 VMEM scratch holding the modulated
    # RMSNorm output for the current seq tile; it is recomputed only when j == 0.
    j = pl.program_id(2)
    tn = o_ref.shape[-1]

    @pl.when(j == 0)
    def _():
        x = x_ref[...].astype(jnp.float32)
        ms = jnp.mean(x * x, axis=-1, keepdims=True)
        normed = x * lax.rsqrt(ms + RMS_EPS)
        mod = mod_ref[...].astype(jnp.float32)
        tmp_ref[...] = (normed * (mod[0:1, :] + 1.0) + mod[1:2, :]).astype(jnp.bfloat16)

    y = jnp.dot(tmp_ref[...], w_ref[...], preferred_element_type=jnp.float32)
    y = y + b_ref[...].astype(jnp.float32)

    col = pl.ds(pl.multiple_of(j * tn, 128), tn)
    gate = mod_ref[2:3, col].astype(jnp.float32)                 # (1, TN)
    x_col = x_ref[:, col].astype(jnp.float32)                    # (TS, TN)
    o_ref[...] = (x_col + y * gate).astype(o_ref.dtype)


# ---------------------------------------------------------------------------
# Tiling / spec helpers
# ---------------------------------------------------------------------------
def _pick_seq_tile(S, requested):
    """Largest row tile <= requested that divides S and is a multiple of 8 sublanes.
    Falls back to the whole-S slab only when no such divisor exists (e.g. prime S)."""
    if S <= requested:
        return S
    for ts in range(requested, 7, -1):
        if S % ts == 0 and ts % 8 == 0:
            return ts
    return S


def _pick_col_tile(D, max_tn=512):
    """Largest output-column tile <= max_tn that divides D and is a multiple of 128."""
    if D % 128 != 0:
        return None
    start = min(max_tn, D)
    start -= start % 128
    for tn in range(start, 127, -128):
        if D % tn == 0:
            return tn
    return None


def _vmem_limit_bytes(ts, D, tn):
    """Footprint-derived VMEM cap (all operands bf16): x/out double-buffered; weight
    single-buffered when grid-invariant (tn == D), else double-buffered column slabs
    plus the persistent tmp scratch."""
    bf16 = 2
    io = 2 * 2 * ts * D * bf16                      # x + out, 2 buffers each
    if tn == D:
        w = (D * D + D) * bf16                      # weight + bias, single-buffered
        scratch = 0
    else:
        w = 2 * (D * tn + tn) * bf16                # weight/bias column slabs, 2 buffers
        scratch = ts * D * bf16                     # persistent tmp scratch
    modb = 2 * 3 * D * bf16                         # packed modulators, 2 buffers
    total = io + w + scratch + modb
    # 25% headroom + 4 MiB for compiler-internal scratch; clamp to sane bounds.
    return int(min(max(total * 5 // 4 + (4 << 20), 16 << 20), 96 << 20))


def _spec(shape, index_map, *, buffers=None):
    """BlockSpec, optionally overriding the pipeline buffer count (1 for grid-invariant
    operands).  Falls back to a default spec if pipeline_mode is not accepted."""
    if buffers is not None:
        try:
            return pl.BlockSpec(shape, index_map, pipeline_mode=pl.Buffered(buffers))
        except TypeError:
            pass
    return pl.BlockSpec(shape, index_map)


# ---------------------------------------------------------------------------
# pallas_call wrappers
# ---------------------------------------------------------------------------
def _call_whole_d(x, mod, w_t, b, ts, *, invariant_buffers):
    B, S, D = x.shape
    return pl.pallas_call(
        _residual_kernel,
        out_shape=jax.ShapeDtypeStruct((B, S, D), x.dtype),
        grid_spec=pltpu.PrefetchScalarGridSpec(
            num_scalar_prefetch=0,
            grid=(S // ts, B),
            in_specs=[
                _spec((pl.Squeezed(), ts, D), lambda si, bi: (bi, si, 0)),     # x tile
                _spec((pl.Squeezed(), 3, D), lambda si, bi: (bi, 0, 0)),       # packed modulators
                _spec((D, D), lambda si, bi: (0, 0), buffers=invariant_buffers),  # fn weight
                _spec((1, D), lambda si, bi: (0, 0), buffers=invariant_buffers),  # fn bias
            ],
            out_specs=_spec((pl.Squeezed(), ts, D), lambda si, bi: (bi, si, 0)),
        ),
        compiler_params=pltpu.CompilerParams(
            dimension_semantics=("parallel", "parallel"),
            vmem_limit_bytes=_vmem_limit_bytes(ts, D, D),
        ),
    )(x, mod, w_t, b)


def _call_col_tiled(x, mod, w_t, b, ts, tn):
    B, S, D = x.shape
    return pl.pallas_call(
        _residual_kernel_coltiled,
        out_shape=jax.ShapeDtypeStruct((B, S, D), x.dtype),
        grid_spec=pltpu.PrefetchScalarGridSpec(
            num_scalar_prefetch=0,
            grid=(S // ts, B, D // tn),
            in_specs=[
                _spec((pl.Squeezed(), ts, D), lambda si, bi, j: (bi, si, 0)),  # x tile (full D)
                _spec((pl.Squeezed(), 3, D), lambda si, bi, j: (bi, 0, 0)),    # packed modulators
                _spec((D, tn), lambda si, bi, j: (0, j)),                      # weight column slab
                _spec((1, tn), lambda si, bi, j: (0, j)),                      # bias column slab
            ],
            out_specs=_spec((pl.Squeezed(), ts, tn), lambda si, bi, j: (bi, si, j)),
            scratch_shapes=[pltpu.VMEM((ts, D), jnp.bfloat16)],                # modulated tmp
        ),
        compiler_params=pltpu.CompilerParams(
            dimension_semantics=("parallel", "parallel", "arbitrary"),
            vmem_limit_bytes=_vmem_limit_bytes(ts, D, tn),
        ),
    )(x, mod, w_t, b)


def residual_pallas(x, mod, w_t, b, *, seq_tile=512, col_tile=None):
    """x: (B,S,D) bf16; mod: (B,3,D) bf16 packed [scale,shift,gate]; w_t: (D,D) bf16
    (already transposed so y = tmp @ w_t); b: (1,D) bf16.  D should be a multiple of
    128 for lane-dense stores (full-D blocks remain legal otherwise)."""
    B, S, D = x.shape
    ts = _pick_seq_tile(S, seq_tile)

    # Large D: tile the weight's output columns so the resident weight stays bounded
    # (matters once the bf16 weight reaches ~8 MiB, i.e. on v7x's 64 MiB VMEM).
    if col_tile is None and D >= 2048:
        col_tile = _pick_col_tile(D)

    if col_tile is None or col_tile == D:
        try:
            # Single-buffer the grid-invariant weight/bias (saves a redundant VMEM copy).
            return _call_whole_d(x, mod, w_t, b, ts, invariant_buffers=1)
        except Exception:
            # Fallback: default double-buffering (identical numerics, slightly more VMEM).
            return _call_whole_d(x, mod, w_t, b, ts, invariant_buffers=None)

    tn = col_tile
    assert D % tn == 0 and tn % 128 == 0, "col_tile must divide D and be a multiple of 128"
    return _call_col_tiled(x, mod, w_t, b, ts, tn)


# ---------------------------------------------------------------------------
# Wrapper + reference
# ---------------------------------------------------------------------------
def _make_modulators(x, params, ctxt):
    """Tiny per-batch projections done in plain JAX, packed as one lane-dense (B,3,D)
    bf16 input -> a single small DMA per batch."""
    B, S, D = x.shape
    if ctxt is not None:
        c = jax.nn.silu(ctxt.astype(jnp.float32))
        scale = c @ params["w_scale"].T + params["b_scale"]
        shift = c @ params["w_shift"].T + params["b_shift"]
        gate = c @ params["w_gate"].T + params["b_gate"]
    else:
        scale = jnp.zeros((B, D), jnp.float32)
        shift = jnp.zeros((B, D), jnp.float32)
        gate = jnp.broadcast_to(params["gate_param"], (B, D)).astype(jnp.float32)
    return jnp.stack([scale, shift, gate], axis=1).astype(jnp.bfloat16)  # (B, 3, D)


def residual_forward(x, params, ctxt=None, *, seq_tile=512, col_tile=None):
    mod = _make_modulators(x, params, ctxt)
    w_t = params["w_fn"].T.astype(jnp.bfloat16)          # PyTorch Linear stores (out, in)
    b = params["b_fn"][None, :].astype(jnp.bfloat16)
    return residual_pallas(x, mod, w_t, b, seq_tile=seq_tile, col_tile=col_tile)


def residual_ref(x, params, ctxt=None):
    """Pure-JAX reference with identical dtype casts (fp32 norm, bf16-fed matmul)."""
    mod = _make_modulators(x, params, ctxt).astype(jnp.float32)   # (B,3,D)
    xf = x.astype(jnp.float32)
    normed = xf * lax.rsqrt(jnp.mean(xf * xf, axis=-1, keepdims=True) + RMS_EPS)
    scale = mod[:, 0:1, :]
    shift = mod[:, 1:2, :]
    gate = mod[:, 2:3, :]
    tmp = (normed * (scale + 1.0) + shift).astype(jnp.bfloat16)
    w_t = params["w_fn"].T.astype(jnp.bfloat16)
    y = jnp.einsum("bsd,de->bse", tmp, w_t, preferred_element_type=jnp.float32)
    y = y + params["b_fn"][None, None, :].astype(jnp.bfloat16).astype(jnp.float32)
    return (xf + y * gate).astype(x.dtype)


def make_params(key, dim, ctxt_dim, zero_init_modulator):
    """Shapes follow Residual.__init__ with fn = Linear(dim, dim). The PyTorch module
    zero-inits scale/shift/gate (bypass at init); a non-zero init exercises the kernel."""
    ks = jax.random.split(key, 8)
    params = {
        "w_fn": jax.random.normal(ks[0], (dim, dim), jnp.float32) * 0.1,
        "b_fn": jax.random.normal(ks[1], (dim,), jnp.float32) * 0.1,
    }
    if zero_init_modulator:
        params.update({
            "w_scale": jnp.zeros((dim, ctxt_dim), jnp.float32),
            "b_scale": jnp.zeros((dim,), jnp.float32),
            "w_shift": jnp.zeros((dim, ctxt_dim), jnp.float32),
            "b_shift": jnp.zeros((dim,), jnp.float32),
            "w_gate": jnp.zeros((dim, ctxt_dim), jnp.float32),
            "b_gate": jnp.zeros((dim,), jnp.float32),
            "gate_param": jnp.zeros((dim,), jnp.float32),
        })
    else:
        params.update({
            "w_scale": jax.random.normal(ks[2], (dim, ctxt_dim), jnp.float32) * 0.1,
            "b_scale": jax.random.normal(ks[3], (dim,), jnp.float32) * 0.1,
            "w_shift": jax.random.normal(ks[4], (dim, ctxt_dim), jnp.float32) * 0.1,
            "b_shift": jax.random.normal(ks[5], (dim,), jnp.float32) * 0.1,
            "w_gate": jax.random.normal(ks[6], (dim, ctxt_dim), jnp.float32) * 0.1,
            "b_gate": jax.random.normal(ks[7], (dim,), jnp.float32) * 0.1,
            "gate_param": jax.random.normal(ks[2], (dim,), jnp.float32) * 0.1,
        })
    return params


# ---------------------------------------------------------------------------
# Test
# ---------------------------------------------------------------------------
if __name__ == "__main__":
    # D multiple of 128 (lane-dense stores); S = 2 x default seq tile so the pipeline
    # has multiple steps per batch.
    B, S, D, C = 2, 1024, 256, 64
    key = jax.random.PRNGKey(0)
    kx, kc, kp = jax.random.split(key, 3)
    x = jax.random.normal(kx, (B, S, D), jnp.float32).astype(jnp.bfloat16)
    ctxt = jax.random.normal(kc, (B, C), jnp.float32)

    # 1) Module-faithful init (reset_parameters zeros the modulator): output == x.
    p_zero = make_params(kp, D, C, zero_init_modulator=True)
    out_init = jax.block_until_ready(residual_forward(x, p_zero, ctxt=ctxt))
    assert jnp.allclose(out_init.astype(jnp.float32), x.astype(jnp.float32)), \
        "zero-init gate should bypass the block"

    # 2) Non-zero params exercising the fused whole-D kernel (ctxt path).
    p = make_params(kp, D, C, zero_init_modulator=False)
    out = jax.block_until_ready(residual_forward(x, p, ctxt=ctxt))
    ref = residual_ref(x, p, ctxt=ctxt)
    assert jnp.allclose(out.astype(jnp.float32), ref.astype(jnp.float32),
                        atol=3e-2, rtol=3e-2), "ctxt path mismatch"

    # 3) No-ctxt path (gate is a per-dim parameter).
    out_nc = jax.block_until_ready(residual_forward(x, p, ctxt=None))
    ref_nc = residual_ref(x, p, ctxt=None)
    assert jnp.allclose(out_nc.astype(jnp.float32), ref_nc.astype(jnp.float32),
                        atol=3e-2, rtol=3e-2), "no-ctxt path mismatch"

    # 4) Column-tiled (large-D) kernel, forced at this small shape to exercise the path.
    out_ct = jax.block_until_ready(residual_forward(x, p, ctxt=ctxt, col_tile=128))
    assert jnp.allclose(out_ct.astype(jnp.float32), ref.astype(jnp.float32),
                        atol=3e-2, rtol=3e-2), "column-tiled path mismatch"

    # 5) Ragged S (not a multiple of the requested tile) -> divisor tile (384), no slab.
    x_r = jax.random.normal(kx, (B, 768, D), jnp.float32).astype(jnp.bfloat16)
    out_r = jax.block_until_ready(residual_forward(x_r, p, ctxt=ctxt))
    ref_r = residual_ref(x_r, p, ctxt=ctxt)
    assert jnp.allclose(out_r.astype(jnp.float32), ref_r.astype(jnp.float32),
                        atol=3e-2, rtol=3e-2), "ragged-S path mismatch"

    print("KERNEL_OK")
</pallas_src>

<mosaic_0001>
module attributes {stable_mosaic.version = 11 : i64} {
  func.func @_residual_kernel(%arg0: i32, %arg1: i32, %arg2: memref<1x512x256xbf16, #tpu.memory_space<vmem>>, %arg3: memref<1x3x256xbf16, #tpu.memory_space<vmem>>, %arg4: memref<256x256xbf16, #tpu.memory_space<vmem>>, %arg5: memref<1x256xbf16, #tpu.memory_space<vmem>>, %arg6: memref<1x512x256xbf16, #tpu.memory_space<vmem>>) attributes {dimension_semantics = [#tpu.dimension_semantics<parallel>, #tpu.dimension_semantics<parallel>], iteration_bounds = array<i64: 2, 2>, scalar_prefetch = 0 : i64, scratch_operands = 0 : i64, tpu.core_type = #tpu.core_type<tc>, window_params = [{transform_indices = @transform_0, window_bounds = array<i64: 1, 512, 256>}, {transform_indices = @transform_1, window_bounds = array<i64: 1, 3, 256>}, {pipeline_mode = #tpu.pipeline_mode<synchronous>, transform_indices = @transform_2, window_bounds = array<i64: 256, 256>}, {pipeline_mode = #tpu.pipeline_mode<synchronous>, transform_indices = @transform_3, window_bounds = array<i64: 1, 256>}, {transform_indices = @transform_4, window_bounds = array<i64: 1, 512, 256>}]} {
    %c0 = arith.constant 0 : index
    %c0_0 = arith.constant 0 : index
    %c0_1 = arith.constant 0 : index
    %0 = vector.load %arg2[%c0, %c0_0, %c0_1] : memref<1x512x256xbf16, #tpu.memory_space<vmem>>, vector<1x512x256xbf16>
    %1 = vector.shape_cast %0 : vector<1x512x256xbf16> to vector<512x256xbf16>
    %2 = arith.extf %1 : vector<512x256xbf16> to vector<512x256xf32>
    %3 = arith.mulf %2, %2 : vector<512x256xf32>
    %cst = arith.constant dense<0.000000e+00> : vector<512xf32>
    %4 = vector.multi_reduction <add>, %3, %cst [1] : vector<512x256xf32> to vector<512xf32>
    %5 = vector.shape_cast %4 : vector<512xf32> to vector<512x1xf32>
    %cst_2 = arith.constant 2.560000e+02 : f32
    %6 = vector.broadcast %cst_2 : f32 to vector<512x1xf32>
    %7 = arith.divf %5, %6 : vector<512x1xf32>
    %cst_3 = arith.constant 1.1920929E-7 : f32
    %8 = vector.broadcast %cst_3 : f32 to vector<512x1xf32>
    %9 = arith.addf %7, %8 : vector<512x1xf32>
    %10 = math.rsqrt %9 : vector<512x1xf32>
    %11 = vector.broadcast %10 : vector<512x1xf32> to vector<512x256xf32>
    %12 = arith.mulf %2, %11 : vector<512x256xf32>
    %c0_4 = arith.constant 0 : index
    %c0_5 = arith.constant 0 : index
    %c0_6 = arith.constant 0 : index
    %13 = vector.load %arg3[%c0_4, %c0_5, %c0_6] : memref<1x3x256xbf16, #tpu.memory_space<vmem>>, vector<1x3x256xbf16>
    %14 = vector.shape_cast %13 : vector<1x3x256xbf16> to vector<3x256xbf16>
    %15 = arith.extf %14 : vector<3x256xbf16> to vector<3x256xf32>
    %16 = vector.extract_strided_slice %15 {offsets = [0, 0], sizes = [1, 256], strides = [1, 1]} : vector<3x256xf32> to vector<1x256xf32>
    %cst_7 = arith.constant 1.000000e+00 : f32
    %17 = vector.broadcast %cst_7 : f32 to vector<1x256xf32>
    %18 = arith.addf %16, %17 : vector<1x256xf32>
    %19 = vector.broadcast %18 : vector<1x256xf32> to vector<512x256xf32>
    %20 = arith.mulf %12, %19 : vector<512x256xf32>
    %21 = vector.extract_strided_slice %15 {offsets = [1, 0], sizes = [1, 256], strides = [1, 1]} : vector<3x256xf32> to vector<1x256xf32>
    %22 = vector.broadcast %21 : vector<1x256xf32> to vector<512x256xf32>
    %23 = arith.addf %20, %22 : vector<512x256xf32>
    %24 = arith.truncf %23 : vector<512x256xf32> to vector<512x256xbf16>
    %c0_8 = arith.constant 0 : index
    %c0_9 = arith.constant 0 : index
    %25 = vector.load %arg4[%c0_8, %c0_9] : memref<256x256xbf16, #tpu.memory_space<vmem>>, vector<256x256xbf16>
    %cst_10 = arith.constant dense<0.000000e+00> : vector<512x256xf32>
    %26 = tpu.matmul %24, %25, %cst_10 {dimension_numbers = #tpu.dot_dimension_numbers<[1], [0], [0], [1], [0, 0, 1, 1], [], []>} : vector<512x256xbf16>, vector<256x256xbf16>, vector<512x256xf32> -> vector<512x256xf32>
    %c0_11 = arith.constant 0 : index
    %c0_12 = arith.constant 0 : index
    %27 = vector.load %arg5[%c0_11, %c0_12] : memref<1x256xbf16, #tpu.memory_space<vmem>>, vector<1x256xbf16>
    %28 = arith.extf %27 : vector<1x256xbf16> to vector<1x256xf32>
    %29 = vector.broadcast %28 : vector<1x256xf32> to vector<512x256xf32>
    %30 = arith.addf %26, %29 : vector<512x256xf32>
    %c0_13 = arith.constant 0 : index
    %c0_14 = arith.constant 0 : index
    %c0_15 = arith.constant 0 : index
    %31 = vector.load %arg2[%c0_13, %c0_14, %c0_15] : memref<1x512x256xbf16, #tpu.memory_space<vmem>>, vector<1x512x256xbf16>
    %32 = vector.shape_cast %31 : vector<1x512x256xbf16> to vector<512x256xbf16>
    %33 = arith.extf %32 : vector<512x256xbf16> to vector<512x256xf32>
    %34 = vector.extract_strided_slice %15 {offsets = [2, 0], sizes = [1, 256], strides = [1, 1]} : vector<3x256xf32> to vector<1x256xf32>
    %35 = vector.broadcast %34 : vector<1x256xf32> to vector<512x256xf32>
    %36 = arith.mulf %30, %35 : vector<512x256xf32>
    %37 = arith.addf %33, %36 : vector<512x256xf32>
    %38 = arith.truncf %37 : vector<512x256xf32> to vector<512x256xbf16>
    %c0_16 = arith.constant 0 : index
    %c0_17 = arith.constant 0 : index
    %c0_18 = arith.constant 0 : index
    %39 = vector.load %arg6[%c0_16, %c0_17, %c0_18] : memref<1x512x256xbf16, #tpu.memory_space<vmem>>, vector<1x512x256xbf16>
    %40 = vector.shape_cast %39 : vector<1x512x256xbf16> to vector<512x256xbf16>
    %41 = vector.shape_cast %38 : vector<512x256xbf16> to vector<1x512x256xbf16>
    tpu.vector_store %arg6[%c0_16, %c0_17, %c0_18], %41 {strides = array<i32>} : memref<1x512x256xbf16, #tpu.memory_space<vmem>>, vector<1x512x256xbf16>,
    return
  }
  func.func @transform_0(%arg0: i32, %arg1: i32) -> (i32, i32, i32) {
    %c0_i32 = arith.constant 0 : i32
    %c0_i32_0 = arith.constant 0 : i32
    return %arg1, %arg0, %c0_i32 : i32, i32, i32
  }
  func.func @transform_1(%arg0: i32, %arg1: i32) -> (i32, i32, i32) {
    %c0_i32 = arith.constant 0 : i32
    %c0_i32_0 = arith.constant 0 : i32
    %c0_i32_1 = arith.constant 0 : i32
    return %arg1, %c0_i32, %c0_i32_0 : i32, i32, i32
  }
  func.func @transform_2(%arg0: i32, %arg1: i32) -> (i32, i32) {
    %c0_i32 = arith.constant 0 : i32
    %c0_i32_0 = arith.constant 0 : i32
    %c0_i32_1 = arith.constant 0 : i32
    return %c0_i32, %c0_i32_0 : i32, i32
  }
  func.func @transform_3(%arg0: i32, %arg1: i32) -> (i32, i32) {
    %c0_i32 = arith.constant 0 : i32
    %c0_i32_0 = arith.constant 0 : i32
    %c0_i32_1 = arith.constant 0 : i32
    return %c0_i32, %c0_i32_0 : i32, i32
  }
  func.func @transform_4(%arg0: i32, %arg1: i32) -> (i32, i32, i32) {
    %c0_i32 = arith.constant 0 : i32
    %c0_i32_0 = arith.constant 0 : i32
    return %arg1, %arg0, %c0_i32 : i32, i32, i32
  }
}

module attributes {stable_mosaic.version = 11 : i64} {
  func.func @_residual_kernel(%arg0: i32, %arg1: i32, %arg2: memref<1x512x256xbf16, #tpu.memory_space<vmem>>, %arg3: memref<1x3x256xbf16, #tpu.memory_space<vmem>>, %arg4: memref<256x256xbf16, #tpu.memory_space<vmem>>, %arg5: memref<1x256xbf16, #tpu.memory_space<vmem>>, %arg6: memref<1x512x256xbf16, #tpu.memory_space<vmem>>) attributes {dimension_semantics = [#tpu.dimension_semantics<parallel>, #tpu.dimension_semantics<parallel>], iteration_bounds = array<i64: 2, 2>, scalar_prefetch = 0 : i64, scratch_operands = 0 : i64, tpu.core_type = #tpu.core_type<tc>, window_params = [{transform_indices = @transform_0, window_bounds = array<i64: 1, 512, 256>}, {transform_indices = @transform_1, window_bounds = array<i64: 1, 3, 256>}, {pipeline_mode = #tpu.pipeline_mode<synchronous>, transform_indices = @transform_2, window_bounds = array<i64: 256, 256>}, {pipeline_mode = #tpu.pipeline_mode<synchronous>, transform_indices = @transform_3, window_bounds = array<i64: 1, 256>}, {transform_indices = @transform_4, window_bounds = array<i64: 1, 512, 256>}]} {
    %c0 = arith.constant 0 : index
    %c0_0 = arith.constant 0 : index
    %c0_1 = arith.constant 0 : index
    %0 = vector.load %arg2[%c0, %c0_0, %c0_1] : memref<1x512x256xbf16, #tpu.memory_space<vmem>>, vector<1x512x256xbf16>
    %1 = vector.shape_cast %0 : vector<1x512x256xbf16> to vector<512x256xbf16>
    %2 = arith.extf %1 : vector<512x256xbf16> to vector<512x256xf32>
    %3 = arith.mulf %2, %2 : vector<512x256xf32>
    %cst = arith.constant dense<0.000000e+00> : vector<512xf32>
    %4 = vector.multi_reduction <add>, %3, %cst [1] : vector<512x256xf32> to vector<512xf32>
    %5 = vector.shape_cast %4 : vector<512xf32> to vector<512x1xf32>
    %cst_2 = arith.constant 2.560000e+02 : f32
    %6 = vector.broadcast %cst_2 : f32 to vector<512x1xf32>
    %7 = arith.divf %5, %6 : vector<512x1xf32>
    %cst_3 = arith.constant 1.1920929E-7 : f32
    %8 = vector.broadcast %cst_3 : f32 to vector<512x1xf32>
    %9 = arith.addf %7, %8 : vector<512x1xf32>
    %10 = math.rsqrt %9 : vector<512x1xf32>
    %11 = vector.broadcast %10 : vector<512x1xf32> to vector<512x256xf32>
    %12 = arith.mulf %2, %11 : vector<512x256xf32>
    %c0_4 = arith.constant 0 : index
    %c0_5 = arith.constant 0 : index
    %c0_6 = arith.constant 0 : index
    %13 = vector.load %arg3[%c0_4, %c0_5, %c0_6] : memref<1x3x256xbf16, #tpu.memory_space<vmem>>, vector<1x3x256xbf16>
    %14 = vector.shape_cast %13 : vector<1x3x256xbf16> to vector<3x256xbf16>
    %15 = arith.extf %14 : vector<3x256xbf16> to vector<3x256xf32>
    %16 = vector.extract_strided_slice %15 {offsets = [0, 0], sizes = [1, 256], strides = [1, 1]} : vector<3x256xf32> to vector<1x256xf32>
    %cst_7 = arith.constant 1.000000e+00 : f32
    %17 = vector.broadcast %cst_7 : f32 to vector<1x256xf32>
    %18 = arith.addf %16, %17 : vector<1x256xf32>
    %19 = vector.broadcast %18 : vector<1x256xf32> to vector<512x256xf32>
    %20 = arith.mulf %12, %19 : vector<512x256xf32>
    %21 = vector.extract_strided_slice %15 {offsets = [1, 0], sizes = [1, 256], strides = [1, 1]} : vector<3x256xf32> to vector<1x256xf32>
    %22 = vector.broadcast %21 : vector<1x256xf32> to vector<512x256xf32>
    %23 = arith.addf %20, %22 : vector<512x256xf32>
    %24 = arith.truncf %23 : vector<512x256xf32> to vector<512x256xbf16>
    %c0_8 = arith.constant 0 : index
    %c0_9 = arith.constant 0 : index
    %25 = vector.load %arg4[%c0_8, %c0_9] : memref<256x256xbf16, #tpu.memory_space<vmem>>, vector<256x256xbf16>
    %cst_10 = arith.constant dense<0.000000e+00> : vector<512x256xf32>
    %26 = tpu.matmul %24, %25, %cst_10 {dimension_numbers = #tpu.dot_dimension_numbers<[1], [0], [0], [1], [0, 0, 1, 1], [], []>} : vector<512x256xbf16>, vector<256x256xbf16>, vector<512x256xf32> -> vector<512x256xf32>
    %c0_11 = arith.constant 0 : index
    %c0_12 = arith.constant 0 : index
    %27 = vector.load %arg5[%c0_11, %c0_12] : memref<1x256xbf16, #tpu.memory_space<vmem>>, vector<1x256xbf16>
    %28 = arith.extf %27 : vector<1x256xbf16> to vector<1x256xf32>
    %29 = vector.broadcast %28 : vector<1x256xf32> to vector<512x256xf32>
    %30 = arith.addf %26, %29 : vector<512x256xf32>
    %c0_13 = arith.constant 0 : index
    %c0_14 = arith.constant 0 : index
    %c0_15 = arith.constant 0 : index
    %31 = vector.load %arg2[%c0_13, %c0_14, %c0_15] : memref<1x512x256xbf16, #tpu.memory_space<vmem>>, vector<1x512x256xbf16>
    %32 = vector.shape_cast %31 : vector<1x512x256xbf16> to vector<512x256xbf16>
    %33 = arith.extf %32 : vector<512x256xbf16> to vector<512x256xf32>
    %34 = vector.extract_strided_slice %15 {offsets = [2, 0], sizes = [1, 256], strides = [1, 1]} : vector<3x256xf32> to vector<1x256xf32>
    %35 = vector.broadcast %34 : vector<1x256xf32> to vector<512x256xf32>
    %36 = arith.mulf %30, %35 : vector<512x256xf32>
    %37 = arith.addf %33, %36 : vector<512x256xf32>
    %38 = arith.truncf %37 : vector<512x256xf32> to vector<512x256xbf16>
    %c0_16 = arith.constant 0 : index
    %c0_17 = arith.constant 0 : index
    %c0_18 = arith.constant 0 : index
    %39 = vector.load %arg6[%c0_16, %c0_17, %c0_18] : memref<1x512x256xbf16, #tpu.memory_space<vmem>>, vector<1x512x256xbf16>
    %40 = vector.shape_cast %39 : vector<1x512x256xbf16> to vector<512x256xbf16>
    %41 = vector.shape_cast %38 : vector<512x256xbf16> to vector<1x512x256xbf16>
    tpu.vector_store %arg6[%c0_16, %c0_17, %c0_18], %41 {strides = array<i32>} : memref<1x512x256xbf16, #tpu.memory_space<vmem>>, vector<1x512x256xbf16>,
    return
  }
  func.func @transform_0(%arg0: i32, %arg1: i32) -> (i32, i32, i32) {
    %c0_i32 = arith.constant 0 : i32
    %c0_i32_0 = arith.constant 0 : i32
    return %arg1, %arg0, %c0_i32 : i32, i32, i32
  }
  func.func @transform_1(%arg0: i32, %arg1: i32) -> (i32, i32, i32) {
    %c0_i32 = arith.constant 0 : i32
    %c0_i32_0 = arith.constant 0 : i32
    %c0_i32_1 = arith.constant 0 : i32
    return %arg1, %c0_i32, %c0_i32_0 : i32, i32, i32
  }
  func.func @transform_2(%arg0: i32, %arg1: i32) -> (i32, i32) {
    %c0_i32 = arith.constant 0 : i32
    %c0_i32_0 = arith.constant 0 : i32
    %c0_i32_1 = arith.constant 0 : i32
    return %c0_i32, %c0_i32_0 : i32, i32
  }
  func.func @transform_3(%arg0: i32, %arg1: i32) -> (i32, i32) {
    %c0_i32 = arith.constant 0 : i32
    %c0_i32_0 = arith.constant 0 : i32
    %c0_i32_1 = arith.constant 0 : i32
    return %c0_i32, %c0_i32_0 : i32, i32
  }
  func.func @transform_4(%arg0: i32, %arg1: i32) -> (i32, i32, i32) {
    %c0_i32 = arith.constant 0 : i32
    %c0_i32_0 = arith.constant 0 : i32
    return %arg1, %arg0, %c0_i32 : i32, i32, i32
  }
}

</mosaic_0001>

<llo_original>
// kernel: tpu_custom_call.1
$region0: #{tpu_custom_call.1}
  #allocation0 [shape = 'u32[]', space=smem, size = 0x4, offset = 0x4, fixed_abs, tag = 'smem constant byte address 0x4 - core index']
  #allocation1 [shape = 'u32[144,128]{1,0:T(1,128)}', space=vmem, size = 0x12000, scoped, tag = 'internal scratch']
  %s0 = inlined_call_operand.hbm [shape: bf16[2,1024,256], index: 0, kind: input, shape index: {}]
  %s1 = inlined_call_operand.vmem [shape: bf16[2,3,256], index: 1, kind: input, shape index: {}]
  %s2 = inlined_call_operand.hbm [shape: bf16[256,256], index: 2, kind: input, shape index: {}]
  %s3 = inlined_call_operand.vmem [shape: bf16[1,256], index: 3, kind: input, shape index: {}]
  %s4 = inlined_call_operand.hbm [shape: bf16[2,1024,256], index: 4, kind: output, shape index: {}]
  %s5 = sld [smem:[#allocation0]]
  $region57: #{tpu_custom_call.1} parent=0
    _
  %s7 = ssub.s32 1, %s5
  %s8 = scalar_select 0, %s7, %s5
  $region1: #{tpu_custom_call.1} parent=0
    #allocation2 [shape = 'u8[524288]{0}', space=vmem, size = 0x80000, scoped, tag = 'input window, operand 0']
    #allocation3 [shape = 's32[2]{0}', space=sflag, size = 0x8, scoped, tag = 'scoped memory for tpu_custom_call.1']
    #allocation4 [shape = 's32[2]{0}', space=sflag, size = 0x8, scoped, tag = 'scoped memory for tpu_custom_call.1']
    #allocation5 [shape = 'u8[131072]{0}', space=vmem, size = 0x20000, scoped, tag = 'input window, operand 2, single buffered']
    #allocation6 [shape = 's32[1]{0}', space=sflag, size = 0x4, scoped, tag = 'scoped memory for tpu_custom_call.1']
    #allocation7 [shape = 'u8[524288]{0}', space=vmem, size = 0x80000, scoped, tag = 'output window, operand 0']
    %9 = vsyncpa [#allocation3], 0
    %s10 = scalar_lea.sflag [#allocation3], 1
    %11 = vsyncpa %s10, 0
    %12 = vsyncpa [#allocation6], 0
    %13 = vsyncpa [#allocation4], 0
    %s14 = scalar_lea.sflag [#allocation4], 1
    %15 = vsyncpa %s14, 0
    loop: start=0, step=1, limit=6
    $region2: #{tpu_custom_call.1} parent=1 // loop_pre_header
      _
    $region3: #{tpu_custom_call.1} parent=1 // loop_header
      %s17 = sphi 0, %s21
      %p18 = scmp.ge.s32.totalorder %s17, 6
      %s24 = sphi 0, %s36
      %s25 = sphi 0, %s32
      %s26 = sphi 0, %s24
      %s27 = sphi 0, %s25
      %s28 = sphi 0, %s26
      %s29 = sphi 0, %s27
      %s41 = sphi 0, %s43
      %s44 = sphi 0, %s41
      %s45 = sphi 0, %s44
      %s61 = sphi 0, %s45
      %s67 = sphi 0, %s69
      %s70 = sphi 0, %s67
      %s71 = sphi 0, %s70
      %s87 = sphi 0, %s71
      %s91 = sphi 0, %s91
      %s93 = sphi 0, %s91
      %s94 = sphi 0, %s93
      %s108 = sphi 0, %s94
      %s112 = sphi 0, %s112
      %s114 = sphi 0, %s112
      %s115 = sphi 0, %s114
      %s129 = sphi 0, %s115
      %s137 = sphi 0, %s139
      %s140 = sphi 0, %s137
      %s141 = sphi 0, %s140
      %s157 = sphi 0, %s141
    $region4: #{tpu_custom_call.1} parent=1 // loop_header_branch
      %20 = sbr.rel (%p18) target = $region8
    $region5: #{tpu_custom_call.1} parent=1 // loop_body
      %s22 = ssub.s32 %s17, 1
      %s23 = ssub.s32 %s17, 2
      %s30 = sadd.s32 1, %s25
      %p31 = scmp.ge.s32.totalorder %s30, 2
      %s32 = scalar_select %p31, 0, %s30
      %s33 = sadd.s32 1, %s24
      %s34 = scalar_select %p31, %s33, %s24
      %p35 = scmp.ge.s32.totalorder %s34, 2
      %s36 = scalar_select %p35, 0, %s34
      %s37 = ssub.s32 %s25, %s32
      %s38 = ssub.s32 %s24, %s36
      %s39 = sor.u32 %s37, %s38
      %p40 = scmp.eq.s32.totalorder %s39, 0
      %s42 = sadd.s32 %s41, 1
      %s43 = scalar_select %p40, %s41, %s42
      %p46 = pneg %p40
      %p47 = scmp.eq.s32.totalorder %s17, 3
      %p48 = por %p46, %p47
      %p49 = scmp.ne.s32.totalorder %s41, %s44
      %p50 = scmp.eq.s32.totalorder %s17, 0
      %p51 = por %p49, %p50
      %p52 = scmp.ne.s32.totalorder %s41, %s44
      %p53 = scmp.eq.s32.totalorder %s22, 3
      %p54 = por %p52, %p53
      %p55 = scmp.ne.s32.totalorder %s44, %s45
      %p56 = scmp.eq.s32.totalorder %s22, 0
      %p57 = por %p55, %p56
      %p58 = scmp.ne.s32.totalorder %s44, %s45
      %p59 = scmp.eq.s32.totalorder %s23, 3
      %p60 = por %p58, %p59
      %p62 = scmp.ne.s32.totalorder %s45, %s61
      %p63 = scmp.eq.s32.totalorder %s23, 0
      %p64 = por %p62, %p63
      %s65 = ssub.s32 %s25, %s32
      %p66 = scmp.eq.s32.totalorder %s65, 0
      %s68 = sadd.s32 %s67, 1
      %s69 = scalar_select %p66, %s67, %s68
      %p72 = pneg %p66
      %p73 = scmp.eq.s32.totalorder %s17, 3
      %p74 = por %p72, %p73
      %p75 = scmp.ne.s32.totalorder %s67, %s70
      %p76 = scmp.eq.s32.totalorder %s17, 0
      %p77 = por %p75, %p76
      %p78 = scmp.ne.s32.totalorder %s67, %s70
      %p79 = scmp.eq.s32.totalorder %s22, 3
      %p80 = por %p78, %p79
      %p81 = scmp.ne.s32.totalorder %s70, %s71
      %p82 = scmp.eq.s32.totalorder %s22, 0
      %p83 = por %p81, %p82
      %p84 = scmp.ne.s32.totalorder %s70, %s71
      %p85 = scmp.eq.s32.totalorder %s23, 3
      %p86 = por %p84, %p85
      %p88 = scmp.ne.s32.totalorder %s71, %s87
      %p89 = scmp.eq.s32.totalorder %s23, 0
      %p90 = por %p88, %p89
      %s92 = sadd.s32 %s91, 1
      %p95 = scmp.eq.s32.totalorder %s17, 3
      %p96 = scmp.ne.s32.totalorder %s91, %s93
      %p97 = scmp.eq.s32.totalorder %s17, 0
      %p98 = por %p96, %p97
      %p99 = scmp.ne.s32.totalorder %s91, %s93
      %p100 = scmp.eq.s32.totalorder %s22, 3
      %p101 = por %p99, %p100
      %p102 = scmp.ne.s32.totalorder %s93, %s94
      %p103 = scmp.eq.s32.totalorder %s22, 0
      %p104 = por %p102, %p103
      %p105 = scmp.ne.s32.totalorder %s93, %s94
      %p106 = scmp.eq.s32.totalorder %s23, 3
      %p107 = por %p105, %p106
      %p109 = scmp.ne.s32.totalorder %s94, %s108
      %p110 = scmp.eq.s32.totalorder %s23, 0
      %p111 = por %p109, %p110
      %s113 = sadd.s32 %s112, 1
      %p116 = scmp.eq.s32.totalorder %s17, 3
      %p117 = scmp.ne.s32.totalorder %s112, %s114
      %p118 = scmp.eq.s32.totalorder %s17, 0
      %p119 = por %p117, %p118
      %p120 = scmp.ne.s32.totalorder %s112, %s114
      %p121 = scmp.eq.s32.totalorder %s22, 3
      %p122 = por %p120, %p121
      %p123 = scmp.ne.s32.totalorder %s114, %s115
      %p124 = scmp.eq.s32.totalorder %s22, 0
      %p125 = por %p123, %p124
      %p126 = scmp.ne.s32.totalorder %s114, %s115
      %p127 = scmp.eq.s32.totalorder %s23, 3
      %p128 = por %p126, %p127
      %p130 = scmp.ne.s32.totalorder %s115, %s129
      %p131 = scmp.eq.s32.totalorder %s23, 0
      %p132 = por %p130, %p131
      %s133 = ssub.s32 %s25, %s32
      %s134 = ssub.s32 %s24, %s36
      %s135 = sor.u32 %s133, %s134
      %p136 = scmp.eq.s32.totalorder %s135, 0
      %s138 = sadd.s32 %s137, 1
      %s139 = scalar_select %p136, %s137, %s138
      %p142 = pneg %p136
      %p143 = scmp.eq.s32.totalorder %s17, 3
      %p144 = por %p142, %p143
      %p145 = scmp.ne.s32.totalorder %s137, %s140
      %p146 = scmp.eq.s32.totalorder %s17, 0
      %p147 = por %p145, %p146
      %p148 = scmp.ne.s32.totalorder %s137, %s140
      %p149 = scmp.eq.s32.totalorder %s22, 3
      %p150 = por %p148, %p149
      %p151 = scmp.ne.s32.totalorder %s140, %s141
      %p152 = scmp.eq.s32.totalorder %s22, 0
      %p153 = por %p151, %p152
      %p154 = scmp.ne.s32.totalorder %s140, %s141
      %p155 = scmp.eq.s32.totalorder %s23, 3
      %p156 = por %p154, %p155
      %p158 = scmp.ne.s32.totalorder %s141, %s157
      %p159 = scmp.eq.s32.totalorder %s23, 0
      %p160 = por %p158, %p159
      %p161 = scmp.le.s32.totalorder 1, %s17
      %p162 = scmp.lt.s32.totalorder %s17, 5
      %p163 = pnand %p161, %p162
      %p164 = pneg %p163
      // Predicated region
      $region9: #{tpu_custom_call.1} parent=5 // pred_check
        _
      $region10: #{tpu_custom_call.1} parent=5 // pred_check_branch
        %166 = sbr.rel (%p163) target = $region12
      $region11: #{tpu_custom_call.1} parent=5 // pred_region
        %s167 = ssub.s32 %s17, 1
        // Predicated region
        $region13: #{tpu_custom_call.1} parent=11 // pred_check
          %p168 = pneg %p104
        $region14: #{tpu_custom_call.1} parent=11 // pred_check_branch
          %170 = sbr.rel (%p168) target = $region16
        $region15: #{tpu_custom_call.1} parent=11 // pred_region
          %s172 = ssub.s32 4096, 4096
          %173 = vsyncadd [#allocation6], %s172
          %s174 = sshll.u32 [#allocation5], 4
          %s175 = int_to_ptr.vmem [resolvable:$true] %s174
          %180 = dma.hbm_to_vmem [thread:$0]  %s2, 4096, %s175, [#allocation6], 128, 128, 8
        $region16: #{tpu_custom_call.1} parent=11 // pred_fallthru
          _
        // Predicated region
        $region17: #{tpu_custom_call.1} parent=11 // pred_check
          %p181 = pneg %p125
        $region18: #{tpu_custom_call.1} parent=11 // pred_check_branch
          %183 = sbr.rel (%p181) target = $region20
        $region19: #{tpu_custom_call.1} parent=11 // pred_region
          _
        $region20: #{tpu_custom_call.1} parent=11 // pred_fallthru
          _
      $region12: #{tpu_custom_call.1} parent=5 // pred_fallthru
        _
      %p184 = scmp.lt.s32.totalorder %s17, 4
      // Predicated region
      $region21: #{tpu_custom_call.1} parent=5 // pred_check
        %p185 = pneg %p184
      $region22: #{tpu_custom_call.1} parent=5 // pred_check_branch
        %187 = sbr.rel (%p185) target = $region24
      $region23: #{tpu_custom_call.1} parent=5 // pred_region
        // Predicated region
        $region25: #{tpu_custom_call.1} parent=23 // pred_check
          %p188 = pneg %p51
        $region26: #{tpu_custom_call.1} parent=23 // pred_check_branch
          %190 = sbr.rel (%p188) target = $region28
        $region27: #{tpu_custom_call.1} parent=23 // pred_region
          %s191 = sand.u32 %s41, 1
          %s192 = scalar_lea.sflag [#allocation3], %s191
          %s193 = sand.u32 %s41, 1
          %s194 = smul.addr %s193, 512
          %s195 = scalar_lea.vmem [#allocation2], %s194
          %s196 = smul.u32 64, %s24
          %s198 = ssub.s32 8192, 8192
          %199 = vsyncadd %s192, %s198
          %s200 = smul.addr %s196, 2
          %s201 = smul.addr %s25, 256
          %s202 = sadd.s32 %s200, %s201
          %s203 = smul.addr %s202, 64
          %s204 = scalar_lea.hbm %s0, %s203
          %s205 = sshll.u32 %s195, 4
          %s206 = int_to_ptr.vmem [resolvable:$true] %s205
          %211 = dma.hbm_to_vmem [thread:$0]  %s204, 8192, %s206, %s192, 128, 128, 8
        $region28: #{tpu_custom_call.1} parent=23 // pred_fallthru
          _
        // Predicated region
        $region29: #{tpu_custom_call.1} parent=23 // pred_check
          %p212 = pneg %p77
        $region30: #{tpu_custom_call.1} parent=23 // pred_check_branch
          %214 = sbr.rel (%p212) target = $region32
        $region31: #{tpu_custom_call.1} parent=23 // pred_region
          %p215 = scmp.lt.s32.totalorder %s25, 1
          %s216 = scalar_select %p215, %s25, 1
          %s217 = smul.addr %s216, 2
          %s218 = smul.addr %s217, 2
          %s219 = scalar_lea.vmem %s1, %s218
        $region32: #{tpu_custom_call.1} parent=23 // pred_fallthru
          _
      $region24: #{tpu_custom_call.1} parent=5 // pred_fallthru
        _
      %p220 = scmp.le.s32.totalorder 1, %s17
      %p221 = scmp.lt.s32.totalorder %s17, 5
      %p222 = pnand %p220, %p221
      %p223 = pneg %p222
      // Predicated region
      $region33: #{tpu_custom_call.1} parent=5 // pred_check
        _
      $region34: #{tpu_custom_call.1} parent=5 // pred_check_branch
        %225 = sbr.rel (%p222) target = $region36
      $region35: #{tpu_custom_call.1} parent=5 // pred_region
        %s226 = ssub.s32 %s17, 1
        %s227 = sand.u32 %s44, 1
        %s228 = scalar_lea.sflag [#allocation3], %s227
        %s229 = sand.u32 %s44, 1
        %s230 = smul.addr %s229, 512
        %s231 = scalar_lea.vmem [#allocation2], %s230
        // Predicated region
        $region37: #{tpu_custom_call.1} parent=35 // pred_check
          %p232 = pneg %p57
        $region38: #{tpu_custom_call.1} parent=35 // pred_check_branch
          %234 = sbr.rel (%p232) target = $region40
        $region39: #{tpu_custom_call.1} parent=35 // pred_region
          %235 = dma.done %s228, 8192
        $region40: #{tpu_custom_call.1} parent=35 // pred_fallthru
          _
        // Predicated region
        $region41: #{tpu_custom_call.1} parent=35 // pred_check
          %p236 = pneg %p104
        $region42: #{tpu_custom_call.1} parent=35 // pred_check_branch
          %238 = sbr.rel (%p236) target = $region44
        $region43: #{tpu_custom_call.1} parent=35 // pred_region
          %239 = dma.done [#allocation6], 4096
        $region44: #{tpu_custom_call.1} parent=35 // pred_fallthru
          _
        %s240 = sand.u32 %s44, 1
        %s241 = scalar_lea.sflag [#allocation3], %s240
        %s242 = sand.u32 %s44, 1
        %s243 = smul.addr %s242, 512
        %s244 = scalar_lea.vmem [#allocation2], %s243
        %p245 = pneg %p57
        %p246 = pneg %p54
        %p247 = scmp.lt.s32.totalorder %s27, 1
        %s248 = scalar_select %p247, %s27, 1
        %s249 = smul.addr %s248, 2
        %s250 = smul.addr %s249, 2
        %s251 = scalar_lea.vmem %s1, %s250
        %p252 = pneg %p83
        %p253 = pneg %p80
        %p254 = pneg %p104
        %p255 = pneg %p101
        %p256 = pneg %p125
        %p257 = pneg %p122
        %p258 = pneg %p153
        %p259 = pneg %p150
        %s260 = sand.u32 %s140, 1
        %s261 = scalar_lea.sflag [#allocation4], %s260
        %s262 = sand.u32 %s140, 1
        %s263 = smul.addr %s262, 512
        %s264 = scalar_lea.vmem [#allocation7], %s263
        %s265 = smul.u32 64, %s26
        %p266 = scmp.lt.s32.totalorder %s27, 1
        %s267 = scalar_select %p266, %s27, 1
        %s268 = smul.addr %s267, 2
        %s269 = smul.addr %s268, 2
        %s270 = scalar_lea.vmem %s1, %s269
        %s271 = smul.u32 64, %s26
        %v272 = vld [vmem:[%s231] sm:$0xff]
        %v273 = vld [vmem:[%s231 + $0x8] sm:$0xff]
        %v274 = vld [vmem:[%s231 + $0x10] sm:$0xff]
        %v275 = vld [vmem:[%s231 + $0x18] sm:$0xff]
        %v276 = vld [vmem:[%s231 + $0x20] sm:$0xff]
        %v277 = vld [vmem:[%s231 + $0x28] sm:$0xff]
        %v278 = vld [vmem:[%s231 + $0x30] sm:$0xff]
        %v279 = vld [vmem:[%s231 + $0x38] sm:$0xff]
        %v280 = vld [vmem:[%s231 + $0x40] sm:$0xff]
        %v281 = vld [vmem:[%s231 + $0x48] sm:$0xff]
        %v282 = vld [vmem:[%s231 + $0x50] sm:$0xff]
        %v283 = vld [vmem:[%s231 + $0x58] sm:$0xff]
        %v284 = vld [vmem:[%s231 + $0x60] sm:$0xff]
        %v285 = vld [vmem:[%s231 + $0x68] sm:$0xff]
        %v286 = vld [vmem:[%s231 + $0x70] sm:$0xff]
        %v287 = vld [vmem:[%s231 + $0x78] sm:$0xff]
        %v288 = vld [vmem:[%s231 + $0x80] sm:$0xff]
        %v289 = vld [vmem:[%s231 + $0x88] sm:$0xff]
        %v290 = vld [vmem:[%s231 + $0x90] sm:$0xff]
        %v291 = vld [vmem:[%s231 + $0x98] sm:$0xff]
        %v292 = vld [vmem:[%s231 + $0xa0] sm:$0xff]
        %v293 = vld [vmem:[%s231 + $0xa8] sm:$0xff]
        %v294 = vld [vmem:[%s231 + $0xb0] sm:$0xff]
        %v295 = vld [vmem:[%s231 + $0xb8] sm:$0xff]
        %v296 = vld [vmem:[%s231 + $0xc0] sm:$0xff]
        %v297 = vld [vmem:[%s231 + $0xc8] sm:$0xff]
        %v298 = vld [vmem:[%s231 + $0xd0] sm:$0xff]
        %v299 = vld [vmem:[%s231 + $0xd8] sm:$0xff]
        %v300 = vld [vmem:[%s231 + $0xe0] sm:$0xff]
        %v301 = vld [vmem:[%s231 + $0xe8] sm:$0xff]
        %v302 = vld [vmem:[%s231 + $0xf0] sm:$0xff]
        %v303 = vld [vmem:[%s231 + $0xf8] sm:$0xff]
        %v304 = vld [vmem:[%s231 + $0x100] sm:$0xff]
        %v305 = vld [vmem:[%s231 + $0x108] sm:$0xff]
        %v306 = vld [vmem:[%s231 + $0x110] sm:$0xff]
        %v307 = vld [vmem:[%s231 + $0x118] sm:$0xff]
        %v308 = vld [vmem:[%s231 + $0x120] sm:$0xff]
        %v309 = vld [vmem:[%s231 + $0x128] sm:$0xff]
        %v310 = vld [vmem:[%s231 + $0x130] sm:$0xff]
        %v311 = vld [vmem:[%s231 + $0x138] sm:$0xff]
        %v312 = vld [vmem:[%s231 + $0x140] sm:$0xff]
        %v313 = vld [vmem:[%s231 + $0x148] sm:$0xff]
        %v314 = vld [vmem:[%s231 + $0x150] sm:$0xff]
        %v315 = vld [vmem:[%s231 + $0x158] sm:$0xff]
        %v316 = vld [vmem:[%s231 + $0x160] sm:$0xff]
        %v317 = vld [vmem:[%s231 + $0x168] sm:$0xff]
        %v318 = vld [vmem:[%s231 + $0x170] sm:$0xff]
        %v319 = vld [vmem:[%s231 + $0x178] sm:$0xff]
        %v320 = vld [vmem:[%s231 + $0x180] sm:$0xff]
        %v321 = vld [vmem:[%s231 + $0x188] sm:$0xff]
        %v322 = vld [vmem:[%s231 + $0x190] sm:$0xff]
        %v323 = vld [vmem:[%s231 + $0x198] sm:$0xff]
        %v324 = vld [vmem:[%s231 + $0x1a0] sm:$0xff]
        %v325 = vld [vmem:[%s231 + $0x1a8] sm:$0xff]
        %v326 = vld [vmem:[%s231 + $0x1b0] sm:$0xff]
        %v327 = vld [vmem:[%s231 + $0x1b8] sm:$0xff]
        %v328 = vld [vmem:[%s231 + $0x1c0] sm:$0xff]
        %v329 = vld [vmem:[%s231 + $0x1c8] sm:$0xff]
        %v330 = vld [vmem:[%s231 + $0x1d0] sm:$0xff]
        %v331 = vld [vmem:[%s231 + $0x1d8] sm:$0xff]
        %v332 = vld [vmem:[%s231 + $0x1e0] sm:$0xff]
        %v333 = vld [vmem:[%s231 + $0x1e8] sm:$0xff]
        %v334 = vld [vmem:[%s231 + $0x1f0] sm:$0xff]
        %v335 = vld [vmem:[%s231 + $0x1f8] sm:$0xff]
        %v336 = vunpack.c.l.bf16 %v272
        %v337 = vunpack.c.h.bf16 %v272
        %v338 = vunpack.c.l.bf16 %v273
        %v339 = vunpack.c.h.bf16 %v273
        %v340 = vunpack.c.l.bf16 %v274
        %v341 = vunpack.c.h.bf16 %v274
        %v342 = vunpack.c.l.bf16 %v275
        %v343 = vunpack.c.h.bf16 %v275
        %v344 = vunpack.c.l.bf16 %v276
        %v345 = vunpack.c.h.bf16 %v276
        %v346 = vunpack.c.l.bf16 %v277
        %v347 = vunpack.c.h.bf16 %v277
        %v348 = vunpack.c.l.bf16 %v278
        %v349 = vunpack.c.h.bf16 %v278
        %v350 = vunpack.c.l.bf16 %v279
        %v351 = vunpack.c.h.bf16 %v279
        %v352 = vunpack.c.l.bf16 %v280
        %v353 = vunpack.c.h.bf16 %v280
        %v354 = vunpack.c.l.bf16 %v281
        %v355 = vunpack.c.h.bf16 %v281
        %v356 = vunpack.c.l.bf16 %v282
        %v357 = vunpack.c.h.bf16 %v282
        %v358 = vunpack.c.l.bf16 %v283
        %v359 = vunpack.c.h.bf16 %v283
        %v360 = vunpack.c.l.bf16 %v284
        %v361 = vunpack.c.h.bf16 %v284
        %v362 = vunpack.c.l.bf16 %v285
        %v363 = vunpack.c.h.bf16 %v285
        %v364 = vunpack.c.l.bf16 %v286
        %v365 = vunpack.c.h.bf16 %v286
        %v366 = vunpack.c.l.bf16 %v287
        %v367 = vunpack.c.h.bf16 %v287
        %v368 = vunpack.c.l.bf16 %v288
        %v369 = vunpack.c.h.bf16 %v288
        %v370 = vunpack.c.l.bf16 %v289
        %v371 = vunpack.c.h.bf16 %v289
        %v372 = vunpack.c.l.bf16 %v290
        %v373 = vunpack.c.h.bf16 %v290
        %v374 = vunpack.c.l.bf16 %v291
        %v375 = vunpack.c.h.bf16 %v291
        %v376 = vunpack.c.l.bf16 %v292
        %v377 = vunpack.c.h.bf16 %v292
        %v378 = vunpack.c.l.bf16 %v293
        %v379 = vunpack.c.h.bf16 %v293
        %v380 = vunpack.c.l.bf16 %v294
        %v381 = vunpack.c.h.bf16 %v294
        %v382 = vunpack.c.l.bf16 %v295
        %v383 = vunpack.c.h.bf16 %v295
        %v384 = vunpack.c.l.bf16 %v296
        %v385 = vunpack.c.h.bf16 %v296
        %v386 = vunpack.c.l.bf16 %v297
        %v387 = vunpack.c.h.bf16 %v297
        %v388 = vunpack.c.l.bf16 %v298
        %v389 = vunpack.c.h.bf16 %v298
        %v390 = vunpack.c.l.bf16 %v299
        %v391 = vunpack.c.h.bf16 %v299
        %v392 = vunpack.c.l.bf16 %v300
        %v393 = vunpack.c.h.bf16 %v300
        %v394 = vunpack.c.l.bf16 %v301
        %v395 = vunpack.c.h.bf16 %v301
        %v396 = vunpack.c.l.bf16 %v302
        %v397 = vunpack.c.h.bf16 %v302
        %v398 = vunpack.c.l.bf16 %v303
        %v399 = vunpack.c.h.bf16 %v303
        %v400 = vunpack.c.l.bf16 %v304
        %v401 = vunpack.c.h.bf16 %v304
        %v402 = vunpack.c.l.bf16 %v305
        %v403 = vunpack.c.h.bf16 %v305
        %v404 = vunpack.c.l.bf16 %v306
        %v405 = vunpack.c.h.bf16 %v306
        %v406 = vunpack.c.l.bf16 %v307
        %v407 = vunpack.c.h.bf16 %v307
        %v408 = vunpack.c.l.bf16 %v308
        %v409 = vunpack.c.h.bf16 %v308
        %v410 = vunpack.c.l.bf16 %v309
        %v411 = vunpack.c.h.bf16 %v309
        %v412 = vunpack.c.l.bf16 %v310
        %v413 = vunpack.c.h.bf16 %v310
        %v414 = vunpack.c.l.bf16 %v311
        %v415 = vunpack.c.h.bf16 %v311
        %v416 = vunpack.c.l.bf16 %v312
        %v417 = vunpack.c.h.bf16 %v312
        %v418 = vunpack.c.l.bf16 %v313
        %v419 = vunpack.c.h.bf16 %v313
        %v420 = vunpack.c.l.bf16 %v314
        %v421 = vunpack.c.h.bf16 %v314
        %v422 = vunpack.c.l.bf16 %v315
        %v423 = vunpack.c.h.bf16 %v315
        %v424 = vunpack.c.l.bf16 %v316
        %v425 = vunpack.c.h.bf16 %v316
        %v426 = vunpack.c.l.bf16 %v317
        %v427 = vunpack.c.h.bf16 %v317
        %v428 = vunpack.c.l.bf16 %v318
        %v429 = vunpack.c.h.bf16 %v318
        %v430 = vunpack.c.l.bf16 %v319
        %v431 = vunpack.c.h.bf16 %v319
        %v432 = vunpack.c.l.bf16 %v320
        %v433 = vunpack.c.h.bf16 %v320
        %v434 = vunpack.c.l.bf16 %v321
        %v435 = vunpack.c.h.bf16 %v321
        %v436 = vunpack.c.l.bf16 %v322
        %v437 = vunpack.c.h.bf16 %v322
        %v438 = vunpack.c.l.bf16 %v323
        %v439 = vunpack.c.h.bf16 %v323
        %v440 = vunpack.c.l.bf16 %v324
        %v441 = vunpack.c.h.bf16 %v324
        %v442 = vunpack.c.l.bf16 %v325
        %v443 = vunpack.c.h.bf16 %v325
        %v444 = vunpack.c.l.bf16 %v326
        %v445 = vunpack.c.h.bf16 %v326
        %v446 = vunpack.c.l.bf16 %v327
        %v447 = vunpack.c.h.bf16 %v327
        %v448 = vunpack.c.l.bf16 %v328
        %v449 = vunpack.c.h.bf16 %v328
        %v450 = vunpack.c.l.bf16 %v329
        %v451 = vunpack.c.h.bf16 %v329
        %v452 = vunpack.c.l.bf16 %v330
        %v453 = vunpack.c.h.bf16 %v330
        %v454 = vunpack.c.l.bf16 %v331
        %v455 = vunpack.c.h.bf16 %v331
        %v456 = vunpack.c.l.bf16 %v332
        %v457 = vunpack.c.h.bf16 %v332
        %v458 = vunpack.c.l.bf16 %v333
        %v459 = vunpack.c.h.bf16 %v333
        %v460 = vunpack.c.l.bf16 %v334
        %v461 = vunpack.c.h.bf16 %v334
        %v462 = vunpack.c.l.bf16 %v335
        %v463 = vunpack.c.h.bf16 %v335
        %v464 = vmul.f32 %v336, %v336
        %v465 = vmul.f32 %v337, %v337
        %v466 = vmul.f32 %v338, %v338
        %v467 = vmul.f32 %v339, %v339
        %v468 = vmul.f32 %v340, %v340
        %v469 = vmul.f32 %v341, %v341
        %v470 = vmul.f32 %v342, %v342
        %v471 = vmul.f32 %v343, %v343
        %v472 = vmul.f32 %v344, %v344
        %v473 = vmul.f32 %v345, %v345
        %v474 = vmul.f32 %v346, %v346
        %v475 = vmul.f32 %v347, %v347
        %v476 = vmul.f32 %v348, %v348
        %v477 = vmul.f32 %v349, %v349
        %v478 = vmul.f32 %v350, %v350
        %v479 = vmul.f32 %v351, %v351
        %v480 = vmul.f32 %v352, %v352
        %v481 = vmul.f32 %v353, %v353
        %v482 = vmul.f32 %v354, %v354
        %v483 = vmul.f32 %v355, %v355
        %v484 = vmul.f32 %v356, %v356
        %v485 = vmul.f32 %v357, %v357
        %v486 = vmul.f32 %v358, %v358
        %v487 = vmul.f32 %v359, %v359
        %v488 = vmul.f32 %v360, %v360
        %v489 = vmul.f32 %v361, %v361
        %v490 = vmul.f32 %v362, %v362
        %v491 = vmul.f32 %v363, %v363
        %v492 = vmul.f32 %v364, %v364
        %v493 = vmul.f32 %v365, %v365
        %v494 = vmul.f32 %v366, %v366
        %v495 = vmul.f32 %v367, %v367
        %v496 = vmul.f32 %v368, %v368
        %v497 = vmul.f32 %v369, %v369
        %v498 = vmul.f32 %v370, %v370
        %v499 = vmul.f32 %v371, %v371
        %v500 = vmul.f32 %v372, %v372
        %v501 = vmul.f32 %v373, %v373
        %v502 = vmul.f32 %v374, %v374
        %v503 = vmul.f32 %v375, %v375
        %v504 = vmul.f32 %v376, %v376
        %v505 = vmul.f32 %v377, %v377
        %v506 = vmul.f32 %v378, %v378
        %v507 = vmul.f32 %v379, %v379
        %v508 = vmul.f32 %v380, %v380
        %v509 = vmul.f32 %v381, %v381
        %v510 = vmul.f32 %v382, %v382
        %v511 = vmul.f32 %v383, %v383
        %v512 = vmul.f32 %v384, %v384
        %v513 = vmul.f32 %v385, %v385
        %v514 = vmul.f32 %v386, %v386
        %v515 = vmul.f32 %v387, %v387
        %v516 = vmul.f32 %v388, %v388
        %v517 = vmul.f32 %v389, %v389
        %v518 = vmul.f32 %v390, %v390
        %v519 = vmul.f32 %v391, %v391
        %v520 = vmul.f32 %v392, %v392
        %v521 = vmul.f32 %v393, %v393
        %v522 = vmul.f32 %v394, %v394
        %v523 = vmul.f32 %v395, %v395
        %v524 = vmul.f32 %v396, %v396
        %v525 = vmul.f32 %v397, %v397
        %v526 = vmul.f32 %v398, %v398
        %v527 = vmul.f32 %v399, %v399
        %v528 = vmul.f32 %v400, %v400
        %v529 = vmul.f32 %v401, %v401
        %v530 = vmul.f32 %v402, %v402
        %v531 = vmul.f32 %v403, %v403
        %v532 = vmul.f32 %v404, %v404
        %v533 = vmul.f32 %v405, %v405
        %v534 = vmul.f32 %v406, %v406
        %v535 = vmul.f32 %v407, %v407
        %v536 = vmul.f32 %v408, %v408
        %v537 = vmul.f32 %v409, %v409
        %v538 = vmul.f32 %v410, %v410
        %v539 = vmul.f32 %v411, %v411
        %v540 = vmul.f32 %v412, %v412
        %v541 = vmul.f32 %v413, %v413
        %v542 = vmul.f32 %v414, %v414
        %v543 = vmul.f32 %v415, %v415
        %v544 = vmul.f32 %v416, %v416
        %v545 = vmul.f32 %v417, %v417
        %v546 = vmul.f32 %v418, %v418
        %v547 = vmul.f32 %v419, %v419
        %v548 = vmul.f32 %v420, %v420
        %v549 = vmul.f32 %v421, %v421
        %v550 = vmul.f32 %v422, %v422
        %v551 = vmul.f32 %v423, %v423
        %v552 = vmul.f32 %v424, %v424
        %v553 = vmul.f32 %v425, %v425
        %v554 = vmul.f32 %v426, %v426
        %v555 = vmul.f32 %v427, %v427
        %v556 = vmul.f32 %v428, %v428
        %v557 = vmul.f32 %v429, %v429
        %v558 = vmul.f32 %v430, %v430
        %v559 = vmul.f32 %v431, %v431
        %v560 = vmul.f32 %v432, %v432
        %v561 = vmul.f32 %v433, %v433
        %v562 = vmul.f32 %v434, %v434
        %v563 = vmul.f32 %v435, %v435
        %v564 = vmul.f32 %v436, %v436
        %v565 = vmul.f32 %v437, %v437
        %v566 = vmul.f32 %v438, %v438
        %v567 = vmul.f32 %v439, %v439
        %v568 = vmul.f32 %v440, %v440
        %v569 = vmul.f32 %v441, %v441
        %v570 = vmul.f32 %v442, %v442
        %v571 = vmul.f32 %v443, %v443
        %v572 = vmul.f32 %v444, %v444
        %v573 = vmul.f32 %v445, %v445
        %v574 = vmul.f32 %v446, %v446
        %v575 = vmul.f32 %v447, %v447
        %v576 = vmul.f32 %v448, %v448
        %v577 = vmul.f32 %v449, %v449
        %v578 = vmul.f32 %v450, %v450
        %v579 = vmul.f32 %v451, %v451
        %v580 = vmul.f32 %v452, %v452
        %v581 = vmul.f32 %v453, %v453
        %v582 = vmul.f32 %v454, %v454
        %v583 = vmul.f32 %v455, %v455
        %v584 = vmul.f32 %v456, %v456
        %v585 = vmul.f32 %v457, %v457
        %v586 = vmul.f32 %v458, %v458
        %v587 = vmul.f32 %v459, %v459
        %v588 = vmul.f32 %v460, %v460
        %v589 = vmul.f32 %v461, %v461
        %v590 = vmul.f32 %v462, %v462
        %v591 = vmul.f32 %v463, %v463
        %v592 = vadd.f32 %v464, %v465
        %593 = vadd.xlane.f32.xlu0 %v592
        %v594 = vpop.xlane.xlu0 %593
        %v595 = vadd.f32 %v466, %v467
        %596 = vadd.xlane.f32.xlu0 %v595
        %v597 = vpop.xlane.xlu0 %596
        %v598 = vadd.f32 %v468, %v469
        %599 = vadd.xlane.f32.xlu0 %v598
        %v600 = vpop.xlane.xlu0 %599
        %v601 = vadd.f32 %v470, %v471
        %602 = vadd.xlane.f32.xlu0 %v601
        %v603 = vpop.xlane.xlu0 %602
        %v604 = vadd.f32 %v472, %v473
        %605 = vadd.xlane.f32.xlu0 %v604
        %v606 = vpop.xlane.xlu0 %605
        %v607 = vadd.f32 %v474, %v475
        %608 = vadd.xlane.f32.xlu0 %v607
        %v609 = vpop.xlane.xlu0 %608
        %v610 = vadd.f32 %v476, %v477
        %611 = vadd.xlane.f32.xlu0 %v610
        %v612 = vpop.xlane.xlu0 %611
        %v613 = vadd.f32 %v478, %v479
        %614 = vadd.xlane.f32.xlu0 %v613
        %v615 = vpop.xlane.xlu0 %614
        %v616 = vadd.f32 %v480, %v481
        %617 = vadd.xlane.f32.xlu0 %v616
        %v618 = vpop.xlane.xlu0 %617
        %v619 = vadd.f32 %v482, %v483
        %620 = vadd.xlane.f32.xlu0 %v619
        %v621 = vpop.xlane.xlu0 %620
        %v622 = vadd.f32 %v484, %v485
        %623 = vadd.xlane.f32.xlu0 %v622
        %v624 = vpop.xlane.xlu0 %623
        %v625 = vadd.f32 %v486, %v487
        %626 = vadd.xlane.f32.xlu0 %v625
        %v627 = vpop.xlane.xlu0 %626
        %v628 = vadd.f32 %v488, %v489
        %629 = vadd.xlane.f32.xlu0 %v628
        %v630 = vpop.xlane.xlu0 %629
        %v631 = vadd.f32 %v490, %v491
        %632 = vadd.xlane.f32.xlu0 %v631
        %v633 = vpop.xlane.xlu0 %632
        %v634 = vadd.f32 %v492, %v493
        %635 = vadd.xlane.f32.xlu0 %v634
        %v636 = vpop.xlane.xlu0 %635
        %v637 = vadd.f32 %v494, %v495
        %638 = vadd.xlane.f32.xlu0 %v637
        %v639 = vpop.xlane.xlu0 %638
        %v640 = vadd.f32 %v496, %v497
        %641 = vadd.xlane.f32.xlu0 %v640
        %v642 = vpop.xlane.xlu0 %641
        %v643 = vadd.f32 %v498, %v499
        %644 = vadd.xlane.f32.xlu0 %v643
        %v645 = vpop.xlane.xlu0 %644
        %v646 = vadd.f32 %v500, %v501
        %647 = vadd.xlane.f32.xlu0 %v646
        %v648 = vpop.xlane.xlu0 %647
        %v649 = vadd.f32 %v502, %v503
        %650 = vadd.xlane.f32.xlu0 %v649
        %v651 = vpop.xlane.xlu0 %650
        %v652 = vadd.f32 %v504, %v505
        %653 = vadd.xlane.f32.xlu0 %v652
        %v654 = vpop.xlane.xlu0 %653
        %v655 = vadd.f32 %v506, %v507
        %656 = vadd.xlane.f32.xlu0 %v655
        %v657 = vpop.xlane.xlu0 %656
        %v658 = vadd.f32 %v508, %v509
        %659 = vadd.xlane.f32.xlu0 %v658
        %v660 = vpop.xlane.xlu0 %659
        %v661 = vadd.f32 %v510, %v511
        %662 = vadd.xlane.f32.xlu0 %v661
        %v663 = vpop.xlane.xlu0 %662
        %v664 = vadd.f32 %v512, %v513
        %665 = vadd.xlane.f32.xlu0 %v664
        %v666 = vpop.xlane.xlu0 %665
        %v667 = vadd.f32 %v514, %v515
        %668 = vadd.xlane.f32.xlu0 %v667
        %v669 = vpop.xlane.xlu0 %668
        %v670 = vadd.f32 %v516, %v517
        %671 = vadd.xlane.f32.xlu0 %v670
        %v672 = vpop.xlane.xlu0 %671
        %v673 = vadd.f32 %v518, %v519
        %674 = vadd.xlane.f32.xlu0 %v673
        %v675 = vpop.xlane.xlu0 %674
        %v676 = vadd.f32 %v520, %v521
        %677 = vadd.xlane.f32.xlu0 %v676
        %v678 = vpop.xlane.xlu0 %677
        %v679 = vadd.f32 %v522, %v523
        %680 = vadd.xlane.f32.xlu0 %v679
        %v681 = vpop.xlane.xlu0 %680
        %v682 = vadd.f32 %v524, %v525
        %683 = vadd.xlane.f32.xlu0 %v682
        %v684 = vpop.xlane.xlu0 %683
        %v685 = vadd.f32 %v526, %v527
        %686 = vadd.xlane.f32.xlu0 %v685
        %v687 = vpop.xlane.xlu0 %686
        %v688 = vadd.f32 %v528, %v529
        %689 = vadd.xlane.f32.xlu0 %v688
        %v690 = vpop.xlane.xlu0 %689
        %v691 = vadd.f32 %v530, %v531
        %692 = vadd.xlane.f32.xlu0 %v691
        %v693 = vpop.xlane.xlu0 %692
        %v694 = vadd.f32 %v532, %v533
        %695 = vadd.xlane.f32.xlu0 %v694
        %v696 = vpop.xlane.xlu0 %695
        %v697 = vadd.f32 %v534, %v535
        %698 = vadd.xlane.f32.xlu0 %v697
        %v699 = vpop.xlane.xlu0 %698
        %v700 = vadd.f32 %v536, %v537
        %701 = vadd.xlane.f32.xlu0 %v700
        %v702 = vpop.xlane.xlu0 %701
        %v703 = vadd.f32 %v538, %v539
        %704 = vadd.xlane.f32.xlu0 %v703
        %v705 = vpop.xlane.xlu0 %704
        %v706 = vadd.f32 %v540, %v541
        %707 = vadd.xlane.f32.xlu0 %v706
        %v708 = vpop.xlane.xlu0 %707
        %v709 = vadd.f32 %v542, %v543
        %710 = vadd.xlane.f32.xlu0 %v709
        %v711 = vpop.xlane.xlu0 %710
        %v712 = vadd.f32 %v544, %v545
        %713 = vadd.xlane.f32.xlu0 %v712
        %v714 = vpop.xlane.xlu0 %713
        %v715 = vadd.f32 %v546, %v547
        %716 = vadd.xlane.f32.xlu0 %v715
        %v717 = vpop.xlane.xlu0 %716
        %v718 = vadd.f32 %v548, %v549
        %719 = vadd.xlane.f32.xlu0 %v718
        %v720 = vpop.xlane.xlu0 %719
        %v721 = vadd.f32 %v550, %v551
        %722 = vadd.xlane.f32.xlu0 %v721
        %v723 = vpop.xlane.xlu0 %722
        %v724 = vadd.f32 %v552, %v553
        %725 = vadd.xlane.f32.xlu0 %v724
        %v726 = vpop.xlane.xlu0 %725
        %v727 = vadd.f32 %v554, %v555
        %728 = vadd.xlane.f32.xlu0 %v727
        %v729 = vpop.xlane.xlu0 %728
        %v730 = vadd.f32 %v556, %v557
        %731 = vadd.xlane.f32.xlu0 %v730
        %v732 = vpop.xlane.xlu0 %731
        %v733 = vadd.f32 %v558, %v559
        %734 = vadd.xlane.f32.xlu0 %v733
        %v735 = vpop.xlane.xlu0 %734
        %v736 = vadd.f32 %v560, %v561
        %737 = vadd.xlane.f32.xlu0 %v736
        %v738 = vpop.xlane.xlu0 %737
        %v739 = vadd.f32 %v562, %v563
        %740 = vadd.xlane.f32.xlu0 %v739
        %v741 = vpop.xlane.xlu0 %740
        %v742 = vadd.f32 %v564, %v565
        %743 = vadd.xlane.f32.xlu0 %v742
        %v744 = vpop.xlane.xlu0 %743
        %v745 = vadd.f32 %v566, %v567
        %746 = vadd.xlane.f32.xlu0 %v745
        %v747 = vpop.xlane.xlu0 %746
        %v748 = vadd.f32 %v568, %v569
        %749 = vadd.xlane.f32.xlu0 %v748
        %v750 = vpop.xlane.xlu0 %749
        %v751 = vadd.f32 %v570, %v571
        %752 = vadd.xlane.f32.xlu0 %v751
        %v753 = vpop.xlane.xlu0 %752
        %v754 = vadd.f32 %v572, %v573
        %755 = vadd.xlane.f32.xlu0 %v754
        %v756 = vpop.xlane.xlu0 %755
        %v757 = vadd.f32 %v574, %v575
        %758 = vadd.xlane.f32.xlu0 %v757
        %v759 = vpop.xlane.xlu0 %758
        %v760 = vadd.f32 %v576, %v577
        %761 = vadd.xlane.f32.xlu0 %v760
        %v762 = vpop.xlane.xlu0 %761
        %v763 = vadd.f32 %v578, %v579
        %764 = vadd.xlane.f32.xlu0 %v763
        %v765 = vpop.xlane.xlu0 %764
        %v766 = vadd.f32 %v580, %v581
        %767 = vadd.xlane.f32.xlu0 %v766
        %v768 = vpop.xlane.xlu0 %767
        %v769 = vadd.f32 %v582, %v583
        %770 = vadd.xlane.f32.xlu0 %v769
        %v771 = vpop.xlane.xlu0 %770
        %v772 = vadd.f32 %v584, %v585
        %773 = vadd.xlane.f32.xlu0 %v772
        %v774 = vpop.xlane.xlu0 %773
        %v775 = vadd.f32 %v586, %v587
        %776 = vadd.xlane.f32.xlu0 %v775
        %v777 = vpop.xlane.xlu0 %776
        %v778 = vadd.f32 %v588, %v589
        %779 = vadd.xlane.f32.xlu0 %v778
        %v780 = vpop.xlane.xlu0 %779
        %v781 = vadd.f32 %v590, %v591
        %782 = vadd.xlane.f32.xlu0 %v781
        %v783 = vpop.xlane.xlu0 %782
        %v784 = vrcp.pop 256.0
        %v785 = vmul.f32 %v594, %v784
        %v786 = vmul.f32 %v597, %v784
        %v787 = vmul.f32 %v600, %v784
        %v788 = vmul.f32 %v603, %v784
        %v789 = vmul.f32 %v606, %v784
        %v790 = vmul.f32 %v609, %v784
        %v791 = vmul.f32 %v612, %v784
        %v792 = vmul.f32 %v615, %v784
        %v793 = vmul.f32 %v618, %v784
        %v794 = vmul.f32 %v621, %v784
        %v795 = vmul.f32 %v624, %v784
        %v796 = vmul.f32 %v627, %v784
        %v797 = vmul.f32 %v630, %v784
        %v798 = vmul.f32 %v633, %v784
        %v799 = vmul.f32 %v636, %v784
        %v800 = vmul.f32 %v639, %v784
        %v801 = vmul.f32 %v642, %v784
        %v802 = vmul.f32 %v645, %v784
        %v803 = vmul.f32 %v648, %v784
        %v804 = vmul.f32 %v651, %v784
        %v805 = vmul.f32 %v654, %v784
        %v806 = vmul.f32 %v657, %v784
        %v807 = vmul.f32 %v660, %v784
        %v808 = vmul.f32 %v663, %v784
        %v809 = vmul.f32 %v666, %v784
        %v810 = vmul.f32 %v669, %v784
        %v811 = vmul.f32 %v672, %v784
        %v812 = vmul.f32 %v675, %v784
        %v813 = vmul.f32 %v678, %v784
        %v814 = vmul.f32 %v681, %v784
        %v815 = vmul.f32 %v684, %v784
        %v816 = vmul.f32 %v687, %v784
        %v817 = vmul.f32 %v690, %v784
        %v818 = vmul.f32 %v693, %v784
        %v819 = vmul.f32 %v696, %v784
        %v820 = vmul.f32 %v699, %v784
        %v821 = vmul.f32 %v702, %v784
        %v822 = vmul.f32 %v705, %v784
        %v823 = vmul.f32 %v708, %v784
        %v824 = vmul.f32 %v711, %v784
        %v825 = vmul.f32 %v714, %v784
        %v826 = vmul.f32 %v717, %v784
        %v827 = vmul.f32 %v720, %v784
        %v828 = vmul.f32 %v723, %v784
        %v829 = vmul.f32 %v726, %v784
        %v830 = vmul.f32 %v729, %v784
        %v831 = vmul.f32 %v732, %v784
        %v832 = vmul.f32 %v735, %v784
        %v833 = vmul.f32 %v738, %v784
        %v834 = vmul.f32 %v741, %v784
        %v835 = vmul.f32 %v744, %v784
        %v836 = vmul.f32 %v747, %v784
        %v837 = vmul.f32 %v750, %v784
        %v838 = vmul.f32 %v753, %v784
        %v839 = vmul.f32 %v756, %v784
        %v840 = vmul.f32 %v759, %v784
        %v841 = vmul.f32 %v762, %v784
        %v842 = vmul.f32 %v765, %v784
        %v843 = vmul.f32 %v768, %v784
        %v844 = vmul.f32 %v771, %v784
        %v845 = vmul.f32 %v774, %v784
        %v846 = vmul.f32 %v777, %v784
        %v847 = vmul.f32 %v780, %v784
        %v848 = vmul.f32 %v783, %v784
        %v849 = vadd.f32 %v785, 1.1920929e-07
        %v850 = vadd.f32 %v786, 1.1920929e-07
        %v851 = vadd.f32 %v787, 1.1920929e-07
        %v852 = vadd.f32 %v788, 1.1920929e-07
        %v853 = vadd.f32 %v789, 1.1920929e-07
        %v854 = vadd.f32 %v790, 1.1920929e-07
        %v855 = vadd.f32 %v791, 1.1920929e-07
        %v856 = vadd.f32 %v792, 1.1920929e-07
        %v857 = vadd.f32 %v793, 1.1920929e-07
        %v858 = vadd.f32 %v794, 1.1920929e-07
        %v859 = vadd.f32 %v795, 1.1920929e-07
        %v860 = vadd.f32 %v796, 1.1920929e-07
        %v861 = vadd.f32 %v797, 1.1920929e-07
        %v862 = vadd.f32 %v798, 1.1920929e-07
        %v863 = vadd.f32 %v799, 1.1920929e-07
        %v864 = vadd.f32 %v800, 1.1920929e-07
        %v865 = vadd.f32 %v801, 1.1920929e-07
        %v866 = vadd.f32 %v802, 1.1920929e-07
        %v867 = vadd.f32 %v803, 1.1920929e-07
        %v868 = vadd.f32 %v804, 1.1920929e-07
        %v869 = vadd.f32 %v805, 1.1920929e-07
        %v870 = vadd.f32 %v806, 1.1920929e-07
        %v871 = vadd.f32 %v807, 1.1920929e-07
        %v872 = vadd.f32 %v808, 1.1920929e-07
        %v873 = vadd.f32 %v809, 1.1920929e-07
        %v874 = vadd.f32 %v810, 1.1920929e-07
        %v875 = vadd.f32 %v811, 1.1920929e-07
        %v876 = vadd.f32 %v812, 1.1920929e-07
        %v877 = vadd.f32 %v813, 1.1920929e-07
        %v878 = vadd.f32 %v814, 1.1920929e-07
        %v879 = vadd.f32 %v815, 1.1920929e-07
        %v880 = vadd.f32 %v816, 1.1920929e-07
        %v881 = vadd.f32 %v817, 1.1920929e-07
        %v882 = vadd.f32 %v818, 1.1920929e-07
        %v883 = vadd.f32 %v819, 1.1920929e-07
        %v884 = vadd.f32 %v820, 1.1920929e-07
        %v885 = vadd.f32 %v821, 1.1920929e-07
        %v886 = vadd.f32 %v822, 1.1920929e-07
        %v887 = vadd.f32 %v823, 1.1920929e-07
        %v888 = vadd.f32 %v824, 1.1920929e-07
        %v889 = vadd.f32 %v825, 1.1920929e-07
        %v890 = vadd.f32 %v826, 1.1920929e-07
        %v891 = vadd.f32 %v827, 1.1920929e-07
        %v892 = vadd.f32 %v828, 1.1920929e-07
        %v893 = vadd.f32 %v829, 1.1920929e-07
        %v894 = vadd.f32 %v830, 1.1920929e-07
        %v895 = vadd.f32 %v831, 1.1920929e-07
        %v896 = vadd.f32 %v832, 1.1920929e-07
        %v897 = vadd.f32 %v833, 1.1920929e-07
        %v898 = vadd.f32 %v834, 1.1920929e-07
        %v899 = vadd.f32 %v835, 1.1920929e-07
        %v900 = vadd.f32 %v836, 1.1920929e-07
        %v901 = vadd.f32 %v837, 1.1920929e-07
        %v902 = vadd.f32 %v838, 1.1920929e-07
        %v903 = vadd.f32 %v839, 1.1920929e-07
        %v904 = vadd.f32 %v840, 1.1920929e-07
        %v905 = vadd.f32 %v841, 1.1920929e-07
        %v906 = vadd.f32 %v842, 1.1920929e-07
        %v907 = vadd.f32 %v843, 1.1920929e-07
        %v908 = vadd.f32 %v844, 1.1920929e-07
        %v909 = vadd.f32 %v845, 1.1920929e-07
        %v910 = vadd.f32 %v846, 1.1920929e-07
        %v911 = vadd.f32 %v847, 1.1920929e-07
        %v912 = vadd.f32 %v848, 1.1920929e-07
        %v913 = vrsqrt.pop %v849
        %v914 = vrsqrt.pop %v850
        %v915 = vrsqrt.pop %v851
        %v916 = vrsqrt.pop %v852
        %v917 = vrsqrt.pop %v853
        %v918 = vrsqrt.pop %v854
        %v919 = vrsqrt.pop %v855
        %v920 = vrsqrt.pop %v856
        %v921 = vrsqrt.pop %v857
        %v922 = vrsqrt.pop %v858
        %v923 = vrsqrt.pop %v859
        %v924 = vrsqrt.pop %v860
        %v925 = vrsqrt.pop %v861
        %v926 = vrsqrt.pop %v862
        %v927 = vrsqrt.pop %v863
        %v928 = vrsqrt.pop %v864
        %v929 = vrsqrt.pop %v865
        %v930 = vrsqrt.pop %v866
        %v931 = vrsqrt.pop %v867
        %v932 = vrsqrt.pop %v868
        %v933 = vrsqrt.pop %v869
        %v934 = vrsqrt.pop %v870
        %v935 = vrsqrt.pop %v871
        %v936 = vrsqrt.pop %v872
        %v937 = vrsqrt.pop %v873
        %v938 = vrsqrt.pop %v874
        %v939 = vrsqrt.pop %v875
        %v940 = vrsqrt.pop %v876
        %v941 = vrsqrt.pop %v877
        %v942 = vrsqrt.pop %v878
        %v943 = vrsqrt.pop %v879
        %v944 = vrsqrt.pop %v880
        %v945 = vrsqrt.pop %v881
        %v946 = vrsqrt.pop %v882
        %v947 = vrsqrt.pop %v883
        %v948 = vrsqrt.pop %v884
        %v949 = vrsqrt.pop %v885
        %v950 = vrsqrt.pop %v886
        %v951 = vrsqrt.pop %v887
        %v952 = vrsqrt.pop %v888
        %v953 = vrsqrt.pop %v889
        %v954 = vrsqrt.pop %v890
        %v955 = vrsqrt.pop %v891
        %v956 = vrsqrt.pop %v892
        %v957 = vrsqrt.pop %v893
        %v958 = vrsqrt.pop %v894
        %v959 = vrsqrt.pop %v895
        %v960 = vrsqrt.pop %v896
        %v961 = vrsqrt.pop %v897
        %v962 = vrsqrt.pop %v898
        %v963 = vrsqrt.pop %v899
        %v964 = vrsqrt.pop %v900
        %v965 = vrsqrt.pop %v901
        %v966 = vrsqrt.pop %v902
        %v967 = vrsqrt.pop %v903
        %v968 = vrsqrt.pop %v904
        %v969 = vrsqrt.pop %v905
        %v970 = vrsqrt.pop %v906
        %v971 = vrsqrt.pop %v907
        %v972 = vrsqrt.pop %v908
        %v973 = vrsqrt.pop %v909
        %v974 = vrsqrt.pop %v910
        %v975 = vrsqrt.pop %v911
        %v976 = vrsqrt.pop %v912
        %v977 = vmul.f32 %v336, %v913
        %v978 = vmul.f32 %v337, %v913
        %v979 = vmul.f32 %v338, %v914
        %v980 = vmul.f32 %v339, %v914
        %v981 = vmul.f32 %v340, %v915
        %v982 = vmul.f32 %v341, %v915
        %v983 = vmul.f32 %v342, %v916
        %v984 = vmul.f32 %v343, %v916
        %v985 = vmul.f32 %v344, %v917
        %v986 = vmul.f32 %v345, %v917
        %v987 = vmul.f32 %v346, %v918
        %v988 = vmul.f32 %v347, %v918
        %v989 = vmul.f32 %v348, %v919
        %v990 = vmul.f32 %v349, %v919
        %v991 = vmul.f32 %v350, %v920
        %v992 = vmul.f32 %v351, %v920
        %v993 = vmul.f32 %v352, %v921
        %v994 = vmul.f32 %v353, %v921
        %v995 = vmul.f32 %v354, %v922
        %v996 = vmul.f32 %v355, %v922
        %v997 = vmul.f32 %v356, %v923
        %v998 = vmul.f32 %v357, %v923
        %v999 = vmul.f32 %v358, %v924
        %v1000 = vmul.f32 %v359, %v924
        %v1001 = vmul.f32 %v360, %v925
        %v1002 = vmul.f32 %v361, %v925
        %v1003 = vmul.f32 %v362, %v926
        %v1004 = vmul.f32 %v363, %v926
        %v1005 = vmul.f32 %v364, %v927
        %v1006 = vmul.f32 %v365, %v927
        %v1007 = vmul.f32 %v366, %v928
        %v1008 = vmul.f32 %v367, %v928
        %v1009 = vmul.f32 %v368, %v929
        %v1010 = vmul.f32 %v369, %v929
        %v1011 = vmul.f32 %v370, %v930
        %v1012 = vmul.f32 %v371, %v930
        %v1013 = vmul.f32 %v372, %v931
        %v1014 = vmul.f32 %v373, %v931
        %v1015 = vmul.f32 %v374, %v932
        %v1016 = vmul.f32 %v375, %v932
        %v1017 = vmul.f32 %v376, %v933
        %v1018 = vmul.f32 %v377, %v933
        %v1019 = vmul.f32 %v378, %v934
        %v1020 = vmul.f32 %v379, %v934
        %v1021 = vmul.f32 %v380, %v935
        %v1022 = vmul.f32 %v381, %v935
        %v1023 = vmul.f32 %v382, %v936
        %v1024 = vmul.f32 %v383, %v936
        %v1025 = vmul.f32 %v384, %v937
        %v1026 = vmul.f32 %v385, %v937
        %v1027 = vmul.f32 %v386, %v938
        %v1028 = vmul.f32 %v387, %v938
        %v1029 = vmul.f32 %v388, %v939
        %v1030 = vmul.f32 %v389, %v939
        %v1031 = vmul.f32 %v390, %v940
        %v1032 = vmul.f32 %v391, %v940
        %v1033 = vmul.f32 %v392, %v941
        %v1034 = vmul.f32 %v393, %v941
        %v1035 = vmul.f32 %v394, %v942
        %v1036 = vmul.f32 %v395, %v942
        %v1037 = vmul.f32 %v396, %v943
        %v1038 = vmul.f32 %v397, %v943
        %v1039 = vmul.f32 %v398, %v944
        %v1040 = vmul.f32 %v399, %v944
        %v1041 = vmul.f32 %v400, %v945
        %v1042 = vmul.f32 %v401, %v945
        %v1043 = vmul.f32 %v402, %v946
        %v1044 = vmul.f32 %v403, %v946
        %v1045 = vmul.f32 %v404, %v947
        %v1046 = vmul.f32 %v405, %v947
        %v1047 = vmul.f32 %v406, %v948
        %v1048 = vmul.f32 %v407, %v948
        %v1049 = vmul.f32 %v408, %v949
        %v1050 = vmul.f32 %v409, %v949
        %v1051 = vmul.f32 %v410, %v950
        %v1052 = vmul.f32 %v411, %v950
        %v1053 = vmul.f32 %v412, %v951
        %v1054 = vmul.f32 %v413, %v951
        %v1055 = vmul.f32 %v414, %v952
        %v1056 = vmul.f32 %v415, %v952
        %v1057 = vmul.f32 %v416, %v953
        %v1058 = vmul.f32 %v417, %v953
        %v1059 = vmul.f32 %v418, %v954
        %v1060 = vmul.f32 %v419, %v954
        %v1061 = vmul.f32 %v420, %v955
        %v1062 = vmul.f32 %v421, %v955
        %v1063 = vmul.f32 %v422, %v956
        %v1064 = vmul.f32 %v423, %v956
        %v1065 = vmul.f32 %v424, %v957
        %v1066 = vmul.f32 %v425, %v957
        %v1067 = vmul.f32 %v426, %v958
        %v1068 = vmul.f32 %v427, %v958
        %v1069 = vmul.f32 %v428, %v959
        %v1070 = vmul.f32 %v429, %v959
        %v1071 = vmul.f32 %v430, %v960
        %v1072 = vmul.f32 %v431, %v960
        %v1073 = vmul.f32 %v432, %v961
        %v1074 = vmul.f32 %v433, %v961
        %v1075 = vmul.f32 %v434, %v962
        %v1076 = vmul.f32 %v435, %v962
        %v1077 = vmul.f32 %v436, %v963
        %v1078 = vmul.f32 %v437, %v963
        %v1079 = vmul.f32 %v438, %v964
        %v1080 = vmul.f32 %v439, %v964
        %v1081 = vmul.f32 %v440, %v965
        %v1082 = vmul.f32 %v441, %v965
        %v1083 = vmul.f32 %v442, %v966
        %v1084 = vmul.f32 %v443, %v966
        %v1085 = vmul.f32 %v444, %v967
        %v1086 = vmul.f32 %v445, %v967
        %v1087 = vmul.f32 %v446, %v968
        %v1088 = vmul.f32 %v447, %v968
        %v1089 = vmul.f32 %v448, %v969
        %v1090 = vmul.f32 %v449, %v969
        %v1091 = vmul.f32 %v450, %v970
        %v1092 = vmul.f32 %v451, %v970
        %v1093 = vmul.f32 %v452, %v971
        %v1094 = vmul.f32 %v453, %v971
        %v1095 = vmul.f32 %v454, %v972
        %v1096 = vmul.f32 %v455, %v972
        %v1097 = vmul.f32 %v456, %v973
        %v1098 = vmul.f32 %v457, %v973
        %v1099 = vmul.f32 %v458, %v974
        %v1100 = vmul.f32 %v459, %v974
        %v1101 = vmul.f32 %v460, %v975
        %v1102 = vmul.f32 %v461, %v975
        %v1103 = vmul.f32 %v462, %v976
        %v1104 = vmul.f32 %v463, %v976
        %v1105 = vld [vmem:[%s270] sm:$0xf]
        %v1106 = vunpack.c.l.bf16 %v1105
        %v1107 = vadd.f32 %v1106, 1.0
        %v1109 = vlaneseq
        %v1110 = vshrl.u32 %v1109, 7
        %v1111 = vsub.s32 0, %v1110
        %v1112 = vrot.slane %v1107, %v1111
        %v1113 = vlaneseq
        %v1114 = vshrl.u32 %v1113, 7
        %v1115 = vsub.s32 4, %v1114
        %v1116 = vrot.slane %v1107, %v1115
        %v1119 = vlaneseq
        %v1120 = vshrl.u32 %v1119, 7
        %v1121 = vsub.s32 0, %v1120
        %v1122 = vrot.slane %v1112, %v1121
        %v1123 = vlaneseq
        %v1124 = vshrl.u32 %v1123, 7
        %v1125 = vsub.s32 0, %v1124
        %v1126 = vrot.slane %v1116, %v1125
        %v1127 = vmul.f32 %v977, %v1122
        %v1128 = vmul.f32 %v978, %v1126
        %v1129 = vmul.f32 %v979, %v1122
        %v1130 = vmul.f32 %v980, %v1126
        %v1131 = vmul.f32 %v981, %v1122
        %v1132 = vmul.f32 %v982, %v1126
        %v1133 = vmul.f32 %v983, %v1122
        %v1134 = vmul.f32 %v984, %v1126
        %v1135 = vmul.f32 %v985, %v1122
        %v1136 = vmul.f32 %v986, %v1126
        %v1137 = vmul.f32 %v987, %v1122
        %v1138 = vmul.f32 %v988, %v1126
        %v1139 = vmul.f32 %v989, %v1122
        %v1140 = vmul.f32 %v990, %v1126
        %v1141 = vmul.f32 %v991, %v1122
        %v1142 = vmul.f32 %v992, %v1126
        %v1143 = vmul.f32 %v993, %v1122
        %v1144 = vmul.f32 %v994, %v1126
        %v1145 = vmul.f32 %v995, %v1122
        %v1146 = vmul.f32 %v996, %v1126
        %v1147 = vmul.f32 %v997, %v1122
        %v1148 = vmul.f32 %v998, %v1126
        %v1149 = vmul.f32 %v999, %v1122
        %v1150 = vmul.f32 %v1000, %v1126
        %v1151 = vmul.f32 %v1001, %v1122
        %v1152 = vmul.f32 %v1002, %v1126
        %v1153 = vmul.f32 %v1003, %v1122
        %v1154 = vmul.f32 %v1004, %v1126
        %v1155 = vmul.f32 %v1005, %v1122
        %v1156 = vmul.f32 %v1006, %v1126
        %v1157 = vmul.f32 %v1007, %v1122
        %v1158 = vmul.f32 %v1008, %v1126
        %v1159 = vmul.f32 %v1009, %v1122
        %v1160 = vmul.f32 %v1010, %v1126
        %v1161 = vmul.f32 %v1011, %v1122
        %v1162 = vmul.f32 %v1012, %v1126
        %v1163 = vmul.f32 %v1013, %v1122
        %v1164 = vmul.f32 %v1014, %v1126
        %v1165 = vmul.f32 %v1015, %v1122
        %v1166 = vmul.f32 %v1016, %v1126
        %v1167 = vmul.f32 %v1017, %v1122
        %v1168 = vmul.f32 %v1018, %v1126
        %v1169 = vmul.f32 %v1019, %v1122
        %v1170 = vmul.f32 %v1020, %v1126
        %v1171 = vmul.f32 %v1021, %v1122
        %v1172 = vmul.f32 %v1022, %v1126
        %v1173 = vmul.f32 %v1023, %v1122
        %v1174 = vmul.f32 %v1024, %v1126
        %v1175 = vmul.f32 %v1025, %v1122
        %v1176 = vmul.f32 %v1026, %v1126
        %v1177 = vmul.f32 %v1027, %v1122
        %v1178 = vmul.f32 %v1028, %v1126
        %v1179 = vmul.f32 %v1029, %v1122
        %v1180 = vmul.f32 %v1030, %v1126
        %v1181 = vmul.f32 %v1031, %v1122
        %v1182 = vmul.f32 %v1032, %v1126
        %v1183 = vmul.f32 %v1033, %v1122
        %v1184 = vmul.f32 %v1034, %v1126
        %v1185 = vmul.f32 %v1035, %v1122
        %v1186 = vmul.f32 %v1036, %v1126
        %v1187 = vmul.f32 %v1037, %v1122
        %v1188 = vmul.f32 %v1038, %v1126
        %v1189 = vmul.f32 %v1039, %v1122
        %v1190 = vmul.f32 %v1040, %v1126
        %v1191 = vmul.f32 %v1041, %v1122
        %v1192 = vmul.f32 %v1042, %v1126
        %v1193 = vmul.f32 %v1043, %v1122
        %v1194 = vmul.f32 %v1044, %v1126
        %v1195 = vmul.f32 %v1045, %v1122
        %v1196 = vmul.f32 %v1046, %v1126
        %v1197 = vmul.f32 %v1047, %v1122
        %v1198 = vmul.f32 %v1048, %v1126
        %v1199 = vmul.f32 %v1049, %v1122
        %v1200 = vmul.f32 %v1050, %v1126
        %v1201 = vmul.f32 %v1051, %v1122
        %v1202 = vmul.f32 %v1052, %v1126
        %v1203 = vmul.f32 %v1053, %v1122
        %v1204 = vmul.f32 %v1054, %v1126
        %v1205 = vmul.f32 %v1055, %v1122
        %v1206 = vmul.f32 %v1056, %v1126
        %v1207 = vmul.f32 %v1057, %v1122
        %v1208 = vmul.f32 %v1058, %v1126
        %v1209 = vmul.f32 %v1059, %v1122
        %v1210 = vmul.f32 %v1060, %v1126
        %v1211 = vmul.f32 %v1061, %v1122
        %v1212 = vmul.f32 %v1062, %v1126
        %v1213 = vmul.f32 %v1063, %v1122
        %v1214 = vmul.f32 %v1064, %v1126
        %v1215 = vmul.f32 %v1065, %v1122
        %v1216 = vmul.f32 %v1066, %v1126
        %v1217 = vmul.f32 %v1067, %v1122
        %v1218 = vmul.f32 %v1068, %v1126
        %v1219 = vmul.f32 %v1069, %v1122
        %v1220 = vmul.f32 %v1070, %v1126
        %v1221 = vmul.f32 %v1071, %v1122
        %v1222 = vmul.f32 %v1072, %v1126
        %v1223 = vmul.f32 %v1073, %v1122
        %v1224 = vmul.f32 %v1074, %v1126
        %v1225 = vmul.f32 %v1075, %v1122
        %v1226 = vmul.f32 %v1076, %v1126
        %v1227 = vmul.f32 %v1077, %v1122
        %v1228 = vmul.f32 %v1078, %v1126
        %v1229 = vmul.f32 %v1079, %v1122
        %v1230 = vmul.f32 %v1080, %v1126
        %v1231 = vmul.f32 %v1081, %v1122
        %v1232 = vmul.f32 %v1082, %v1126
        %v1233 = vmul.f32 %v1083, %v1122
        %v1234 = vmul.f32 %v1084, %v1126
        %v1235 = vmul.f32 %v1085, %v1122
        %v1236 = vmul.f32 %v1086, %v1126
        %v1237 = vmul.f32 %v1087, %v1122
        %v1238 = vmul.f32 %v1088, %v1126
        %v1239 = vmul.f32 %v1089, %v1122
        %v1240 = vmul.f32 %v1090, %v1126
        %v1241 = vmul.f32 %v1091, %v1122
        %v1242 = vmul.f32 %v1092, %v1126
        %v1243 = vmul.f32 %v1093, %v1122
        %v1244 = vmul.f32 %v1094, %v1126
        %v1245 = vmul.f32 %v1095, %v1122
        %v1246 = vmul.f32 %v1096, %v1126
        %v1247 = vmul.f32 %v1097, %v1122
        %v1248 = vmul.f32 %v1098, %v1126
        %v1249 = vmul.f32 %v1099, %v1122
        %v1250 = vmul.f32 %v1100, %v1126
        %v1251 = vmul.f32 %v1101, %v1122
        %v1252 = vmul.f32 %v1102, %v1126
        %v1253 = vmul.f32 %v1103, %v1122
        %v1254 = vmul.f32 %v1104, %v1126
        %v1256 = vlaneseq
        %v1257 = vshrl.u32 %v1256, 7
        %v1258 = vsub.s32 1, %v1257
        %v1259 = vrot.slane %v1106, %v1258
        %v1260 = vlaneseq
        %v1261 = vshrl.u32 %v1260, 7
        %v1262 = vsub.s32 5, %v1261
        %v1263 = vrot.slane %v1106, %v1262
        %v1266 = vlaneseq
        %v1267 = vshrl.u32 %v1266, 7
        %v1268 = vsub.s32 1, %v1267
        %v1269 = vrot.slane %v1259, %v1268
        %v1270 = vlaneseq
        %v1271 = vshrl.u32 %v1270, 7
        %v1272 = vsub.s32 1, %v1271
        %v1273 = vrot.slane %v1263, %v1272
        %v1274 = vadd.f32 %v1127, %v1269
        %v1275 = vadd.f32 %v1128, %v1273
        %v1276 = vadd.f32 %v1129, %v1269
        %v1277 = vadd.f32 %v1130, %v1273
        %v1278 = vadd.f32 %v1131, %v1269
        %v1279 = vadd.f32 %v1132, %v1273
        %v1280 = vadd.f32 %v1133, %v1269
        %v1281 = vadd.f32 %v1134, %v1273
        %v1282 = vadd.f32 %v1135, %v1269
        %v1283 = vadd.f32 %v1136, %v1273
        %v1284 = vadd.f32 %v1137, %v1269
        %v1285 = vadd.f32 %v1138, %v1273
        %v1286 = vadd.f32 %v1139, %v1269
        %v1287 = vadd.f32 %v1140, %v1273
        %v1288 = vadd.f32 %v1141, %v1269
        %v1289 = vadd.f32 %v1142, %v1273
        %v1290 = vadd.f32 %v1143, %v1269
        %v1291 = vadd.f32 %v1144, %v1273
        %v1292 = vadd.f32 %v1145, %v1269
        %v1293 = vadd.f32 %v1146, %v1273
        %v1294 = vadd.f32 %v1147, %v1269
        %v1295 = vadd.f32 %v1148, %v1273
        %v1296 = vadd.f32 %v1149, %v1269
        %v1297 = vadd.f32 %v1150, %v1273
        %v1298 = vadd.f32 %v1151, %v1269
        %v1299 = vadd.f32 %v1152, %v1273
        %v1300 = vadd.f32 %v1153, %v1269
        %v1301 = vadd.f32 %v1154, %v1273
        %v1302 = vadd.f32 %v1155, %v1269
        %v1303 = vadd.f32 %v1156, %v1273
        %v1304 = vadd.f32 %v1157, %v1269
        %v1305 = vadd.f32 %v1158, %v1273
        %v1306 = vadd.f32 %v1159, %v1269
        %v1307 = vadd.f32 %v1160, %v1273
        %v1308 = vadd.f32 %v1161, %v1269
        %v1309 = vadd.f32 %v1162, %v1273
        %v1310 = vadd.f32 %v1163, %v1269
        %v1311 = vadd.f32 %v1164, %v1273
        %v1312 = vadd.f32 %v1165, %v1269
        %v1313 = vadd.f32 %v1166, %v1273
        %v1314 = vadd.f32 %v1167, %v1269
        %v1315 = vadd.f32 %v1168, %v1273
        %v1316 = vadd.f32 %v1169, %v1269
        %v1317 = vadd.f32 %v1170, %v1273
        %v1318 = vadd.f32 %v1171, %v1269
        %v1319 = vadd.f32 %v1172, %v1273
        %v1320 = vadd.f32 %v1173, %v1269
        %v1321 = vadd.f32 %v1174, %v1273
        %v1322 = vadd.f32 %v1175, %v1269
        %v1323 = vadd.f32 %v1176, %v1273
        %v1324 = vadd.f32 %v1177, %v1269
        %v1325 = vadd.f32 %v1178, %v1273
        %v1326 = vadd.f32 %v1179, %v1269
        %v1327 = vadd.f32 %v1180, %v1273
        %v1328 = vadd.f32 %v1181, %v1269
        %v1329 = vadd.f32 %v1182, %v1273
        %v1330 = vadd.f32 %v1183, %v1269
        %v1331 = vadd.f32 %v1184, %v1273
        %v1332 = vadd.f32 %v1185, %v1269
        %v1333 = vadd.f32 %v1186, %v1273
        %v1334 = vadd.f32 %v1187, %v1269
        %v1335 = vadd.f32 %v1188, %v1273
        %v1336 = vadd.f32 %v1189, %v1269
        %v1337 = vadd.f32 %v1190, %v1273
        %v1338 = vadd.f32 %v1191, %v1269
        %v1339 = vadd.f32 %v1192, %v1273
        %v1340 = vadd.f32 %v1193, %v1269
        %v1341 = vadd.f32 %v1194, %v1273
        %v1342 = vadd.f32 %v1195, %v1269
        %v1343 = vadd.f32 %v1196, %v1273
        %v1344 = vadd.f32 %v1197, %v1269
        %v1345 = vadd.f32 %v1198, %v1273
        %v1346 = vadd.f32 %v1199, %v1269
        %v1347 = vadd.f32 %v1200, %v1273
        %v1348 = vadd.f32 %v1201, %v1269
        %v1349 = vadd.f32 %v1202, %v1273
        %v1350 = vadd.f32 %v1203, %v1269
        %v1351 = vadd.f32 %v1204, %v1273
        %v1352 = vadd.f32 %v1205, %v1269
        %v1353 = vadd.f32 %v1206, %v1273
        %v1354 = vadd.f32 %v1207, %v1269
        %v1355 = vadd.f32 %v1208, %v1273
        %v1356 = vadd.f32 %v1209, %v1269
        %v1357 = vadd.f32 %v1210, %v1273
        %v1358 = vadd.f32 %v1211, %v1269
        %v1359 = vadd.f32 %v1212, %v1273
        %v1360 = vadd.f32 %v1213, %v1269
        %v1361 = vadd.f32 %v1214, %v1273
        %v1362 = vadd.f32 %v1215, %v1269
        %v1363 = vadd.f32 %v1216, %v1273
        %v1364 = vadd.f32 %v1217, %v1269
        %v1365 = vadd.f32 %v1218, %v1273
        %v1366 = vadd.f32 %v1219, %v1269
        %v1367 = vadd.f32 %v1220, %v1273
        %v1368 = vadd.f32 %v1221, %v1269
        %v1369 = vadd.f32 %v1222, %v1273
        %v1370 = vadd.f32 %v1223, %v1269
        %v1371 = vadd.f32 %v1224, %v1273
        %v1372 = vadd.f32 %v1225, %v1269
        %v1373 = vadd.f32 %v1226, %v1273
        %v1374 = vadd.f32 %v1227, %v1269
        %v1375 = vadd.f32 %v1228, %v1273
        %v1376 = vadd.f32 %v1229, %v1269
        %v1377 = vadd.f32 %v1230, %v1273
        %v1378 = vadd.f32 %v1231, %v1269
        %v1379 = vadd.f32 %v1232, %v1273
        %v1380 = vadd.f32 %v1233, %v1269
        %v1381 = vadd.f32 %v1234, %v1273
        %v1382 = vadd.f32 %v1235, %v1269
        %v1383 = vadd.f32 %v1236, %v1273
        %v1384 = vadd.f32 %v1237, %v1269
        %v1385 = vadd.f32 %v1238, %v1273
        %v1386 = vadd.f32 %v1239, %v1269
        %v1387 = vadd.f32 %v1240, %v1273
        %v1388 = vadd.f32 %v1241, %v1269
        %v1389 = vadd.f32 %v1242, %v1273
        %v1390 = vadd.f32 %v1243, %v1269
        %v1391 = vadd.f32 %v1244, %v1273
        %v1392 = vadd.f32 %v1245, %v1269
        %v1393 = vadd.f32 %v1246, %v1273
        %v1394 = vadd.f32 %v1247, %v1269
        %v1395 = vadd.f32 %v1248, %v1273
        %v1396 = vadd.f32 %v1249, %v1269
        %v1397 = vadd.f32 %v1250, %v1273
        %v1398 = vadd.f32 %v1251, %v1269
        %v1399 = vadd.f32 %v1252, %v1273
        %v1400 = vadd.f32 %v1253, %v1269
        %v1401 = vadd.f32 %v1254, %v1273
        %v1402 = vpack.c.bf16 %v1276, %v1274
        %v1403 = vpack.c.bf16 %v1277, %v1275
        %v1404 = vpack.c.bf16 %v1280, %v1278
        %v1405 = vpack.c.bf16 %v1281, %v1279
        %v1406 = vpack.c.bf16 %v1284, %v1282
        %v1407 = vpack.c.bf16 %v1285, %v1283
        %v1408 = vpack.c.bf16 %v1288, %v1286
        %v1409 = vpack.c.bf16 %v1289, %v1287
        %v1410 = vpack.c.bf16 %v1292, %v1290
        %v1411 = vpack.c.bf16 %v1293, %v1291
        %v1412 = vpack.c.bf16 %v1296, %v1294
        %v1413 = vpack.c.bf16 %v1297, %v1295
        %v1414 = vpack.c.bf16 %v1300, %v1298
        %v1415 = vpack.c.bf16 %v1301, %v1299
        %v1416 = vpack.c.bf16 %v1304, %v1302
        %v1417 = vpack.c.bf16 %v1305, %v1303
        %v1418 = vpack.c.bf16 %v1308, %v1306
        %v1419 = vpack.c.bf16 %v1309, %v1307
        %v1420 = vpack.c.bf16 %v1312, %v1310
        %v1421 = vpack.c.bf16 %v1313, %v1311
        %v1422 = vpack.c.bf16 %v1316, %v1314
        %v1423 = vpack.c.bf16 %v1317, %v1315
        %v1424 = vpack.c.bf16 %v1320, %v1318
        %v1425 = vpack.c.bf16 %v1321, %v1319
        %v1426 = vpack.c.bf16 %v1324, %v1322
        %v1427 = vpack.c.bf16 %v1325, %v1323
        %v1428 = vpack.c.bf16 %v1328, %v1326
        %v1429 = vpack.c.bf16 %v1329, %v1327
        %v1430 = vpack.c.bf16 %v1332, %v1330
        %v1431 = vpack.c.bf16 %v1333, %v1331
        %v1432 = vpack.c.bf16 %v1336, %v1334
        %v1433 = vpack.c.bf16 %v1337, %v1335
        %v1434 = vpack.c.bf16 %v1340, %v1338
        %v1435 = vpack.c.bf16 %v1341, %v1339
        %v1436 = vpack.c.bf16 %v1344, %v1342
        %v1437 = vpack.c.bf16 %v1345, %v1343
        %v1438 = vpack.c.bf16 %v1348, %v1346
        %v1439 = vpack.c.bf16 %v1349, %v1347
        %v1440 = vpack.c.bf16 %v1352, %v1350
        %v1441 = vpack.c.bf16 %v1353, %v1351
        %v1442 = vpack.c.bf16 %v1356, %v1354
        %v1443 = vpack.c.bf16 %v1357, %v1355
        %v1444 = vpack.c.bf16 %v1360, %v1358
        %v1445 = vpack.c.bf16 %v1361, %v1359
        %v1446 = vpack.c.bf16 %v1364, %v1362
        %v1447 = vpack.c.bf16 %v1365, %v1363
        %v1448 = vpack.c.bf16 %v1368, %v1366
        %v1449 = vpack.c.bf16 %v1369, %v1367
        %v1450 = vpack.c.bf16 %v1372, %v1370
        %v1451 = vpack.c.bf16 %v1373, %v1371
        %v1452 = vpack.c.bf16 %v1376, %v1374
        %v1453 = vpack.c.bf16 %v1377, %v1375
        %v1454 = vpack.c.bf16 %v1380, %v1378
        %v1455 = vpack.c.bf16 %v1381, %v1379
        %v1456 = vpack.c.bf16 %v1384, %v1382
        %v1457 = vpack.c.bf16 %v1385, %v1383
        %v1458 = vpack.c.bf16 %v1388, %v1386
        %v1459 = vpack.c.bf16 %v1389, %v1387
        %v1460 = vpack.c.bf16 %v1392, %v1390
        %v1461 = vpack.c.bf16 %v1393, %v1391
        %v1462 = vpack.c.bf16 %v1396, %v1394
        %v1463 = vpack.c.bf16 %v1397, %v1395
        %v1464 = vpack.c.bf16 %v1400, %v1398
        %v1465 = vpack.c.bf16 %v1401, %v1399
        %v1466 = vld [vmem:[#allocation5] sm:$0xff]
        %v1467 = vld [vmem:[#allocation5 + $0x8] sm:$0xff]
        %v1468 = vld [vmem:[#allocation5 + $0x10] sm:$0xff]
        %v1469 = vld [vmem:[#allocation5 + $0x18] sm:$0xff]
        %v1470 = vld [vmem:[#allocation5 + $0x20] sm:$0xff]
        %v1471 = vld [vmem:[#allocation5 + $0x28] sm:$0xff]
        %v1472 = vld [vmem:[#allocation5 + $0x30] sm:$0xff]
        %v1473 = vld [vmem:[#allocation5 + $0x38] sm:$0xff]
        %v1474 = vld [vmem:[#allocation5 + $0x40] sm:$0xff]
        %v1475 = vld [vmem:[#allocation5 + $0x48] sm:$0xff]
        %v1476 = vld [vmem:[#allocation5 + $0x50] sm:$0xff]
        %v1477 = vld [vmem:[#allocation5 + $0x58] sm:$0xff]
        %v1478 = vld [vmem:[#allocation5 + $0x60] sm:$0xff]
        %v1479 = vld [vmem:[#allocation5 + $0x68] sm:$0xff]
        %v1480 = vld [vmem:[#allocation5 + $0x70] sm:$0xff]
        %v1481 = vld [vmem:[#allocation5 + $0x78] sm:$0xff]
        %v1482 = vld [vmem:[#allocation5 + $0x80] sm:$0xff]
        %v1483 = vld [vmem:[#allocation5 + $0x88] sm:$0xff]
        %v1484 = vld [vmem:[#allocation5 + $0x90] sm:$0xff]
        %v1485 = vld [vmem:[#allocation5 + $0x98] sm:$0xff]
        %v1486 = vld [vmem:[#allocation5 + $0xa0] sm:$0xff]
        %v1487 = vld [vmem:[#allocation5 + $0xa8] sm:$0xff]
        %v1488 = vld [vmem:[#allocation5 + $0xb0] sm:$0xff]
        %v1489 = vld [vmem:[#allocation5 + $0xb8] sm:$0xff]
        %v1490 = vld [vmem:[#allocation5 + $0xc0] sm:$0xff]
        %v1491 = vld [vmem:[#allocation5 + $0xc8] sm:$0xff]
        %v1492 = vld [vmem:[#allocation5 + $0xd0] sm:$0xff]
        %v1493 = vld [vmem:[#allocation5 + $0xd8] sm:$0xff]
        %v1494 = vld [vmem:[#allocation5 + $0xe0] sm:$0xff]
        %v1495 = vld [vmem:[#allocation5 + $0xe8] sm:$0xff]
        %v1496 = vld [vmem:[#allocation5 + $0xf0] sm:$0xff]
        %v1497 = vld [vmem:[#allocation5 + $0xf8] sm:$0xff]
        %v1498 = vld [vmem:[%s3] sm:$0x3]
        %v1499 = vunpack.c.l.bf16 %v1498
        %v1501 = vlaneseq
        %v1502 = vshrl.u32 %v1501, 7
        %v1503 = vsub.s32 0, %v1502
        %v1504 = vrot.slane %v1499, %v1503
        %v1505 = vlaneseq
        %v1506 = vshrl.u32 %v1505, 7
        %v1507 = vsub.s32 2, %v1506
        %v1508 = vrot.slane %v1499, %v1507
        %v1511 = vlaneseq
        %v1512 = vshrl.u32 %v1511, 7
        %v1513 = vsub.s32 0, %v1512
        %v1514 = vrot.slane %v1504, %v1513
        %v1515 = vlaneseq
        %v1516 = vshrl.u32 %v1515, 7
        %v1517 = vsub.s32 0, %v1516
        %v1518 = vrot.slane %v1508, %v1517
        %v1551 = vunpack.c.l.b16 %v1466
        %v1552 = vunpack.c.h.b16 %v1466
        %v1553 = vunpack.c.l.b16 %v1467
        %v1554 = vunpack.c.h.b16 %v1467
        %v1555 = vunpack.c.l.b16 %v1468
        %v1556 = vunpack.c.h.b16 %v1468
        %v1557 = vunpack.c.l.b16 %v1469
        %v1558 = vunpack.c.h.b16 %v1469
        %v1559 = vunpack.c.l.b16 %v1470
        %v1560 = vunpack.c.h.b16 %v1470
        %v1561 = vunpack.c.l.b16 %v1471
        %v1562 = vunpack.c.h.b16 %v1471
        %v1563 = vunpack.c.l.b16 %v1472
        %v1564 = vunpack.c.h.b16 %v1472
        %v1565 = vunpack.c.l.b16 %v1473
        %v1566 = vunpack.c.h.b16 %v1473
        %v1567 = vunpack.c.l.b16 %v1474
        %v1568 = vunpack.c.h.b16 %v1474
        %v1569 = vunpack.c.l.b16 %v1475
        %v1570 = vunpack.c.h.b16 %v1475
        %v1571 = vunpack.c.l.b16 %v1476
        %v1572 = vunpack.c.h.b16 %v1476
        %v1573 = vunpack.c.l.b16 %v1477
        %v1574 = vunpack.c.h.b16 %v1477
        %v1575 = vunpack.c.l.b16 %v1478
        %v1576 = vunpack.c.h.b16 %v1478
        %v1577 = vunpack.c.l.b16 %v1479
        %v1578 = vunpack.c.h.b16 %v1479
        %v1579 = vunpack.c.l.b16 %v1480
        %v1580 = vunpack.c.h.b16 %v1480
        %v1581 = vunpack.c.l.b16 %v1481
        %v1582 = vunpack.c.h.b16 %v1481
        %v1583 = vunpack.c.l.b16 %v1482
        %v1584 = vunpack.c.h.b16 %v1482
        %v1585 = vunpack.c.l.b16 %v1483
        %v1586 = vunpack.c.h.b16 %v1483
        %v1587 = vunpack.c.l.b16 %v1484
        %v1588 = vunpack.c.h.b16 %v1484
        %v1589 = vunpack.c.l.b16 %v1485
        %v1590 = vunpack.c.h.b16 %v1485
        %v1591 = vunpack.c.l.b16 %v1486
        %v1592 = vunpack.c.h.b16 %v1486
        %v1593 = vunpack.c.l.b16 %v1487
        %v1594 = vunpack.c.h.b16 %v1487
        %v1595 = vunpack.c.l.b16 %v1488
        %v1596 = vunpack.c.h.b16 %v1488
        %v1597 = vunpack.c.l.b16 %v1489
        %v1598 = vunpack.c.h.b16 %v1489
        %v1599 = vunpack.c.l.b16 %v1490
        %v1600 = vunpack.c.h.b16 %v1490
        %v1601 = vunpack.c.l.b16 %v1491
        %v1602 = vunpack.c.h.b16 %v1491
        %v1603 = vunpack.c.l.b16 %v1492
        %v1604 = vunpack.c.h.b16 %v1492
        %v1605 = vunpack.c.l.b16 %v1493
        %v1606 = vunpack.c.h.b16 %v1493
        %v1607 = vunpack.c.l.b16 %v1494
        %v1608 = vunpack.c.h.b16 %v1494
        %v1609 = vunpack.c.l.b16 %v1495
        %v1610 = vunpack.c.h.b16 %v1495
        %v1611 = vunpack.c.l.b16 %v1496
        %v1612 = vunpack.c.h.b16 %v1496
        %v1613 = vunpack.c.l.b16 %v1497
        %v1614 = vunpack.c.h.b16 %v1497
        %v1615 = vpack.c.b16 %v1553, %v1551
        %v1616 = vpack.c.b16 %v1554, %v1552
        %v1617 = vpack.c.b16 %v1557, %v1555
        %v1618 = vpack.c.b16 %v1558, %v1556
        %v1619 = vpack.c.b16 %v1561, %v1559
        %v1620 = vpack.c.b16 %v1562, %v1560
        %v1621 = vpack.c.b16 %v1565, %v1563
        %v1622 = vpack.c.b16 %v1566, %v1564
        %v1623 = vpack.c.b16 %v1569, %v1567
        %v1624 = vpack.c.b16 %v1570, %v1568
        %v1625 = vpack.c.b16 %v1573, %v1571
        %v1626 = vpack.c.b16 %v1574, %v1572
        %v1627 = vpack.c.b16 %v1577, %v1575
        %v1628 = vpack.c.b16 %v1578, %v1576
        %v1629 = vpack.c.b16 %v1581, %v1579
        %v1630 = vpack.c.b16 %v1582, %v1580
        %v1631 = vpack.c.b16 %v1585, %v1583
        %v1632 = vpack.c.b16 %v1586, %v1584
        %v1633 = vpack.c.b16 %v1589, %v1587
        %v1634 = vpack.c.b16 %v1590, %v1588
        %v1635 = vpack.c.b16 %v1593, %v1591
        %v1636 = vpack.c.b16 %v1594, %v1592
        %v1637 = vpack.c.b16 %v1597, %v1595
        %v1638 = vpack.c.b16 %v1598, %v1596
        %v1639 = vpack.c.b16 %v1601, %v1599
        %v1640 = vpack.c.b16 %v1602, %v1600
        %v1641 = vpack.c.b16 %v1605, %v1603
        %v1642 = vpack.c.b16 %v1606, %v1604
        %v1643 = vpack.c.b16 %v1609, %v1607
        %v1644 = vpack.c.b16 %v1610, %v1608
        %v1645 = vpack.c.b16 %v1613, %v1611
        %v1646 = vpack.c.b16 %v1614, %v1612
        %1679 = vmatprep.subr.bf16.mxu0 %v1630
        %1680 = vmatpush1.bf16.msra.mxu0 %v1629
        %1681 = vmatprep.subr.bf16.mxu0 %v1628
        %1682 = vmatpush1.bf16.msra.mxu0 %v1627
        %1683 = vmatprep.subr.bf16.mxu0 %v1626
        %1684 = vmatpush1.bf16.msra.mxu0 %v1625
        %1685 = vmatprep.subr.bf16.mxu0 %v1624
        %1686 = vmatpush1.bf16.msra.mxu0 %v1623
        %1687 = vmatprep.subr.bf16.mxu0 %v1622
        %1688 = vmatpush1.bf16.msra.mxu0 %v1621
        %1689 = vmatprep.subr.bf16.mxu0 %v1620
        %1690 = vmatpush1.bf16.msra.mxu0 %v1619
        %1691 = vmatprep.subr.bf16.mxu0 %v1618
        %1692 = vmatpush1.bf16.msra.mxu0 %v1617
        %1693 = vmatprep.subr.bf16.mxu0 %v1616
        %1694 = vmatpush1.bf16.msra.mxu0 %v1615
        %1695 = vmatprep.subr.bf16.mxu0 %v1646
        %1696 = vmatpush2.bf16.msra.mxu0 %v1645
        %1697 = vmatprep.subr.bf16.mxu0 %v1644
        %1698 = vmatpush2.bf16.msra.mxu0 %v1643
        %1699 = vmatprep.subr.bf16.mxu0 %v1642
        %1700 = vmatpush2.bf16.msra.mxu0 %v1641
        %1701 = vmatprep.subr.bf16.mxu0 %v1640
        %1702 = vmatpush2.bf16.msra.mxu0 %v1639
        %1703 = vmatprep.subr.bf16.mxu0 %v1638
        %1704 = vmatpush2.bf16.msra.mxu0 %v1637
        %1705 = vmatprep.subr.bf16.mxu0 %v1636
        %1706 = vmatpush2.bf16.msra.mxu0 %v1635
        %1707 = vmatprep.subr.bf16.mxu0 %v1634
        %1708 = vmatpush2.bf16.msra.mxu0 %v1633
        %1709 = vmatprep.subr.bf16.mxu0 %v1632
        %1710 = vmatpush2.bf16.msra.mxu0 %v1631
        %1711 = vmatprep.mubr.bf16.mxu0 %v1403
        %1712 = vmatmul.mubr.bf16.gmra.mxu0 %v1402
        %v1713 = vpop.f32.mrf.mxu0
        %v1714 = vadd.f32 %v1514, %v1713
        %v1715 = vpop.f32.mrf.mxu0
        %v1716 = vadd.f32 %v1518, %v1715
        %v1717 = vpop.f32.mrf.mxu0
        %v1718 = vadd.f32 %v1514, %v1717
        %v1719 = vpop.f32.mrf.mxu0
        %v1720 = vadd.f32 %v1518, %v1719
        %1721 = vmatprep.mubr.bf16.mxu0 %v1405
        %1722 = vmatmul.mubr.bf16.gmra.mxu0 %v1404
        %v1723 = vpop.f32.mrf.mxu0
        %v1724 = vadd.f32 %v1514, %v1723
        %v1725 = vpop.f32.mrf.mxu0
        %v1726 = vadd.f32 %v1518, %v1725
        %v1727 = vpop.f32.mrf.mxu0
        %v1728 = vadd.f32 %v1514, %v1727
        %v1729 = vpop.f32.mrf.mxu0
        %v1730 = vadd.f32 %v1518, %v1729
        %1731 = vmatprep.mubr.bf16.mxu0 %v1407
        %1732 = vmatmul.mubr.bf16.gmra.mxu0 %v1406
        %v1733 = vpop.f32.mrf.mxu0
        %v1734 = vadd.f32 %v1514, %v1733
        %v1735 = vpop.f32.mrf.mxu0
        %v1736 = vadd.f32 %v1518, %v1735
        %v1737 = vpop.f32.mrf.mxu0
        %v1738 = vadd.f32 %v1514, %v1737
        %v1739 = vpop.f32.mrf.mxu0
        %v1740 = vadd.f32 %v1518, %v1739
        %1741 = vmatprep.mubr.bf16.mxu0 %v1409
        %1742 = vmatmul.mubr.bf16.gmra.mxu0 %v1408
        %v1743 = vpop.f32.mrf.mxu0
        %v1744 = vadd.f32 %v1514, %v1743
        %v1745 = vpop.f32.mrf.mxu0
        %v1746 = vadd.f32 %v1518, %v1745
        %v1747 = vpop.f32.mrf.mxu0
        %v1748 = vadd.f32 %v1514, %v1747
        %v1749 = vpop.f32.mrf.mxu0
        %v1750 = vadd.f32 %v1518, %v1749
        %1751 = vmatprep.mubr.bf16.mxu0 %v1411
        %1752 = vmatmul.mubr.bf16.gmra.mxu0 %v1410
        %v1753 = vpop.f32.mrf.mxu0
        %v1754 = vadd.f32 %v1514, %v1753
        %v1755 = vpop.f32.mrf.mxu0
        %v1756 = vadd.f32 %v1518, %v1755
        %v1757 = vpop.f32.mrf.mxu0
        %v1758 = vadd.f32 %v1514, %v1757
        %v1759 = vpop.f32.mrf.mxu0
        %v1760 = vadd.f32 %v1518, %v1759
        %1761 = vmatprep.mubr.bf16.mxu0 %v1413
        %1762 = vmatmul.mubr.bf16.gmra.mxu0 %v1412
        %v1763 = vpop.f32.mrf.mxu0
        %v1764 = vadd.f32 %v1514, %v1763
        %v1765 = vpop.f32.mrf.mxu0
        %v1766 = vadd.f32 %v1518, %v1765
        %v1767 = vpop.f32.mrf.mxu0
        %v1768 = vadd.f32 %v1514, %v1767
        %v1769 = vpop.f32.mrf.mxu0
        %v1770 = vadd.f32 %v1518, %v1769
        %1771 = vmatprep.mubr.bf16.mxu0 %v1415
        %1772 = vmatmul.mubr.bf16.gmra.mxu0 %v1414
        %v1773 = vpop.f32.mrf.mxu0
        %v1774 = vadd.f32 %v1514, %v1773
        %v1775 = vpop.f32.mrf.mxu0
        %v1776 = vadd.f32 %v1518, %v1775
        %v1777 = vpop.f32.mrf.mxu0
        %v1778 = vadd.f32 %v1514, %v1777
        %v1779 = vpop.f32.mrf.mxu0
        %v1780 = vadd.f32 %v1518, %v1779
        %1781 = vmatprep.mubr.bf16.mxu0 %v1417
        %1782 = vmatmul.mubr.bf16.gmra.mxu0 %v1416
        %v1783 = vpop.f32.mrf.mxu0
        %v1784 = vadd.f32 %v1514, %v1783
        %v1785 = vpop.f32.mrf.mxu0
        %v1786 = vadd.f32 %v1518, %v1785
        %v1787 = vpop.f32.mrf.mxu0
        %v1788 = vadd.f32 %v1514, %v1787
        %v1789 = vpop.f32.mrf.mxu0
        %v1790 = vadd.f32 %v1518, %v1789
        %1791 = vmatprep.mubr.bf16.mxu0 %v1419
        %1792 = vmatmul.mubr.bf16.gmra.mxu0 %v1418
        %v1793 = vpop.f32.mrf.mxu0
        %v1794 = vadd.f32 %v1514, %v1793
        %v1795 = vpop.f32.mrf.mxu0
        %v1796 = vadd.f32 %v1518, %v1795
        %v1797 = vpop.f32.mrf.mxu0
        %v1798 = vadd.f32 %v1514, %v1797
        %v1799 = vpop.f32.mrf.mxu0
        %v1800 = vadd.f32 %v1518, %v1799
        %1801 = vmatprep.mubr.bf16.mxu0 %v1421
        %1802 = vmatmul.mubr.bf16.gmra.mxu0 %v1420
        %v1803 = vpop.f32.mrf.mxu0
        %v1804 = vadd.f32 %v1514, %v1803
        %v1805 = vpop.f32.mrf.mxu0
        %v1806 = vadd.f32 %v1518, %v1805
        %v1807 = vpop.f32.mrf.mxu0
        %v1808 = vadd.f32 %v1514, %v1807
        %v1809 = vpop.f32.mrf.mxu0
        %v1810 = vadd.f32 %v1518, %v1809
        %1811 = vmatprep.mubr.bf16.mxu0 %v1423
        %1812 = vmatmul.mubr.bf16.gmra.mxu0 %v1422
        %v1813 = vpop.f32.mrf.mxu0
        %v1814 = vadd.f32 %v1514, %v1813
        %v1815 = vpop.f32.mrf.mxu0
        %v1816 = vadd.f32 %v1518, %v1815
        %v1817 = vpop.f32.mrf.mxu0
        %v1818 = vadd.f32 %v1514, %v1817
        %v1819 = vpop.f32.mrf.mxu0
        %v1820 = vadd.f32 %v1518, %v1819
        %1821 = vmatprep.mubr.bf16.mxu0 %v1425
        %1822 = vmatmul.mubr.bf16.gmra.mxu0 %v1424
        %v1823 = vpop.f32.mrf.mxu0
        %v1824 = vadd.f32 %v1514, %v1823
        %v1825 = vpop.f32.mrf.mxu0
        %v1826 = vadd.f32 %v1518, %v1825
        %v1827 = vpop.f32.mrf.mxu0
        %v1828 = vadd.f32 %v1514, %v1827
        %v1829 = vpop.f32.mrf.mxu0
        %v1830 = vadd.f32 %v1518, %v1829
        %1831 = vmatprep.mubr.bf16.mxu0 %v1427
        %1832 = vmatmul.mubr.bf16.gmra.mxu0 %v1426
        %v1833 = vpop.f32.mrf.mxu0
        %v1834 = vadd.f32 %v1514, %v1833
        %v1835 = vpop.f32.mrf.mxu0
        %v1836 = vadd.f32 %v1518, %v1835
        %v1837 = vpop.f32.mrf.mxu0
        %v1838 = vadd.f32 %v1514, %v1837
        %v1839 = vpop.f32.mrf.mxu0
        %v1840 = vadd.f32 %v1518, %v1839
        %1841 = vmatprep.mubr.bf16.mxu0 %v1429
        %1842 = vmatmul.mubr.bf16.gmra.mxu0 %v1428
        %v1843 = vpop.f32.mrf.mxu0
        %v1844 = vadd.f32 %v1514, %v1843
        %v1845 = vpop.f32.mrf.mxu0
        %v1846 = vadd.f32 %v1518, %v1845
        %v1847 = vpop.f32.mrf.mxu0
        %v1848 = vadd.f32 %v1514, %v1847
        %v1849 = vpop.f32.mrf.mxu0
        %v1850 = vadd.f32 %v1518, %v1849
        %1851 = vmatprep.mubr.bf16.mxu0 %v1431
        %1852 = vmatmul.mubr.bf16.gmra.mxu0 %v1430
        %v1853 = vpop.f32.mrf.mxu0
        %v1854 = vadd.f32 %v1514, %v1853
        %v1855 = vpop.f32.mrf.mxu0
        %v1856 = vadd.f32 %v1518, %v1855
        %v1857 = vpop.f32.mrf.mxu0
        %v1858 = vadd.f32 %v1514, %v1857
        %v1859 = vpop.f32.mrf.mxu0
        %v1860 = vadd.f32 %v1518, %v1859
        %1861 = vmatprep.mubr.bf16.mxu0 %v1433
        %1862 = vmatmul.mubr.bf16.gmra.mxu0 %v1432
        %v1863 = vpop.f32.mrf.mxu0
        %v1864 = vadd.f32 %v1514, %v1863
        %v1865 = vpop.f32.mrf.mxu0
        %v1866 = vadd.f32 %v1518, %v1865
        %v1867 = vpop.f32.mrf.mxu0
        %v1868 = vadd.f32 %v1514, %v1867
        %v1869 = vpop.f32.mrf.mxu0
        %v1870 = vadd.f32 %v1518, %v1869
        %1871 = vmatprep.mubr.bf16.mxu0 %v1435
        %1872 = vmatmul.mubr.bf16.gmra.mxu0 %v1434
        %v1873 = vpop.f32.mrf.mxu0
        %v1874 = vadd.f32 %v1514, %v1873
        %v1875 = vpop.f32.mrf.mxu0
        %v1876 = vadd.f32 %v1518, %v1875
        %v1877 = vpop.f32.mrf.mxu0
        %v1878 = vadd.f32 %v1514, %v1877
        %v1879 = vpop.f32.mrf.mxu0
        %v1880 = vadd.f32 %v1518, %v1879
        %1881 = vmatprep.mubr.bf16.mxu0 %v1437
        %1882 = vmatmul.mubr.bf16.gmra.mxu0 %v1436
        %v1883 = vpop.f32.mrf.mxu0
        %v1884 = vadd.f32 %v1514, %v1883
        %v1885 = vpop.f32.mrf.mxu0
        %v1886 = vadd.f32 %v1518, %v1885
        %v1887 = vpop.f32.mrf.mxu0
        %v1888 = vadd.f32 %v1514, %v1887
        %v1889 = vpop.f32.mrf.mxu0
        %v1890 = vadd.f32 %v1518, %v1889
        %1891 = vmatprep.mubr.bf16.mxu0 %v1439
        %1892 = vmatmul.mubr.bf16.gmra.mxu0 %v1438
        %v1893 = vpop.f32.mrf.mxu0
        %v1894 = vadd.f32 %v1514, %v1893
        %v1895 = vpop.f32.mrf.mxu0
        %v1896 = vadd.f32 %v1518, %v1895
        %v1897 = vpop.f32.mrf.mxu0
        %v1898 = vadd.f32 %v1514, %v1897
        %v1899 = vpop.f32.mrf.mxu0
        %v1900 = vadd.f32 %v1518, %v1899
        %1901 = vmatprep.mubr.bf16.mxu0 %v1441
        %1902 = vmatmul.mubr.bf16.gmra.mxu0 %v1440
        %v1903 = vpop.f32.mrf.mxu0
        %v1904 = vadd.f32 %v1514, %v1903
        %v1905 = vpop.f32.mrf.mxu0
        %v1906 = vadd.f32 %v1518, %v1905
        %v1907 = vpop.f32.mrf.mxu0
        %v1908 = vadd.f32 %v1514, %v1907
        %v1909 = vpop.f32.mrf.mxu0
        %v1910 = vadd.f32 %v1518, %v1909
        %1911 = vmatprep.mubr.bf16.mxu0 %v1443
        %1912 = vmatmul.mubr.bf16.gmra.mxu0 %v1442
        %v1913 = vpop.f32.mrf.mxu0
        %v1914 = vadd.f32 %v1514, %v1913
        %v1915 = vpop.f32.mrf.mxu0
        %v1916 = vadd.f32 %v1518, %v1915
        %v1917 = vpop.f32.mrf.mxu0
        %v1918 = vadd.f32 %v1514, %v1917
        %v1919 = vpop.f32.mrf.mxu0
        %v1920 = vadd.f32 %v1518, %v1919
        %1921 = vmatprep.mubr.bf16.mxu0 %v1445
        %1922 = vmatmul.mubr.bf16.gmra.mxu0 %v1444
        %v1923 = vpop.f32.mrf.mxu0
        %v1924 = vadd.f32 %v1514, %v1923
        %v1925 = vpop.f32.mrf.mxu0
        %v1926 = vadd.f32 %v1518, %v1925
        %v1927 = vpop.f32.mrf.mxu0
        %v1928 = vadd.f32 %v1514, %v1927
        %v1929 = vpop.f32.mrf.mxu0
        %v1930 = vadd.f32 %v1518, %v1929
        %1931 = vmatprep.mubr.bf16.mxu0 %v1447
        %1932 = vmatmul.mubr.bf16.gmra.mxu0 %v1446
        %v1933 = vpop.f32.mrf.mxu0
        %v1934 = vadd.f32 %v1514, %v1933
        %v1935 = vpop.f32.mrf.mxu0
        %v1936 = vadd.f32 %v1518, %v1935
        %v1937 = vpop.f32.mrf.mxu0
        %v1938 = vadd.f32 %v1514, %v1937
        %v1939 = vpop.f32.mrf.mxu0
        %v1940 = vadd.f32 %v1518, %v1939
        %1941 = vmatprep.mubr.bf16.mxu0 %v1449
        %1942 = vmatmul.mubr.bf16.gmra.mxu0 %v1448
        %v1943 = vpop.f32.mrf.mxu0
        %v1944 = vadd.f32 %v1514, %v1943
        %v1945 = vpop.f32.mrf.mxu0
        %v1946 = vadd.f32 %v1518, %v1945
        %v1947 = vpop.f32.mrf.mxu0
        %v1948 = vadd.f32 %v1514, %v1947
        %v1949 = vpop.f32.mrf.mxu0
        %v1950 = vadd.f32 %v1518, %v1949
        %1951 = vmatprep.mubr.bf16.mxu0 %v1451
        %1952 = vmatmul.mubr.bf16.gmra.mxu0 %v1450
        %v1953 = vpop.f32.mrf.mxu0
        %v1954 = vadd.f32 %v1514, %v1953
        %v1955 = vpop.f32.mrf.mxu0
        %v1956 = vadd.f32 %v1518, %v1955
        %v1957 = vpop.f32.mrf.mxu0
        %v1958 = vadd.f32 %v1514, %v1957
        %v1959 = vpop.f32.mrf.mxu0
        %v1960 = vadd.f32 %v1518, %v1959
        %1961 = vmatprep.mubr.bf16.mxu0 %v1453
        %1962 = vmatmul.mubr.bf16.gmra.mxu0 %v1452
        %v1963 = vpop.f32.mrf.mxu0
        %v1964 = vadd.f32 %v1514, %v1963
        %v1965 = vpop.f32.mrf.mxu0
        %v1966 = vadd.f32 %v1518, %v1965
        %v1967 = vpop.f32.mrf.mxu0
        %v1968 = vadd.f32 %v1514, %v1967
        %v1969 = vpop.f32.mrf.mxu0
        %v1970 = vadd.f32 %v1518, %v1969
        %1971 = vmatprep.mubr.bf16.mxu0 %v1455
        %1972 = vmatmul.mubr.bf16.gmra.mxu0 %v1454
        %v1973 = vpop.f32.mrf.mxu0
        %v1974 = vadd.f32 %v1514, %v1973
        %v1975 = vpop.f32.mrf.mxu0
        %v1976 = vadd.f32 %v1518, %v1975
        %v1977 = vpop.f32.mrf.mxu0
        %v1978 = vadd.f32 %v1514, %v1977
        %v1979 = vpop.f32.mrf.mxu0
        %v1980 = vadd.f32 %v1518, %v1979
        %1981 = vmatprep.mubr.bf16.mxu0 %v1457
        %1982 = vmatmul.mubr.bf16.gmra.mxu0 %v1456
        %v1983 = vpop.f32.mrf.mxu0
        %v1984 = vadd.f32 %v1514, %v1983
        %v1985 = vpop.f32.mrf.mxu0
        %v1986 = vadd.f32 %v1518, %v1985
        %v1987 = vpop.f32.mrf.mxu0
        %v1988 = vadd.f32 %v1514, %v1987
        %v1989 = vpop.f32.mrf.mxu0
        %v1990 = vadd.f32 %v1518, %v1989
        %1991 = vmatprep.mubr.bf16.mxu0 %v1459
        %1992 = vmatmul.mubr.bf16.gmra.mxu0 %v1458
        %v1993 = vpop.f32.mrf.mxu0
        %v1994 = vadd.f32 %v1514, %v1993
        %v1995 = vpop.f32.mrf.mxu0
        %v1996 = vadd.f32 %v1518, %v1995
        %v1997 = vpop.f32.mrf.mxu0
        %v1998 = vadd.f32 %v1514, %v1997
        %v1999 = vpop.f32.mrf.mxu0
        %v2000 = vadd.f32 %v1518, %v1999
        %2001 = vmatprep.mubr.bf16.mxu0 %v1461
        %2002 = vmatmul.mubr.bf16.gmra.mxu0 %v1460
        %v2003 = vpop.f32.mrf.mxu0
        %v2004 = vadd.f32 %v1514, %v2003
        %v2005 = vpop.f32.mrf.mxu0
        %v2006 = vadd.f32 %v1518, %v2005
        %v2007 = vpop.f32.mrf.mxu0
        %v2008 = vadd.f32 %v1514, %v2007
        %v2009 = vpop.f32.mrf.mxu0
        %v2010 = vadd.f32 %v1518, %v2009
        %2011 = vmatprep.mubr.bf16.mxu0 %v1463
        %2012 = vmatmul.mubr.bf16.gmra.mxu0 %v1462
        %v2013 = vpop.f32.mrf.mxu0
        %v2014 = vadd.f32 %v1514, %v2013
        %v2015 = vpop.f32.mrf.mxu0
        %v2016 = vadd.f32 %v1518, %v2015
        %v2017 = vpop.f32.mrf.mxu0
        %v2018 = vadd.f32 %v1514, %v2017
        %v2019 = vpop.f32.mrf.mxu0
        %v2020 = vadd.f32 %v1518, %v2019
        %2021 = vmatprep.mubr.bf16.mxu0 %v1465
        %2022 = vmatmul.mubr.bf16.gmra.mxu0 %v1464
        %v2023 = vpop.f32.mrf.mxu0
        %v2024 = vadd.f32 %v1514, %v2023
        %v2025 = vpop.f32.mrf.mxu0
        %v2026 = vadd.f32 %v1518, %v2025
        %v2027 = vpop.f32.mrf.mxu0
        %v2028 = vadd.f32 %v1514, %v2027
        %v2029 = vpop.f32.mrf.mxu0
        %v2030 = vadd.f32 %v1518, %v2029
        %2031 = vdwg.mxu0
        %v2032 = vlaneseq
        %v2033 = vshrl.u32 %v2032, 7
        %v2034 = vsub.s32 2, %v2033
        %v2035 = vrot.slane %v1106, %v2034
        %v2036 = vlaneseq
        %v2037 = vshrl.u32 %v2036, 7
        %v2038 = vsub.s32 6, %v2037
        %v2039 = vrot.slane %v1106, %v2038
        %v2042 = vlaneseq
        %v2043 = vshrl.u32 %v2042, 7
        %v2044 = vsub.s32 2, %v2043
        %v2045 = vrot.slane %v2035, %v2044
        %v2046 = vlaneseq
        %v2047 = vshrl.u32 %v2046, 7
        %v2048 = vsub.s32 2, %v2047
        %v2049 = vrot.slane %v2039, %v2048
        %v2050 = vmul.f32 %v1714, %v2045
        %v2051 = vmul.f32 %v1716, %v2049
        %v2052 = vmul.f32 %v1718, %v2045
        %v2053 = vmul.f32 %v1720, %v2049
        %v2054 = vmul.f32 %v1724, %v2045
        %v2055 = vmul.f32 %v1726, %v2049
        %v2056 = vmul.f32 %v1728, %v2045
        %v2057 = vmul.f32 %v1730, %v2049
        %v2058 = vmul.f32 %v1734, %v2045
        %v2059 = vmul.f32 %v1736, %v2049
        %v2060 = vmul.f32 %v1738, %v2045
        %v2061 = vmul.f32 %v1740, %v2049
        %v2062 = vmul.f32 %v1744, %v2045
        %v2063 = vmul.f32 %v1746, %v2049
        %v2064 = vmul.f32 %v1748, %v2045
        %v2065 = vmul.f32 %v1750, %v2049
        %v2066 = vmul.f32 %v1754, %v2045
        %v2067 = vmul.f32 %v1756, %v2049
        %v2068 = vmul.f32 %v1758, %v2045
        %v2069 = vmul.f32 %v1760, %v2049
        %v2070 = vmul.f32 %v1764, %v2045
        %v2071 = vmul.f32 %v1766, %v2049
        %v2072 = vmul.f32 %v1768, %v2045
        %v2073 = vmul.f32 %v1770, %v2049
        %v2074 = vmul.f32 %v1774, %v2045
        %v2075 = vmul.f32 %v1776, %v2049
        %v2076 = vmul.f32 %v1778, %v2045
        %v2077 = vmul.f32 %v1780, %v2049
        %v2078 = vmul.f32 %v1784, %v2045
        %v2079 = vmul.f32 %v1786, %v2049
        %v2080 = vmul.f32 %v1788, %v2045
        %v2081 = vmul.f32 %v1790, %v2049
        %v2082 = vmul.f32 %v1794, %v2045
        %v2083 = vmul.f32 %v1796, %v2049
        %v2084 = vmul.f32 %v1798, %v2045
        %v2085 = vmul.f32 %v1800, %v2049
        %v2086 = vmul.f32 %v1804, %v2045
        %v2087 = vmul.f32 %v1806, %v2049
        %v2088 = vmul.f32 %v1808, %v2045
        %v2089 = vmul.f32 %v1810, %v2049
        %v2090 = vmul.f32 %v1814, %v2045
        %v2091 = vmul.f32 %v1816, %v2049
        %v2092 = vmul.f32 %v1818, %v2045
        %v2093 = vmul.f32 %v1820, %v2049
        %v2094 = vmul.f32 %v1824, %v2045
        %v2095 = vmul.f32 %v1826, %v2049
        %v2096 = vmul.f32 %v1828, %v2045
        %v2097 = vmul.f32 %v1830, %v2049
        %v2098 = vmul.f32 %v1834, %v2045
        %v2099 = vmul.f32 %v1836, %v2049
        %v2100 = vmul.f32 %v1838, %v2045
        %v2101 = vmul.f32 %v1840, %v2049
        %v2102 = vmul.f32 %v1844, %v2045
        %v2103 = vmul.f32 %v1846, %v2049
        %v2104 = vmul.f32 %v1848, %v2045
        %v2105 = vmul.f32 %v1850, %v2049
        %v2106 = vmul.f32 %v1854, %v2045
        %v2107 = vmul.f32 %v1856, %v2049
        %v2108 = vmul.f32 %v1858, %v2045
        %v2109 = vmul.f32 %v1860, %v2049
        %v2110 = vmul.f32 %v1864, %v2045
        %v2111 = vmul.f32 %v1866, %v2049
        %v2112 = vmul.f32 %v1868, %v2045
        %v2113 = vmul.f32 %v1870, %v2049
        %v2114 = vmul.f32 %v1874, %v2045
        %v2115 = vmul.f32 %v1876, %v2049
        %v2116 = vmul.f32 %v1878, %v2045
        %v2117 = vmul.f32 %v1880, %v2049
        %v2118 = vmul.f32 %v1884, %v2045
        %v2119 = vmul.f32 %v1886, %v2049
        %v2120 = vmul.f32 %v1888, %v2045
        %v2121 = vmul.f32 %v1890, %v2049
        %v2122 = vmul.f32 %v1894, %v2045
        %v2123 = vmul.f32 %v1896, %v2049
        %v2124 = vmul.f32 %v1898, %v2045
        %v2125 = vmul.f32 %v1900, %v2049
        %v2126 = vmul.f32 %v1904, %v2045
        %v2127 = vmul.f32 %v1906, %v2049
        %v2128 = vmul.f32 %v1908, %v2045
        %v2129 = vmul.f32 %v1910, %v2049
        %v2130 = vmul.f32 %v1914, %v2045
        %v2131 = vmul.f32 %v1916, %v2049
        %v2132 = vmul.f32 %v1918, %v2045
        %v2133 = vmul.f32 %v1920, %v2049
        %v2134 = vmul.f32 %v1924, %v2045
        %v2135 = vmul.f32 %v1926, %v2049
        %v2136 = vmul.f32 %v1928, %v2045
        %v2137 = vmul.f32 %v1930, %v2049
        %v2138 = vmul.f32 %v1934, %v2045
        %v2139 = vmul.f32 %v1936, %v2049
        %v2140 = vmul.f32 %v1938, %v2045
        %v2141 = vmul.f32 %v1940, %v2049
        %v2142 = vmul.f32 %v1944, %v2045
        %v2143 = vmul.f32 %v1946, %v2049
        %v2144 = vmul.f32 %v1948, %v2045
        %v2145 = vmul.f32 %v1950, %v2049
        %v2146 = vmul.f32 %v1954, %v2045
        %v2147 = vmul.f32 %v1956, %v2049
        %v2148 = vmul.f32 %v1958, %v2045
        %v2149 = vmul.f32 %v1960, %v2049
        %v2150 = vmul.f32 %v1964, %v2045
        %v2151 = vmul.f32 %v1966, %v2049
        %v2152 = vmul.f32 %v1968, %v2045
        %v2153 = vmul.f32 %v1970, %v2049
        %v2154 = vmul.f32 %v1974, %v2045
        %v2155 = vmul.f32 %v1976, %v2049
        %v2156 = vmul.f32 %v1978, %v2045
        %v2157 = vmul.f32 %v1980, %v2049
        %v2158 = vmul.f32 %v1984, %v2045
        %v2159 = vmul.f32 %v1986, %v2049
        %v2160 = vmul.f32 %v1988, %v2045
        %v2161 = vmul.f32 %v1990, %v2049
        %v2162 = vmul.f32 %v1994, %v2045
        %v2163 = vmul.f32 %v1996, %v2049
        %v2164 = vmul.f32 %v1998, %v2045
        %v2165 = vmul.f32 %v2000, %v2049
        %v2166 = vmul.f32 %v2004, %v2045
        %v2167 = vmul.f32 %v2006, %v2049
        %v2168 = vmul.f32 %v2008, %v2045
        %v2169 = vmul.f32 %v2010, %v2049
        %v2170 = vmul.f32 %v2014, %v2045
        %v2171 = vmul.f32 %v2016, %v2049
        %v2172 = vmul.f32 %v2018, %v2045
        %v2173 = vmul.f32 %v2020, %v2049
        %v2174 = vmul.f32 %v2024, %v2045
        %v2175 = vmul.f32 %v2026, %v2049
        %v2176 = vmul.f32 %v2028, %v2045
        %v2177 = vmul.f32 %v2030, %v2049
        %v2178 = vadd.f32 %v336, %v2050
        %v2179 = vadd.f32 %v337, %v2051
        %v2180 = vadd.f32 %v338, %v2052
        %v2181 = vadd.f32 %v339, %v2053
        %v2182 = vadd.f32 %v340, %v2054
        %v2183 = vadd.f32 %v341, %v2055
        %v2184 = vadd.f32 %v342, %v2056
        %v2185 = vadd.f32 %v343, %v2057
        %v2186 = vadd.f32 %v344, %v2058
        %v2187 = vadd.f32 %v345, %v2059
        %v2188 = vadd.f32 %v346, %v2060
        %v2189 = vadd.f32 %v347, %v2061
        %v2190 = vadd.f32 %v348, %v2062
        %v2191 = vadd.f32 %v349, %v2063
        %v2192 = vadd.f32 %v350, %v2064
        %v2193 = vadd.f32 %v351, %v2065
        %v2194 = vadd.f32 %v352, %v2066
        %v2195 = vadd.f32 %v353, %v2067
        %v2196 = vadd.f32 %v354, %v2068
        %v2197 = vadd.f32 %v355, %v2069
        %v2198 = vadd.f32 %v356, %v2070
        %v2199 = vadd.f32 %v357, %v2071
        %v2200 = vadd.f32 %v358, %v2072
        %v2201 = vadd.f32 %v359, %v2073
        %v2202 = vadd.f32 %v360, %v2074
        %v2203 = vadd.f32 %v361, %v2075
        %v2204 = vadd.f32 %v362, %v2076
        %v2205 = vadd.f32 %v363, %v2077
        %v2206 = vadd.f32 %v364, %v2078
        %v2207 = vadd.f32 %v365, %v2079
        %v2208 = vadd.f32 %v366, %v2080
        %v2209 = vadd.f32 %v367, %v2081
        %v2210 = vadd.f32 %v368, %v2082
        %v2211 = vadd.f32 %v369, %v2083
        %v2212 = vadd.f32 %v370, %v2084
        %v2213 = vadd.f32 %v371, %v2085
        %v2214 = vadd.f32 %v372, %v2086
        %v2215 = vadd.f32 %v373, %v2087
        %v2216 = vadd.f32 %v374, %v2088
        %v2217 = vadd.f32 %v375, %v2089
        %v2218 = vadd.f32 %v376, %v2090
        %v2219 = vadd.f32 %v377, %v2091
        %v2220 = vadd.f32 %v378, %v2092
        %v2221 = vadd.f32 %v379, %v2093
        %v2222 = vadd.f32 %v380, %v2094
        %v2223 = vadd.f32 %v381, %v2095
        %v2224 = vadd.f32 %v382, %v2096
        %v2225 = vadd.f32 %v383, %v2097
        %v2226 = vadd.f32 %v384, %v2098
        %v2227 = vadd.f32 %v385, %v2099
        %v2228 = vadd.f32 %v386, %v2100
        %v2229 = vadd.f32 %v387, %v2101
        %v2230 = vadd.f32 %v388, %v2102
        %v2231 = vadd.f32 %v389, %v2103
        %v2232 = vadd.f32 %v390, %v2104
        %v2233 = vadd.f32 %v391, %v2105
        %v2234 = vadd.f32 %v392, %v2106
        %v2235 = vadd.f32 %v393, %v2107
        %v2236 = vadd.f32 %v394, %v2108
        %v2237 = vadd.f32 %v395, %v2109
        %v2238 = vadd.f32 %v396, %v2110
        %v2239 = vadd.f32 %v397, %v2111
        %v2240 = vadd.f32 %v398, %v2112
        %v2241 = vadd.f32 %v399, %v2113
        %v2242 = vadd.f32 %v400, %v2114
        %v2243 = vadd.f32 %v401, %v2115
        %v2244 = vadd.f32 %v402, %v2116
        %v2245 = vadd.f32 %v403, %v2117
        %v2246 = vadd.f32 %v404, %v2118
        %v2247 = vadd.f32 %v405, %v2119
        %v2248 = vadd.f32 %v406, %v2120
        %v2249 = vadd.f32 %v407, %v2121
        %v2250 = vadd.f32 %v408, %v2122
        %v2251 = vadd.f32 %v409, %v2123
        %v2252 = vadd.f32 %v410, %v2124
        %v2253 = vadd.f32 %v411, %v2125
        %v2254 = vadd.f32 %v412, %v2126
        %v2255 = vadd.f32 %v413, %v2127
        %v2256 = vadd.f32 %v414, %v2128
        %v2257 = vadd.f32 %v415, %v2129
        %v2258 = vadd.f32 %v416, %v2130
        %v2259 = vadd.f32 %v417, %v2131
        %v2260 = vadd.f32 %v418, %v2132
        %v2261 = vadd.f32 %v419, %v2133
        %v2262 = vadd.f32 %v420, %v2134
        %v2263 = vadd.f32 %v421, %v2135
        %v2264 = vadd.f32 %v422, %v2136
        %v2265 = vadd.f32 %v423, %v2137
        %v2266 = vadd.f32 %v424, %v2138
        %v2267 = vadd.f32 %v425, %v2139
        %v2268 = vadd.f32 %v426, %v2140
        %v2269 = vadd.f32 %v427, %v2141
        %v2270 = vadd.f32 %v428, %v2142
        %v2271 = vadd.f32 %v429, %v2143
        %v2272 = vadd.f32 %v430, %v2144
        %v2273 = vadd.f32 %v431, %v2145
        %v2274 = vadd.f32 %v432, %v2146
        %v2275 = vadd.f32 %v433, %v2147
        %v2276 = vadd.f32 %v434, %v2148
        %v2277 = vadd.f32 %v435, %v2149
        %v2278 = vadd.f32 %v436, %v2150
        %v2279 = vadd.f32 %v437, %v2151
        %v2280 = vadd.f32 %v438, %v2152
        %v2281 = vadd.f32 %v439, %v2153
        %v2282 = vadd.f32 %v440, %v2154
        %v2283 = vadd.f32 %v441, %v2155
        %v2284 = vadd.f32 %v442, %v2156
        %v2285 = vadd.f32 %v443, %v2157
        %v2286 = vadd.f32 %v444, %v2158
        %v2287 = vadd.f32 %v445, %v2159
        %v2288 = vadd.f32 %v446, %v2160
        %v2289 = vadd.f32 %v447, %v2161
        %v2290 = vadd.f32 %v448, %v2162
        %v2291 = vadd.f32 %v449, %v2163
        %v2292 = vadd.f32 %v450, %v2164
        %v2293 = vadd.f32 %v451, %v2165
        %v2294 = vadd.f32 %v452, %v2166
        %v2295 = vadd.f32 %v453, %v2167
        %v2296 = vadd.f32 %v454, %v2168
        %v2297 = vadd.f32 %v455, %v2169
        %v2298 = vadd.f32 %v456, %v2170
        %v2299 = vadd.f32 %v457, %v2171
        %v2300 = vadd.f32 %v458, %v2172
        %v2301 = vadd.f32 %v459, %v2173
        %v2302 = vadd.f32 %v460, %v2174
        %v2303 = vadd.f32 %v461, %v2175
        %v2304 = vadd.f32 %v462, %v2176
        %v2305 = vadd.f32 %v463, %v2177
        %v2306 = vpack.c.bf16 %v2180, %v2178
        %v2307 = vpack.c.bf16 %v2181, %v2179
        %v2308 = vpack.c.bf16 %v2184, %v2182
        %v2309 = vpack.c.bf16 %v2185, %v2183
        %v2310 = vpack.c.bf16 %v2188, %v2186
        %v2311 = vpack.c.bf16 %v2189, %v2187
        %v2312 = vpack.c.bf16 %v2192, %v2190
        %v2313 = vpack.c.bf16 %v2193, %v2191
        %v2314 = vpack.c.bf16 %v2196, %v2194
        %v2315 = vpack.c.bf16 %v2197, %v2195
        %v2316 = vpack.c.bf16 %v2200, %v2198
        %v2317 = vpack.c.bf16 %v2201, %v2199
        %v2318 = vpack.c.bf16 %v2204, %v2202
        %v2319 = vpack.c.bf16 %v2205, %v2203
        %v2320 = vpack.c.bf16 %v2208, %v2206
        %v2321 = vpack.c.bf16 %v2209, %v2207
        %v2322 = vpack.c.bf16 %v2212, %v2210
        %v2323 = vpack.c.bf16 %v2213, %v2211
        %v2324 = vpack.c.bf16 %v2216, %v2214
        %v2325 = vpack.c.bf16 %v2217, %v2215
        %v2326 = vpack.c.bf16 %v2220, %v2218
        %v2327 = vpack.c.bf16 %v2221, %v2219
        %v2328 = vpack.c.bf16 %v2224, %v2222
        %v2329 = vpack.c.bf16 %v2225, %v2223
        %v2330 = vpack.c.bf16 %v2228, %v2226
        %v2331 = vpack.c.bf16 %v2229, %v2227
        %v2332 = vpack.c.bf16 %v2232, %v2230
        %v2333 = vpack.c.bf16 %v2233, %v2231
        %v2334 = vpack.c.bf16 %v2236, %v2234
        %v2335 = vpack.c.bf16 %v2237, %v2235
        %v2336 = vpack.c.bf16 %v2240, %v2238
        %v2337 = vpack.c.bf16 %v2241, %v2239
        %v2338 = vpack.c.bf16 %v2244, %v2242
        %v2339 = vpack.c.bf16 %v2245, %v2243
        %v2340 = vpack.c.bf16 %v2248, %v2246
        %v2341 = vpack.c.bf16 %v2249, %v2247
        %v2342 = vpack.c.bf16 %v2252, %v2250
        %v2343 = vpack.c.bf16 %v2253, %v2251
        %v2344 = vpack.c.bf16 %v2256, %v2254
        %v2345 = vpack.c.bf16 %v2257, %v2255
        %v2346 = vpack.c.bf16 %v2260, %v2258
        %v2347 = vpack.c.bf16 %v2261, %v2259
        %v2348 = vpack.c.bf16 %v2264, %v2262
        %v2349 = vpack.c.bf16 %v2265, %v2263
        %v2350 = vpack.c.bf16 %v2268, %v2266
        %v2351 = vpack.c.bf16 %v2269, %v2267
        %v2352 = vpack.c.bf16 %v2272, %v2270
        %v2353 = vpack.c.bf16 %v2273, %v2271
        %v2354 = vpack.c.bf16 %v2276, %v2274
        %v2355 = vpack.c.bf16 %v2277, %v2275
        %v2356 = vpack.c.bf16 %v2280, %v2278
        %v2357 = vpack.c.bf16 %v2281, %v2279
        %v2358 = vpack.c.bf16 %v2284, %v2282
        %v2359 = vpack.c.bf16 %v2285, %v2283
        %v2360 = vpack.c.bf16 %v2288, %v2286
        %v2361 = vpack.c.bf16 %v2289, %v2287
        %v2362 = vpack.c.bf16 %v2292, %v2290
        %v2363 = vpack.c.bf16 %v2293, %v2291
        %v2364 = vpack.c.bf16 %v2296, %v2294
        %v2365 = vpack.c.bf16 %v2297, %v2295
        %v2366 = vpack.c.bf16 %v2300, %v2298
        %v2367 = vpack.c.bf16 %v2301, %v2299
        %v2368 = vpack.c.bf16 %v2304, %v2302
        %v2369 = vpack.c.bf16 %v2305, %v2303
        %v2434 = vunpack.c.l.b16 %v2306
        %v2435 = vunpack.c.l.b16 %v2307
        %v2436 = vunpack.c.h.b16 %v2306
        %v2437 = vunpack.c.h.b16 %v2307
        %v2438 = vunpack.c.l.b16 %v2308
        %v2439 = vunpack.c.l.b16 %v2309
        %v2440 = vunpack.c.h.b16 %v2308
        %v2441 = vunpack.c.h.b16 %v2309
        %v2442 = vunpack.c.l.b16 %v2310
        %v2443 = vunpack.c.l.b16 %v2311
        %v2444 = vunpack.c.h.b16 %v2310
        %v2445 = vunpack.c.h.b16 %v2311
        %v2446 = vunpack.c.l.b16 %v2312
        %v2447 = vunpack.c.l.b16 %v2313
        %v2448 = vunpack.c.h.b16 %v2312
        %v2449 = vunpack.c.h.b16 %v2313
        %v2450 = vunpack.c.l.b16 %v2314
        %v2451 = vunpack.c.l.b16 %v2315
        %v2452 = vunpack.c.h.b16 %v2314
        %v2453 = vunpack.c.h.b16 %v2315
        %v2454 = vunpack.c.l.b16 %v2316
        %v2455 = vunpack.c.l.b16 %v2317
        %v2456 = vunpack.c.h.b16 %v2316
        %v2457 = vunpack.c.h.b16 %v2317
        %v2458 = vunpack.c.l.b16 %v2318
        %v2459 = vunpack.c.l.b16 %v2319
        %v2460 = vunpack.c.h.b16 %v2318
        %v2461 = vunpack.c.h.b16 %v2319
        %v2462 = vunpack.c.l.b16 %v2320
        %v2463 = vunpack.c.l.b16 %v2321
        %v2464 = vunpack.c.h.b16 %v2320
        %v2465 = vunpack.c.h.b16 %v2321
        %v2466 = vunpack.c.l.b16 %v2322
        %v2467 = vunpack.c.l.b16 %v2323
        %v2468 = vunpack.c.h.b16 %v2322
        %v2469 = vunpack.c.h.b16 %v2323
        %v2470 = vunpack.c.l.b16 %v2324
        %v2471 = vunpack.c.l.b16 %v2325
        %v2472 = vunpack.c.h.b16 %v2324
        %v2473 = vunpack.c.h.b16 %v2325
        %v2474 = vunpack.c.l.b16 %v2326
        %v2475 = vunpack.c.l.b16 %v2327
        %v2476 = vunpack.c.h.b16 %v2326
        %v2477 = vunpack.c.h.b16 %v2327
        %v2478 = vunpack.c.l.b16 %v2328
        %v2479 = vunpack.c.l.b16 %v2329
        %v2480 = vunpack.c.h.b16 %v2328
        %v2481 = vunpack.c.h.b16 %v2329
        %v2482 = vunpack.c.l.b16 %v2330
        %v2483 = vunpack.c.l.b16 %v2331
        %v2484 = vunpack.c.h.b16 %v2330
        %v2485 = vunpack.c.h.b16 %v2331
        %v2486 = vunpack.c.l.b16 %v2332
        %v2487 = vunpack.c.l.b16 %v2333
        %v2488 = vunpack.c.h.b16 %v2332
        %v2489 = vunpack.c.h.b16 %v2333
        %v2490 = vunpack.c.l.b16 %v2334
        %v2491 = vunpack.c.l.b16 %v2335
        %v2492 = vunpack.c.h.b16 %v2334
        %v2493 = vunpack.c.h.b16 %v2335
        %v2494 = vunpack.c.l.b16 %v2336
        %v2495 = vunpack.c.l.b16 %v2337
        %v2496 = vunpack.c.h.b16 %v2336
        %v2497 = vunpack.c.h.b16 %v2337
        %v2498 = vunpack.c.l.b16 %v2338
        %v2499 = vunpack.c.l.b16 %v2339
        %v2500 = vunpack.c.h.b16 %v2338
        %v2501 = vunpack.c.h.b16 %v2339
        %v2502 = vunpack.c.l.b16 %v2340
        %v2503 = vunpack.c.l.b16 %v2341
        %v2504 = vunpack.c.h.b16 %v2340
        %v2505 = vunpack.c.h.b16 %v2341
        %v2506 = vunpack.c.l.b16 %v2342
        %v2507 = vunpack.c.l.b16 %v2343
        %v2508 = vunpack.c.h.b16 %v2342
        %v2509 = vunpack.c.h.b16 %v2343
        %v2510 = vunpack.c.l.b16 %v2344
        %v2511 = vunpack.c.l.b16 %v2345
        %v2512 = vunpack.c.h.b16 %v2344
        %v2513 = vunpack.c.h.b16 %v2345
        %v2514 = vunpack.c.l.b16 %v2346
        %v2515 = vunpack.c.l.b16 %v2347
        %v2516 = vunpack.c.h.b16 %v2346
        %v2517 = vunpack.c.h.b16 %v2347
        %v2518 = vunpack.c.l.b16 %v2348
        %v2519 = vunpack.c.l.b16 %v2349
        %v2520 = vunpack.c.h.b16 %v2348
        %v2521 = vunpack.c.h.b16 %v2349
        %v2522 = vunpack.c.l.b16 %v2350
        %v2523 = vunpack.c.l.b16 %v2351
        %v2524 = vunpack.c.h.b16 %v2350
        %v2525 = vunpack.c.h.b16 %v2351
        %v2526 = vunpack.c.l.b16 %v2352
        %v2527 = vunpack.c.l.b16 %v2353
        %v2528 = vunpack.c.h.b16 %v2352
        %v2529 = vunpack.c.h.b16 %v2353
        %v2530 = vunpack.c.l.b16 %v2354
        %v2531 = vunpack.c.l.b16 %v2355
        %v2532 = vunpack.c.h.b16 %v2354
        %v2533 = vunpack.c.h.b16 %v2355
        %v2534 = vunpack.c.l.b16 %v2356
        %v2535 = vunpack.c.l.b16 %v2357
        %v2536 = vunpack.c.h.b16 %v2356
        %v2537 = vunpack.c.h.b16 %v2357
        %v2538 = vunpack.c.l.b16 %v2358
        %v2539 = vunpack.c.l.b16 %v2359
        %v2540 = vunpack.c.h.b16 %v2358
        %v2541 = vunpack.c.h.b16 %v2359
        %v2542 = vunpack.c.l.b16 %v2360
        %v2543 = vunpack.c.l.b16 %v2361
        %v2544 = vunpack.c.h.b16 %v2360
        %v2545 = vunpack.c.h.b16 %v2361
        %v2546 = vunpack.c.l.b16 %v2362
        %v2547 = vunpack.c.l.b16 %v2363
        %v2548 = vunpack.c.h.b16 %v2362
        %v2549 = vunpack.c.h.b16 %v2363
        %v2550 = vunpack.c.l.b16 %v2364
        %v2551 = vunpack.c.l.b16 %v2365
        %v2552 = vunpack.c.h.b16 %v2364
        %v2553 = vunpack.c.h.b16 %v2365
        %v2554 = vunpack.c.l.b16 %v2366
        %v2555 = vunpack.c.l.b16 %v2367
        %v2556 = vunpack.c.h.b16 %v2366
        %v2557 = vunpack.c.h.b16 %v2367
        %v2558 = vunpack.c.l.b16 %v2368
        %v2559 = vunpack.c.l.b16 %v2369
        %v2560 = vunpack.c.h.b16 %v2368
        %v2561 = vunpack.c.h.b16 %v2369
        %v2562 = vpack.c.b16 %v2435, %v2434
        %v2563 = vpack.c.b16 %v2437, %v2436
        %v2564 = vpack.c.b16 %v2439, %v2438
        %v2565 = vpack.c.b16 %v2441, %v2440
        %v2566 = vpack.c.b16 %v2443, %v2442
        %v2567 = vpack.c.b16 %v2445, %v2444
        %v2568 = vpack.c.b16 %v2447, %v2446
        %v2569 = vpack.c.b16 %v2449, %v2448
        %v2570 = vpack.c.b16 %v2451, %v2450
        %v2571 = vpack.c.b16 %v2453, %v2452
        %v2572 = vpack.c.b16 %v2455, %v2454
        %v2573 = vpack.c.b16 %v2457, %v2456
        %v2574 = vpack.c.b16 %v2459, %v2458
        %v2575 = vpack.c.b16 %v2461, %v2460
        %v2576 = vpack.c.b16 %v2463, %v2462
        %v2577 = vpack.c.b16 %v2465, %v2464
        %v2578 = vpack.c.b16 %v2467, %v2466
        %v2579 = vpack.c.b16 %v2469, %v2468
        %v2580 = vpack.c.b16 %v2471, %v2470
        %v2581 = vpack.c.b16 %v2473, %v2472
        %v2582 = vpack.c.b16 %v2475, %v2474
        %v2583 = vpack.c.b16 %v2477, %v2476
        %v2584 = vpack.c.b16 %v2479, %v2478
        %v2585 = vpack.c.b16 %v2481, %v2480
        %v2586 = vpack.c.b16 %v2483, %v2482
        %v2587 = vpack.c.b16 %v2485, %v2484
        %v2588 = vpack.c.b16 %v2487, %v2486
        %v2589 = vpack.c.b16 %v2489, %v2488
        %v2590 = vpack.c.b16 %v2491, %v2490
        %v2591 = vpack.c.b16 %v2493, %v2492
        %v2592 = vpack.c.b16 %v2495, %v2494
        %v2593 = vpack.c.b16 %v2497, %v2496
        %v2594 = vpack.c.b16 %v2499, %v2498
        %v2595 = vpack.c.b16 %v2501, %v2500
        %v2596 = vpack.c.b16 %v2503, %v2502
        %v2597 = vpack.c.b16 %v2505, %v2504
        %v2598 = vpack.c.b16 %v2507, %v2506
        %v2599 = vpack.c.b16 %v2509, %v2508
        %v2600 = vpack.c.b16 %v2511, %v2510
        %v2601 = vpack.c.b16 %v2513, %v2512
        %v2602 = vpack.c.b16 %v2515, %v2514
        %v2603 = vpack.c.b16 %v2517, %v2516
        %v2604 = vpack.c.b16 %v2519, %v2518
        %v2605 = vpack.c.b16 %v2521, %v2520
        %v2606 = vpack.c.b16 %v2523, %v2522
        %v2607 = vpack.c.b16 %v2525, %v2524
        %v2608 = vpack.c.b16 %v2527, %v2526
        %v2609 = vpack.c.b16 %v2529, %v2528
        %v2610 = vpack.c.b16 %v2531, %v2530
        %v2611 = vpack.c.b16 %v2533, %v2532
        %v2612 = vpack.c.b16 %v2535, %v2534
        %v2613 = vpack.c.b16 %v2537, %v2536
        %v2614 = vpack.c.b16 %v2539, %v2538
        %v2615 = vpack.c.b16 %v2541, %v2540
        %v2616 = vpack.c.b16 %v2543, %v2542
        %v2617 = vpack.c.b16 %v2545, %v2544
        %v2618 = vpack.c.b16 %v2547, %v2546
        %v2619 = vpack.c.b16 %v2549, %v2548
        %v2620 = vpack.c.b16 %v2551, %v2550
        %v2621 = vpack.c.b16 %v2553, %v2552
        %v2622 = vpack.c.b16 %v2555, %v2554
        %v2623 = vpack.c.b16 %v2557, %v2556
        %v2624 = vpack.c.b16 %v2559, %v2558
        %v2625 = vpack.c.b16 %v2561, %v2560
        %2690 = vst [vmem:[%s264] sm:$0xff] %v2562
        %2691 = vst [vmem:[%s264 + $0x8] sm:$0xff] %v2563
        %2692 = vst [vmem:[%s264 + $0x10] sm:$0xff] %v2564
        %2693 = vst [vmem:[%s264 + $0x18] sm:$0xff] %v2565
        %2694 = vst [vmem:[%s264 + $0x20] sm:$0xff] %v2566
        %2695 = vst [vmem:[%s264 + $0x28] sm:$0xff] %v2567
        %2696 = vst [vmem:[%s264 + $0x30] sm:$0xff] %v2568
        %2697 = vst [vmem:[%s264 + $0x38] sm:$0xff] %v2569
        %2698 = vst [vmem:[%s264 + $0x40] sm:$0xff] %v2570
        %2699 = vst [vmem:[%s264 + $0x48] sm:$0xff] %v2571
        %2700 = vst [vmem:[%s264 + $0x50] sm:$0xff] %v2572
        %2701 = vst [vmem:[%s264 + $0x58] sm:$0xff] %v2573
        %2702 = vst [vmem:[%s264 + $0x60] sm:$0xff] %v2574
        %2703 = vst [vmem:[%s264 + $0x68] sm:$0xff] %v2575
        %2704 = vst [vmem:[%s264 + $0x70] sm:$0xff] %v2576
        %2705 = vst [vmem:[%s264 + $0x78] sm:$0xff] %v2577
        %2706 = vst [vmem:[%s264 + $0x80] sm:$0xff] %v2578
        %2707 = vst [vmem:[%s264 + $0x88] sm:$0xff] %v2579
        %2708 = vst [vmem:[%s264 + $0x90] sm:$0xff] %v2580
        %2709 = vst [vmem:[%s264 + $0x98] sm:$0xff] %v2581
        %2710 = vst [vmem:[%s264 + $0xa0] sm:$0xff] %v2582
        %2711 = vst [vmem:[%s264 + $0xa8] sm:$0xff] %v2583
        %2712 = vst [vmem:[%s264 + $0xb0] sm:$0xff] %v2584
        %2713 = vst [vmem:[%s264 + $0xb8] sm:$0xff] %v2585
        %2714 = vst [vmem:[%s264 + $0xc0] sm:$0xff] %v2586
        %2715 = vst [vmem:[%s264 + $0xc8] sm:$0xff] %v2587
        %2716 = vst [vmem:[%s264 + $0xd0] sm:$0xff] %v2588
        %2717 = vst [vmem:[%s264 + $0xd8] sm:$0xff] %v2589
        %2718 = vst [vmem:[%s264 + $0xe0] sm:$0xff] %v2590
        %2719 = vst [vmem:[%s264 + $0xe8] sm:$0xff] %v2591
        %2720 = vst [vmem:[%s264 + $0xf0] sm:$0xff] %v2592
        %2721 = vst [vmem:[%s264 + $0xf8] sm:$0xff] %v2593
        %2722 = vst [vmem:[%s264 + $0x100] sm:$0xff] %v2594
        %2723 = vst [vmem:[%s264 + $0x108] sm:$0xff] %v2595
        %2724 = vst [vmem:[%s264 + $0x110] sm:$0xff] %v2596
        %2725 = vst [vmem:[%s264 + $0x118] sm:$0xff] %v2597
        %2726 = vst [vmem:[%s264 + $0x120] sm:$0xff] %v2598
        %2727 = vst [vmem:[%s264 + $0x128] sm:$0xff] %v2599
        %2728 = vst [vmem:[%s264 + $0x130] sm:$0xff] %v2600
        %2729 = vst [vmem:[%s264 + $0x138] sm:$0xff] %v2601
        %2730 = vst [vmem:[%s264 + $0x140] sm:$0xff] %v2602
        %2731 = vst [vmem:[%s264 + $0x148] sm:$0xff] %v2603
        %2732 = vst [vmem:[%s264 + $0x150] sm:$0xff] %v2604
        %2733 = vst [vmem:[%s264 + $0x158] sm:$0xff] %v2605
        %2734 = vst [vmem:[%s264 + $0x160] sm:$0xff] %v2606
        %2735 = vst [vmem:[%s264 + $0x168] sm:$0xff] %v2607
        %2736 = vst [vmem:[%s264 + $0x170] sm:$0xff] %v2608
        %2737 = vst [vmem:[%s264 + $0x178] sm:$0xff] %v2609
        %2738 = vst [vmem:[%s264 + $0x180] sm:$0xff] %v2610
        %2739 = vst [vmem:[%s264 + $0x188] sm:$0xff] %v2611
        %2740 = vst [vmem:[%s264 + $0x190] sm:$0xff] %v2612
        %2741 = vst [vmem:[%s264 + $0x198] sm:$0xff] %v2613
        %2742 = vst [vmem:[%s264 + $0x1a0] sm:$0xff] %v2614
        %2743 = vst [vmem:[%s264 + $0x1a8] sm:$0xff] %v2615
        %2744 = vst [vmem:[%s264 + $0x1b0] sm:$0xff] %v2616
        %2745 = vst [vmem:[%s264 + $0x1b8] sm:$0xff] %v2617
        %2746 = vst [vmem:[%s264 + $0x1c0] sm:$0xff] %v2618
        %2747 = vst [vmem:[%s264 + $0x1c8] sm:$0xff] %v2619
        %2748 = vst [vmem:[%s264 + $0x1d0] sm:$0xff] %v2620
        %2749 = vst [vmem:[%s264 + $0x1d8] sm:$0xff] %v2621
        %2750 = vst [vmem:[%s264 + $0x1e0] sm:$0xff] %v2622
        %2751 = vst [vmem:[%s264 + $0x1e8] sm:$0xff] %v2623
        %2752 = vst [vmem:[%s264 + $0x1f0] sm:$0xff] %v2624
        %2753 = vst [vmem:[%s264 + $0x1f8] sm:$0xff] %v2625
        %s2754 = sand.u32 %s140, 1
        %s2755 = scalar_lea.sflag [#allocation4], %s2754
        %s2756 = sand.u32 %s140, 1
        %s2757 = smul.addr %s2756, 512
        %s2758 = scalar_lea.vmem [#allocation7], %s2757
        // Predicated region
        $region45: #{tpu_custom_call.1} parent=35 // pred_check
          %p2759 = pneg %p150
        $region46: #{tpu_custom_call.1} parent=35 // pred_check_branch
          %2761 = sbr.rel (%p2759) target = $region48
        $region47: #{tpu_custom_call.1} parent=35 // pred_region
          %s2762 = smul.u32 64, %s26
          %s2764 = ssub.s32 8192, 8192
          %2765 = vsyncadd %s2755, %s2764
          %s2766 = smul.addr %s2762, 2
          %s2767 = smul.addr %s27, 256
          %s2768 = sadd.s32 %s2766, %s2767
          %s2769 = smul.addr %s2768, 64
          %s2770 = scalar_lea.hbm %s4, %s2769
          %s2771 = sshll.u32 %s2758, 4
          %s2772 = int_to_ptr.vmem [resolvable:$true] %s2771
          %2777 = dma.vmem_to_hbm [thread:$0]  %s2772, 8192, %s2770, %s2755, 128, 128, 8
        $region48: #{tpu_custom_call.1} parent=35 // pred_fallthru
          _
      $region36: #{tpu_custom_call.1} parent=5 // pred_fallthru
        _
      %p2778 = scmp.le.s32.totalorder 2, %s17
      // Predicated region
      $region49: #{tpu_custom_call.1} parent=5 // pred_check
        %p2779 = pneg %p2778
      $region50: #{tpu_custom_call.1} parent=5 // pred_check_branch
        %2781 = sbr.rel (%p2779) target = $region52
      $region51: #{tpu_custom_call.1} parent=5 // pred_region
        %s2782 = ssub.s32 %s17, 2
        // Predicated region
        $region53: #{tpu_custom_call.1} parent=51 // pred_check
          %p2783 = pneg %p156
        $region54: #{tpu_custom_call.1} parent=51 // pred_check_branch
          %2785 = sbr.rel (%p2783) target = $region56
        $region55: #{tpu_custom_call.1} parent=51 // pred_region
          %s2786 = sand.u32 %s141, 1
          %s2787 = scalar_lea.sflag [#allocation4], %s2786
          %s2788 = sand.u32 %s141, 1
          %s2789 = smul.addr %s2788, 512
          %s2790 = scalar_lea.vmem [#allocation7], %s2789
          %2791 = dma.done %s2787, 8192
        $region56: #{tpu_custom_call.1} parent=51 // pred_fallthru
          _
      $region52: #{tpu_custom_call.1} parent=5 // pred_fallthru
        _
    $region6: #{tpu_custom_call.1} parent=1 // loop_footer
      %s21 = sadd.s32 1, %s17
    $region7: #{tpu_custom_call.1} parent=1 // loop_footer_branch
      %16 = sbr.rel target = $region3
    $region8: #{tpu_custom_call.1} parent=1 // loop_exit
      _
    %2792 = vsyncpa [#allocation3], 1
    %s2793 = scalar_lea.sflag [#allocation3], 1
    %2794 = vsyncpa %s2793, 1
    %2795 = vsyncpa [#allocation6], 1
    %2796 = vsyncpa [#allocation4], 1
    %s2797 = scalar_lea.sflag [#allocation4], 1
    %2798 = vsyncpa %s2797, 1

// kernel: tpu_custom_call.1
$region0: #{tpu_custom_call.1}
  #allocation0 [shape = 'u32[]', space=smem, size = 0x4, offset = 0x4, fixed_abs, tag = 'smem constant byte address 0x4 - core index']
  #allocation1 [shape = 'u32[144,128]{1,0:T(1,128)}', space=vmem, size = 0x12000, scoped, tag = 'internal scratch']
  %s0 = inlined_call_operand.hbm [shape: bf16[2,1024,256], index: 0, kind: input, shape index: {}]
  %s1 = inlined_call_operand.vmem [shape: bf16[2,3,256], index: 1, kind: input, shape index: {}]
  %s2 = inlined_call_operand.hbm [shape: bf16[256,256], index: 2, kind: input, shape index: {}]
  %s3 = inlined_call_operand.vmem [shape: bf16[1,256], index: 3, kind: input, shape index: {}]
  %s4 = inlined_call_operand.hbm [shape: bf16[2,1024,256], index: 4, kind: output, shape index: {}]
  %s5 = sld [smem:[#allocation0]]
  $region57: #{tpu_custom_call.1} parent=0
    _
  %s7 = ssub.s32 1, %s5
  %s8 = scalar_select 0, %s7, %s5
  $region1: #{tpu_custom_call.1} parent=0
    #allocation2 [shape = 'u8[524288]{0}', space=vmem, size = 0x80000, scoped, tag = 'input window, operand 0']
    #allocation3 [shape = 's32[2]{0}', space=sflag, size = 0x8, scoped, tag = 'scoped memory for tpu_custom_call.1']
    #allocation4 [shape = 's32[2]{0}', space=sflag, size = 0x8, scoped, tag = 'scoped memory for tpu_custom_call.1']
    #allocation5 [shape = 'u8[131072]{0}', space=vmem, size = 0x20000, scoped, tag = 'input window, operand 2, single buffered']
    #allocation6 [shape = 's32[1]{0}', space=sflag, size = 0x4, scoped, tag = 'scoped memory for tpu_custom_call.1']
    #allocation7 [shape = 'u8[524288]{0}', space=vmem, size = 0x80000, scoped, tag = 'output window, operand 0']
    %9 = vsyncpa [#allocation3], 0
    %s10 = scalar_lea.sflag [#allocation3], 1
    %11 = vsyncpa %s10, 0
    %12 = vsyncpa [#allocation6], 0
    %13 = vsyncpa [#allocation4], 0
    %s14 = scalar_lea.sflag [#allocation4], 1
    %15 = vsyncpa %s14, 0
    loop: start=0, step=1, limit=6
    $region2: #{tpu_custom_call.1} parent=1 // loop_pre_header
      _
    $region3: #{tpu_custom_call.1} parent=1 // loop_header
      %s17 = sphi 0, %s21
      %p18 = scmp.ge.s32.totalorder %s17, 6
      %s24 = sphi 0, %s36
      %s25 = sphi 0, %s32
      %s26 = sphi 0, %s24
      %s27 = sphi 0, %s25
      %s28 = sphi 0, %s26
      %s29 = sphi 0, %s27
      %s41 = sphi 0, %s43
      %s44 = sphi 0, %s41
      %s45 = sphi 0, %s44
      %s61 = sphi 0, %s45
      %s67 = sphi 0, %s69
      %s70 = sphi 0, %s67
      %s71 = sphi 0, %s70
      %s87 = sphi 0, %s71
      %s91 = sphi 0, %s91
      %s93 = sphi 0, %s91
      %s94 = sphi 0, %s93
      %s108 = sphi 0, %s94
      %s112 = sphi 0, %s112
      %s114 = sphi 0, %s112
      %s115 = sphi 0, %s114
      %s129 = sphi 0, %s115
      %s137 = sphi 0, %s139
      %s140 = sphi 0, %s137
      %s141 = sphi 0, %s140
      %s157 = sphi 0, %s141
    $region4: #{tpu_custom_call.1} parent=1 // loop_header_branch
      %20 = sbr.rel (%p18) target = $region8
    $region5: #{tpu_custom_call.1} parent=1 // loop_body
      %s22 = ssub.s32 %s17, 1
      %s23 = ssub.s32 %s17, 2
      %s30 = sadd.s32 1, %s25
      %p31 = scmp.ge.s32.totalorder %s30, 2
      %s32 = scalar_select %p31, 0, %s30
      %s33 = sadd.s32 1, %s24
      %s34 = scalar_select %p31, %s33, %s24
      %p35 = scmp.ge.s32.totalorder %s34, 2
      %s36 = scalar_select %p35, 0, %s34
      %s37 = ssub.s32 %s25, %s32
      %s38 = ssub.s32 %s24, %s36
      %s39 = sor.u32 %s37, %s38
      %p40 = scmp.eq.s32.totalorder %s39, 0
      %s42 = sadd.s32 %s41, 1
      %s43 = scalar_select %p40, %s41, %s42
      %p46 = pneg %p40
      %p47 = scmp.eq.s32.totalorder %s17, 3
      %p48 = por %p46, %p47
      %p49 = scmp.ne.s32.totalorder %s41, %s44
      %p50 = scmp.eq.s32.totalorder %s17, 0
      %p51 = por %p49, %p50
      %p52 = scmp.ne.s32.totalorder %s41, %s44
      %p53 = scmp.eq.s32.totalorder %s22, 3
      %p54 = por %p52, %p53
      %p55 = scmp.ne.s32.totalorder %s44, %s45
      %p56 = scmp.eq.s32.totalorder %s22, 0
      %p57 = por %p55, %p56
      %p58 = scmp.ne.s32.totalorder %s44, %s45
      %p59 = scmp.eq.s32.totalorder %s23, 3
      %p60 = por %p58, %p59
      %p62 = scmp.ne.s32.totalorder %s45, %s61
      %p63 = scmp.eq.s32.totalorder %s23, 0
      %p64 = por %p62, %p63
      %s65 = ssub.s32 %s25, %s32
      %p66 = scmp.eq.s32.totalorder %s65, 0
      %s68 = sadd.s32 %s67, 1
      %s69 = scalar_select %p66, %s67, %s68
      %p72 = pneg %p66
      %p73 = scmp.eq.s32.totalorder %s17, 3
      %p74 = por %p72, %p73
      %p75 = scmp.ne.s32.totalorder %s67, %s70
      %p76 = scmp.eq.s32.totalorder %s17, 0
      %p77 = por %p75, %p76
      %p78 = scmp.ne.s32.totalorder %s67, %s70
      %p79 = scmp.eq.s32.totalorder %s22, 3
      %p80 = por %p78, %p79
      %p81 = scmp.ne.s32.totalorder %s70, %s71
      %p82 = scmp.eq.s32.totalorder %s22, 0
      %p83 = por %p81, %p82
      %p84 = scmp.ne.s32.totalorder %s70, %s71
      %p85 = scmp.eq.s32.totalorder %s23, 3
      %p86 = por %p84, %p85
      %p88 = scmp.ne.s32.totalorder %s71, %s87
      %p89 = scmp.eq.s32.totalorder %s23, 0
      %p90 = por %p88, %p89
      %s92 = sadd.s32 %s91, 1
      %p95 = scmp.eq.s32.totalorder %s17, 3
      %p96 = scmp.ne.s32.totalorder %s91, %s93
      %p97 = scmp.eq.s32.totalorder %s17, 0
      %p98 = por %p96, %p97
      %p99 = scmp.ne.s32.totalorder %s91, %s93
      %p100 = scmp.eq.s32.totalorder %s22, 3
      %p101 = por %p99, %p100
      %p102 = scmp.ne.s32.totalorder %s93, %s94
      %p103 = scmp.eq.s32.totalorder %s22, 0
      %p104 = por %p102, %p103
      %p105 = scmp.ne.s32.totalorder %s93, %s94
      %p106 = scmp.eq.s32.totalorder %s23, 3
      %p107 = por %p105, %p106
      %p109 = scmp.ne.s32.totalorder %s94, %s108
      %p110 = scmp.eq.s32.totalorder %s23, 0
      %p111 = por %p109, %p110
      %s113 = sadd.s32 %s112, 1
      %p116 = scmp.eq.s32.totalorder %s17, 3
      %p117 = scmp.ne.s32.totalorder %s112, %s114
      %p118 = scmp.eq.s32.totalorder %s17, 0
      %p119 = por %p117, %p118
      %p120 = scmp.ne.s32.totalorder %s112, %s114
      %p121 = scmp.eq.s32.totalorder %s22, 3
      %p122 = por %p120, %p121
      %p123 = scmp.ne.s32.totalorder %s114, %s115
      %p124 = scmp.eq.s32.totalorder %s22, 0
      %p125 = por %p123, %p124
      %p126 = scmp.ne.s32.totalorder %s114, %s115
      %p127 = scmp.eq.s32.totalorder %s23, 3
      %p128 = por %p126, %p127
      %p130 = scmp.ne.s32.totalorder %s115, %s129
      %p131 = scmp.eq.s32.totalorder %s23, 0
      %p132 = por %p130, %p131
      %s133 = ssub.s32 %s25, %s32
      %s134 = ssub.s32 %s24, %s36
      %s135 = sor.u32 %s133, %s134
      %p136 = scmp.eq.s32.totalorder %s135, 0
      %s138 = sadd.s32 %s137, 1
      %s139 = scalar_select %p136, %s137, %s138
      %p142 = pneg %p136
      %p143 = scmp.eq.s32.totalorder %s17, 3
      %p144 = por %p142, %p143
      %p145 = scmp.ne.s32.totalorder %s137, %s140
      %p146 = scmp.eq.s32.totalorder %s17, 0
      %p147 = por %p145, %p146
      %p148 = scmp.ne.s32.totalorder %s137, %s140
      %p149 = scmp.eq.s32.totalorder %s22, 3
      %p150 = por %p148, %p149
      %p151 = scmp.ne.s32.totalorder %s140, %s141
      %p152 = scmp.eq.s32.totalorder %s22, 0
      %p153 = por %p151, %p152
      %p154 = scmp.ne.s32.totalorder %s140, %s141
      %p155 = scmp.eq.s32.totalorder %s23, 3
      %p156 = por %p154, %p155
      %p158 = scmp.ne.s32.totalorder %s141, %s157
      %p159 = scmp.eq.s32.totalorder %s23, 0
      %p160 = por %p158, %p159
      %p161 = scmp.le.s32.totalorder 1, %s17
      %p162 = scmp.lt.s32.totalorder %s17, 5
      %p163 = pnand %p161, %p162
      %p164 = pneg %p163
      // Predicated region
      $region9: #{tpu_custom_call.1} parent=5 // pred_check
        _
      $region10: #{tpu_custom_call.1} parent=5 // pred_check_branch
        %166 = sbr.rel (%p163) target = $region12
      $region11: #{tpu_custom_call.1} parent=5 // pred_region
        %s167 = ssub.s32 %s17, 1
        // Predicated region
        $region13: #{tpu_custom_call.1} parent=11 // pred_check
          %p168 = pneg %p104
        $region14: #{tpu_custom_call.1} parent=11 // pred_check_branch
          %170 = sbr.rel (%p168) target = $region16
        $region15: #{tpu_custom_call.1} parent=11 // pred_region
          %s172 = ssub.s32 4096, 4096
          %173 = vsyncadd [#allocation6], %s172
          %s174 = sshll.u32 [#allocation5], 4
          %s175 = int_to_ptr.vmem [resolvable:$true] %s174
          %180 = dma.hbm_to_vmem [thread:$0]  %s2, 4096, %s175, [#allocation6], 128, 128, 8
        $region16: #{tpu_custom_call.1} parent=11 // pred_fallthru
          _
        // Predicated region
        $region17: #{tpu_custom_call.1} parent=11 // pred_check
          %p181 = pneg %p125
        $region18: #{tpu_custom_call.1} parent=11 // pred_check_branch
          %183 = sbr.rel (%p181) target = $region20
        $region19: #{tpu_custom_call.1} parent=11 // pred_region
          _
        $region20: #{tpu_custom_call.1} parent=11 // pred_fallthru
          _
      $region12: #{tpu_custom_call.1} parent=5 // pred_fallthru
        _
      %p184 = scmp.lt.s32.totalorder %s17, 4
      // Predicated region
      $region21: #{tpu_custom_call.1} parent=5 // pred_check
        %p185 = pneg %p184
      $region22: #{tpu_custom_call.1} parent=5 // pred_check_branch
        %187 = sbr.rel (%p185) target = $region24
      $region23: #{tpu_custom_call.1} parent=5 // pred_region
        // Predicated region
        $region25: #{tpu_custom_call.1} parent=23 // pred_check
          %p188 = pneg %p51
        $region26: #{tpu_custom_call.1} parent=23 // pred_check_branch
          %190 = sbr.rel (%p188) target = $region28
        $region27: #{tpu_custom_call.1} parent=23 // pred_region
          %s191 = sand.u32 %s41, 1
          %s192 = scalar_lea.sflag [#allocation3], %s191
          %s193 = sand.u32 %s41, 1
          %s194 = smul.addr %s193, 512
          %s195 = scalar_lea.vmem [#allocation2], %s194
          %s196 = smul.u32 64, %s24
          %s198 = ssub.s32 8192, 8192
          %199 = vsyncadd %s192, %s198
          %s200 = smul.addr %s196, 2
          %s201 = smul.addr %s25, 256
          %s202 = sadd.s32 %s200, %s201
          %s203 = smul.addr %s202, 64
          %s204 = scalar_lea.hbm %s0, %s203
          %s205 = sshll.u32 %s195, 4
          %s206 = int_to_ptr.vmem [resolvable:$true] %s205
          %211 = dma.hbm_to_vmem [thread:$0]  %s204, 8192, %s206, %s192, 128, 128, 8
        $region28: #{tpu_custom_call.1} parent=23 // pred_fallthru
          _
        // Predicated region
        $region29: #{tpu_custom_call.1} parent=23 // pred_check
          %p212 = pneg %p77
        $region30: #{tpu_custom_call.1} parent=23 // pred_check_branch
          %214 = sbr.rel (%p212) target = $region32
        $region31: #{tpu_custom_call.1} parent=23 // pred_region
          %p215 = scmp.lt.s32.totalorder %s25, 1
          %s216 = scalar_select %p215, %s25, 1
          %s217 = smul.addr %s216, 2
          %s218 = smul.addr %s217, 2
          %s219 = scalar_lea.vmem %s1, %s218
        $region32: #{tpu_custom_call.1} parent=23 // pred_fallthru
          _
      $region24: #{tpu_custom_call.1} parent=5 // pred_fallthru
        _
      %p220 = scmp.le.s32.totalorder 1, %s17
      %p221 = scmp.lt.s32.totalorder %s17, 5
      %p222 = pnand %p220, %p221
      %p223 = pneg %p222
      // Predicated region
      $region33: #{tpu_custom_call.1} parent=5 // pred_check
        _
      $region34: #{tpu_custom_call.1} parent=5 // pred_check_branch
        %225 = sbr.rel (%p222) target = $region36
      $region35: #{tpu_custom_call.1} parent=5 // pred_region
        %s226 = ssub.s32 %s17, 1
        %s227 = sand.u32 %s44, 1
        %s228 = scalar_lea.sflag [#allocation3], %s227
        %s229 = sand.u32 %s44, 1
        %s230 = smul.addr %s229, 512
        %s231 = scalar_lea.vmem [#allocation2], %s230
        // Predicated region
        $region37: #{tpu_custom_call.1} parent=35 // pred_check
          %p232 = pneg %p57
        $region38: #{tpu_custom_call.1} parent=35 // pred_check_branch
          %234 = sbr.rel (%p232) target = $region40
        $region39: #{tpu_custom_call.1} parent=35 // pred_region
          %235 = dma.done %s228, 8192
        $region40: #{tpu_custom_call.1} parent=35 // pred_fallthru
          _
        // Predicated region
        $region41: #{tpu_custom_call.1} parent=35 // pred_check
          %p236 = pneg %p104
        $region42: #{tpu_custom_call.1} parent=35 // pred_check_branch
          %238 = sbr.rel (%p236) target = $region44
        $region43: #{tpu_custom_call.1} parent=35 // pred_region
          %239 = dma.done [#allocation6], 4096
        $region44: #{tpu_custom_call.1} parent=35 // pred_fallthru
          _
        %s240 = sand.u32 %s44, 1
        %s241 = scalar_lea.sflag [#allocation3], %s240
        %s242 = sand.u32 %s44, 1
        %s243 = smul.addr %s242, 512
        %s244 = scalar_lea.vmem [#allocation2], %s243
        %p245 = pneg %p57
        %p246 = pneg %p54
        %p247 = scmp.lt.s32.totalorder %s27, 1
        %s248 = scalar_select %p247, %s27, 1
        %s249 = smul.addr %s248, 2
        %s250 = smul.addr %s249, 2
        %s251 = scalar_lea.vmem %s1, %s250
        %p252 = pneg %p83
        %p253 = pneg %p80
        %p254 = pneg %p104
        %p255 = pneg %p101
        %p256 = pneg %p125
        %p257 = pneg %p122
        %p258 = pneg %p153
        %p259 = pneg %p150
        %s260 = sand.u32 %s140, 1
        %s261 = scalar_lea.sflag [#allocation4], %s260
        %s262 = sand.u32 %s140, 1
        %s263 = smul.addr %s262, 512
        %s264 = scalar_lea.vmem [#allocation7], %s263
        %s265 = smul.u32 64, %s26
        %p266 = scmp.lt.s32.totalorder %s27, 1
        %s267 = scalar_select %p266, %s27, 1
        %s268 = smul.addr %s267, 2
        %s269 = smul.addr %s268, 2
        %s270 = scalar_lea.vmem %s1, %s269
        %s271 = smul.u32 64, %s26
        %v272 = vld [vmem:[%s231] sm:$0xff]
        %v273 = vld [vmem:[%s231 + $0x8] sm:$0xff]
        %v274 = vld [vmem:[%s231 + $0x10] sm:$0xff]
        %v275 = vld [vmem:[%s231 + $0x18] sm:$0xff]
        %v276 = vld [vmem:[%s231 + $0x20] sm:$0xff]
        %v277 = vld [vmem:[%s231 + $0x28] sm:$0xff]
        %v278 = vld [vmem:[%s231 + $0x30] sm:$0xff]
        %v279 = vld [vmem:[%s231 + $0x38] sm:$0xff]
        %v280 = vld [vmem:[%s231 + $0x40] sm:$0xff]
        %v281 = vld [vmem:[%s231 + $0x48] sm:$0xff]
        %v282 = vld [vmem:[%s231 + $0x50] sm:$0xff]
        %v283 = vld [vmem:[%s231 + $0x58] sm:$0xff]
        %v284 = vld [vmem:[%s231 + $0x60] sm:$0xff]
        %v285 = vld [vmem:[%s231 + $0x68] sm:$0xff]
        %v286 = vld [vmem:[%s231 + $0x70] sm:$0xff]
        %v287 = vld [vmem:[%s231 + $0x78] sm:$0xff]
        %v288 = vld [vmem:[%s231 + $0x80] sm:$0xff]
        %v289 = vld [vmem:[%s231 + $0x88] sm:$0xff]
        %v290 = vld [vmem:[%s231 + $0x90] sm:$0xff]
        %v291 = vld [vmem:[%s231 + $0x98] sm:$0xff]
        %v292 = vld [vmem:[%s231 + $0xa0] sm:$0xff]
        %v293 = vld [vmem:[%s231 + $0xa8] sm:$0xff]
        %v294 = vld [vmem:[%s231 + $0xb0] sm:$0xff]
        %v295 = vld [vmem:[%s231 + $0xb8] sm:$0xff]
        %v296 = vld [vmem:[%s231 + $0xc0] sm:$0xff]
        %v297 = vld [vmem:[%s231 + $0xc8] sm:$0xff]
        %v298 = vld [vmem:[%s231 + $0xd0] sm:$0xff]
        %v299 = vld [vmem:[%s231 + $0xd8] sm:$0xff]
        %v300 = vld [vmem:[%s231 + $0xe0] sm:$0xff]
        %v301 = vld [vmem:[%s231 + $0xe8] sm:$0xff]
        %v302 = vld [vmem:[%s231 + $0xf0] sm:$0xff]
        %v303 = vld [vmem:[%s231 + $0xf8] sm:$0xff]
        %v304 = vld [vmem:[%s231 + $0x100] sm:$0xff]
        %v305 = vld [vmem:[%s231 + $0x108] sm:$0xff]
        %v306 = vld [vmem:[%s231 + $0x110] sm:$0xff]
        %v307 = vld [vmem:[%s231 + $0x118] sm:$0xff]
        %v308 = vld [vmem:[%s231 + $0x120] sm:$0xff]
        %v309 = vld [vmem:[%s231 + $0x128] sm:$0xff]
        %v310 = vld [vmem:[%s231 + $0x130] sm:$0xff]
        %v311 = vld [vmem:[%s231 + $0x138] sm:$0xff]
        %v312 = vld [vmem:[%s231 + $0x140] sm:$0xff]
        %v313 = vld [vmem:[%s231 + $0x148] sm:$0xff]
        %v314 = vld [vmem:[%s231 + $0x150] sm:$0xff]
        %v315 = vld [vmem:[%s231 + $0x158] sm:$0xff]
        %v316 = vld [vmem:[%s231 + $0x160] sm:$0xff]
        %v317 = vld [vmem:[%s231 + $0x168] sm:$0xff]
        %v318 = vld [vmem:[%s231 + $0x170] sm:$0xff]
        %v319 = vld [vmem:[%s231 + $0x178] sm:$0xff]
        %v320 = vld [vmem:[%s231 + $0x180] sm:$0xff]
        %v321 = vld [vmem:[%s231 + $0x188] sm:$0xff]
        %v322 = vld [vmem:[%s231 + $0x190] sm:$0xff]
        %v323 = vld [vmem:[%s231 + $0x198] sm:$0xff]
        %v324 = vld [vmem:[%s231 + $0x1a0] sm:$0xff]
        %v325 = vld [vmem:[%s231 + $0x1a8] sm:$0xff]
        %v326 = vld [vmem:[%s231 + $0x1b0] sm:$0xff]
        %v327 = vld [vmem:[%s231 + $0x1b8] sm:$0xff]
        %v328 = vld [vmem:[%s231 + $0x1c0] sm:$0xff]
        %v329 = vld [vmem:[%s231 + $0x1c8] sm:$0xff]
        %v330 = vld [vmem:[%s231 + $0x1d0] sm:$0xff]
        %v331 = vld [vmem:[%s231 + $0x1d8] sm:$0xff]
        %v332 = vld [vmem:[%s231 + $0x1e0] sm:$0xff]
        %v333 = vld [vmem:[%s231 + $0x1e8] sm:$0xff]
        %v334 = vld [vmem:[%s231 + $0x1f0] sm:$0xff]
        %v335 = vld [vmem:[%s231 + $0x1f8] sm:$0xff]
        %v336 = vunpack.c.l.bf16 %v272
        %v337 = vunpack.c.h.bf16 %v272
        %v338 = vunpack.c.l.bf16 %v273
        %v339 = vunpack.c.h.bf16 %v273
        %v340 = vunpack.c.l.bf16 %v274
        %v341 = vunpack.c.h.bf16 %v274
        %v342 = vunpack.c.l.bf16 %v275
        %v343 = vunpack.c.h.bf16 %v275
        %v344 = vunpack.c.l.bf16 %v276
        %v345 = vunpack.c.h.bf16 %v276
        %v346 = vunpack.c.l.bf16 %v277
        %v347 = vunpack.c.h.bf16 %v277
        %v348 = vunpack.c.l.bf16 %v278
        %v349 = vunpack.c.h.bf16 %v278
        %v350 = vunpack.c.l.bf16 %v279
        %v351 = vunpack.c.h.bf16 %v279
        %v352 = vunpack.c.l.bf16 %v280
        %v353 = vunpack.c.h.bf16 %v280
        %v354 = vunpack.c.l.bf16 %v281
        %v355 = vunpack.c.h.bf16 %v281
        %v356 = vunpack.c.l.bf16 %v282
        %v357 = vunpack.c.h.bf16 %v282
        %v358 = vunpack.c.l.bf16 %v283
        %v359 = vunpack.c.h.bf16 %v283
        %v360 = vunpack.c.l.bf16 %v284
        %v361 = vunpack.c.h.bf16 %v284
        %v362 = vunpack.c.l.bf16 %v285
        %v363 = vunpack.c.h.bf16 %v285
        %v364 = vunpack.c.l.bf16 %v286
        %v365 = vunpack.c.h.bf16 %v286
        %v366 = vunpack.c.l.bf16 %v287
        %v367 = vunpack.c.h.bf16 %v287
        %v368 = vunpack.c.l.bf16 %v288
        %v369 = vunpack.c.h.bf16 %v288
        %v370 = vunpack.c.l.bf16 %v289
        %v371 = vunpack.c.h.bf16 %v289
        %v372 = vunpack.c.l.bf16 %v290
        %v373 = vunpack.c.h.bf16 %v290
        %v374 = vunpack.c.l.bf16 %v291
        %v375 = vunpack.c.h.bf16 %v291
        %v376 = vunpack.c.l.bf16 %v292
        %v377 = vunpack.c.h.bf16 %v292
        %v378 = vunpack.c.l.bf16 %v293
        %v379 = vunpack.c.h.bf16 %v293
        %v380 = vunpack.c.l.bf16 %v294
        %v381 = vunpack.c.h.bf16 %v294
        %v382 = vunpack.c.l.bf16 %v295
        %v383 = vunpack.c.h.bf16 %v295
        %v384 = vunpack.c.l.bf16 %v296
        %v385 = vunpack.c.h.bf16 %v296
        %v386 = vunpack.c.l.bf16 %v297
        %v387 = vunpack.c.h.bf16 %v297
        %v388 = vunpack.c.l.bf16 %v298
        %v389 = vunpack.c.h.bf16 %v298
        %v390 = vunpack.c.l.bf16 %v299
        %v391 = vunpack.c.h.bf16 %v299
        %v392 = vunpack.c.l.bf16 %v300
        %v393 = vunpack.c.h.bf16 %v300
        %v394 = vunpack.c.l.bf16 %v301
        %v395 = vunpack.c.h.bf16 %v301
        %v396 = vunpack.c.l.bf16 %v302
        %v397 = vunpack.c.h.bf16 %v302
        %v398 = vunpack.c.l.bf16 %v303
        %v399 = vunpack.c.h.bf16 %v303
        %v400 = vunpack.c.l.bf16 %v304
        %v401 = vunpack.c.h.bf16 %v304
        %v402 = vunpack.c.l.bf16 %v305
        %v403 = vunpack.c.h.bf16 %v305
        %v404 = vunpack.c.l.bf16 %v306
        %v405 = vunpack.c.h.bf16 %v306
        %v406 = vunpack.c.l.bf16 %v307
        %v407 = vunpack.c.h.bf16 %v307
        %v408 = vunpack.c.l.bf16 %v308
        %v409 = vunpack.c.h.bf16 %v308
        %v410 = vunpack.c.l.bf16 %v309
        %v411 = vunpack.c.h.bf16 %v309
        %v412 = vunpack.c.l.bf16 %v310
        %v413 = vunpack.c.h.bf16 %v310
        %v414 = vunpack.c.l.bf16 %v311
        %v415 = vunpack.c.h.bf16 %v311
        %v416 = vunpack.c.l.bf16 %v312
        %v417 = vunpack.c.h.bf16 %v312
        %v418 = vunpack.c.l.bf16 %v313
        %v419 = vunpack.c.h.bf16 %v313
        %v420 = vunpack.c.l.bf16 %v314
        %v421 = vunpack.c.h.bf16 %v314
        %v422 = vunpack.c.l.bf16 %v315
        %v423 = vunpack.c.h.bf16 %v315
        %v424 = vunpack.c.l.bf16 %v316
        %v425 = vunpack.c.h.bf16 %v316
        %v426 = vunpack.c.l.bf16 %v317
        %v427 = vunpack.c.h.bf16 %v317
        %v428 = vunpack.c.l.bf16 %v318
        %v429 = vunpack.c.h.bf16 %v318
        %v430 = vunpack.c.l.bf16 %v319
        %v431 = vunpack.c.h.bf16 %v319
        %v432 = vunpack.c.l.bf16 %v320
        %v433 = vunpack.c.h.bf16 %v320
        %v434 = vunpack.c.l.bf16 %v321
        %v435 = vunpack.c.h.bf16 %v321
        %v436 = vunpack.c.l.bf16 %v322
        %v437 = vunpack.c.h.bf16 %v322
        %v438 = vunpack.c.l.bf16 %v323
        %v439 = vunpack.c.h.bf16 %v323
        %v440 = vunpack.c.l.bf16 %v324
        %v441 = vunpack.c.h.bf16 %v324
        %v442 = vunpack.c.l.bf16 %v325
        %v443 = vunpack.c.h.bf16 %v325
        %v444 = vunpack.c.l.bf16 %v326
        %v445 = vunpack.c.h.bf16 %v326
        %v446 = vunpack.c.l.bf16 %v327
        %v447 = vunpack.c.h.bf16 %v327
        %v448 = vunpack.c.l.bf16 %v328
        %v449 = vunpack.c.h.bf16 %v328
        %v450 = vunpack.c.l.bf16 %v329
        %v451 = vunpack.c.h.bf16 %v329
        %v452 = vunpack.c.l.bf16 %v330
        %v453 = vunpack.c.h.bf16 %v330
        %v454 = vunpack.c.l.bf16 %v331
        %v455 = vunpack.c.h.bf16 %v331
        %v456 = vunpack.c.l.bf16 %v332
        %v457 = vunpack.c.h.bf16 %v332
        %v458 = vunpack.c.l.bf16 %v333
        %v459 = vunpack.c.h.bf16 %v333
        %v460 = vunpack.c.l.bf16 %v334
        %v461 = vunpack.c.h.bf16 %v334
        %v462 = vunpack.c.l.bf16 %v335
        %v463 = vunpack.c.h.bf16 %v335
        %v464 = vmul.f32 %v336, %v336
        %v465 = vmul.f32 %v337, %v337
        %v466 = vmul.f32 %v338, %v338
        %v467 = vmul.f32 %v339, %v339
        %v468 = vmul.f32 %v340, %v340
        %v469 = vmul.f32 %v341, %v341
        %v470 = vmul.f32 %v342, %v342
        %v471 = vmul.f32 %v343, %v343
        %v472 = vmul.f32 %v344, %v344
        %v473 = vmul.f32 %v345, %v345
        %v474 = vmul.f32 %v346, %v346
        %v475 = vmul.f32 %v347, %v347
        %v476 = vmul.f32 %v348, %v348
        %v477 = vmul.f32 %v349, %v349
        %v478 = vmul.f32 %v350, %v350
        %v479 = vmul.f32 %v351, %v351
        %v480 = vmul.f32 %v352, %v352
        %v481 = vmul.f32 %v353, %v353
        %v482 = vmul.f32 %v354, %v354
        %v483 = vmul.f32 %v355, %v355
        %v484 = vmul.f32 %v356, %v356
        %v485 = vmul.f32 %v357, %v357
        %v486 = vmul.f32 %v358, %v358
        %v487 = vmul.f32 %v359, %v359
        %v488 = vmul.f32 %v360, %v360
        %v489 = vmul.f32 %v361, %v361
        %v490 = vmul.f32 %v362, %v362
        %v491 = vmul.f32 %v363, %v363
        %v492 = vmul.f32 %v364, %v364
        %v493 = vmul.f32 %v365, %v365
        %v494 = vmul.f32 %v366, %v366
        %v495 = vmul.f32 %v367, %v367
        %v496 = vmul.f32 %v368, %v368
        %v497 = vmul.f32 %v369, %v369
        %v498 = vmul.f32 %v370, %v370
        %v499 = vmul.f32 %v371, %v371
        %v500 = vmul.f32 %v372, %v372
        %v501 = vmul.f32 %v373, %v373
        %v502 = vmul.f32 %v374, %v374
        %v503 = vmul.f32 %v375, %v375
        %v504 = vmul.f32 %v376, %v376
        %v505 = vmul.f32 %v377, %v377
        %v506 = vmul.f32 %v378, %v378
        %v507 = vmul.f32 %v379, %v379
        %v508 = vmul.f32 %v380, %v380
        %v509 = vmul.f32 %v381, %v381
        %v510 = vmul.f32 %v382, %v382
        %v511 = vmul.f32 %v383, %v383
        %v512 = vmul.f32 %v384, %v384
        %v513 = vmul.f32 %v385, %v385
        %v514 = vmul.f32 %v386, %v386
        %v515 = vmul.f32 %v387, %v387
        %v516 = vmul.f32 %v388, %v388
        %v517 = vmul.f32 %v389, %v389
        %v518 = vmul.f32 %v390, %v390
        %v519 = vmul.f32 %v391, %v391
        %v520 = vmul.f32 %v392, %v392
        %v521 = vmul.f32 %v393, %v393
        %v522 = vmul.f32 %v394, %v394
        %v523 = vmul.f32 %v395, %v395
        %v524 = vmul.f32 %v396, %v396
        %v525 = vmul.f32 %v397, %v397
        %v526 = vmul.f32 %v398, %v398
        %v527 = vmul.f32 %v399, %v399
        %v528 = vmul.f32 %v400, %v400
        %v529 = vmul.f32 %v401, %v401
        %v530 = vmul.f32 %v402, %v402
        %v531 = vmul.f32 %v403, %v403
        %v532 = vmul.f32 %v404, %v404
        %v533 = vmul.f32 %v405, %v405
        %v534 = vmul.f32 %v406, %v406
        %v535 = vmul.f32 %v407, %v407
        %v536 = vmul.f32 %v408, %v408
        %v537 = vmul.f32 %v409, %v409
        %v538 = vmul.f32 %v410, %v410
        %v539 = vmul.f32 %v411, %v411
        %v540 = vmul.f32 %v412, %v412
        %v541 = vmul.f32 %v413, %v413
        %v542 = vmul.f32 %v414, %v414
        %v543 = vmul.f32 %v415, %v415
        %v544 = vmul.f32 %v416, %v416
        %v545 = vmul.f32 %v417, %v417
        %v546 = vmul.f32 %v418, %v418
        %v547 = vmul.f32 %v419, %v419
        %v548 = vmul.f32 %v420, %v420
        %v549 = vmul.f32 %v421, %v421
        %v550 = vmul.f32 %v422, %v422
        %v551 = vmul.f32 %v423, %v423
        %v552 = vmul.f32 %v424, %v424
        %v553 = vmul.f32 %v425, %v425
        %v554 = vmul.f32 %v426, %v426
        %v555 = vmul.f32 %v427, %v427
        %v556 = vmul.f32 %v428, %v428
        %v557 = vmul.f32 %v429, %v429
        %v558 = vmul.f32 %v430, %v430
        %v559 = vmul.f32 %v431, %v431
        %v560 = vmul.f32 %v432, %v432
        %v561 = vmul.f32 %v433, %v433
        %v562 = vmul.f32 %v434, %v434
        %v563 = vmul.f32 %v435, %v435
        %v564 = vmul.f32 %v436, %v436
        %v565 = vmul.f32 %v437, %v437
        %v566 = vmul.f32 %v438, %v438
        %v567 = vmul.f32 %v439, %v439
        %v568 = vmul.f32 %v440, %v440
        %v569 = vmul.f32 %v441, %v441
        %v570 = vmul.f32 %v442, %v442
        %v571 = vmul.f32 %v443, %v443
        %v572 = vmul.f32 %v444, %v444
        %v573 = vmul.f32 %v445, %v445
        %v574 = vmul.f32 %v446, %v446
        %v575 = vmul.f32 %v447, %v447
        %v576 = vmul.f32 %v448, %v448
        %v577 = vmul.f32 %v449, %v449
        %v578 = vmul.f32 %v450, %v450
        %v579 = vmul.f32 %v451, %v451
        %v580 = vmul.f32 %v452, %v452
        %v581 = vmul.f32 %v453, %v453
        %v582 = vmul.f32 %v454, %v454
        %v583 = vmul.f32 %v455, %v455
        %v584 = vmul.f32 %v456, %v456
        %v585 = vmul.f32 %v457, %v457
        %v586 = vmul.f32 %v458, %v458
        %v587 = vmul.f32 %v459, %v459
        %v588 = vmul.f32 %v460, %v460
        %v589 = vmul.f32 %v461, %v461
        %v590 = vmul.f32 %v462, %v462
        %v591 = vmul.f32 %v463, %v463
        %v592 = vadd.f32 %v464, %v465
        %593 = vadd.xlane.f32.xlu0 %v592
        %v594 = vpop.xlane.xlu0 %593
        %v595 = vadd.f32 %v466, %v467
        %596 = vadd.xlane.f32.xlu0 %v595
        %v597 = vpop.xlane.xlu0 %596
        %v598 = vadd.f32 %v468, %v469
        %599 = vadd.xlane.f32.xlu0 %v598
        %v600 = vpop.xlane.xlu0 %599
        %v601 = vadd.f32 %v470, %v471
        %602 = vadd.xlane.f32.xlu0 %v601
        %v603 = vpop.xlane.xlu0 %602
        %v604 = vadd.f32 %v472, %v473
        %605 = vadd.xlane.f32.xlu0 %v604
        %v606 = vpop.xlane.xlu0 %605
        %v607 = vadd.f32 %v474, %v475
        %608 = vadd.xlane.f32.xlu0 %v607
        %v609 = vpop.xlane.xlu0 %608
        %v610 = vadd.f32 %v476, %v477
        %611 = vadd.xlane.f32.xlu0 %v610
        %v612 = vpop.xlane.xlu0 %611
        %v613 = vadd.f32 %v478, %v479
        %614 = vadd.xlane.f32.xlu0 %v613
        %v615 = vpop.xlane.xlu0 %614
        %v616 = vadd.f32 %v480, %v481
        %617 = vadd.xlane.f32.xlu0 %v616
        %v618 = vpop.xlane.xlu0 %617
        %v619 = vadd.f32 %v482, %v483
        %620 = vadd.xlane.f32.xlu0 %v619
        %v621 = vpop.xlane.xlu0 %620
        %v622 = vadd.f32 %v484, %v485
        %623 = vadd.xlane.f32.xlu0 %v622
        %v624 = vpop.xlane.xlu0 %623
        %v625 = vadd.f32 %v486, %v487
        %626 = vadd.xlane.f32.xlu0 %v625
        %v627 = vpop.xlane.xlu0 %626
        %v628 = vadd.f32 %v488, %v489
        %629 = vadd.xlane.f32.xlu0 %v628
        %v630 = vpop.xlane.xlu0 %629
        %v631 = vadd.f32 %v490, %v491
        %632 = vadd.xlane.f32.xlu0 %v631
        %v633 = vpop.xlane.xlu0 %632
        %v634 = vadd.f32 %v492, %v493
        %635 = vadd.xlane.f32.xlu0 %v634
        %v636 = vpop.xlane.xlu0 %635
        %v637 = vadd.f32 %v494, %v495
        %638 = vadd.xlane.f32.xlu0 %v637
        %v639 = vpop.xlane.xlu0 %638
        %v640 = vadd.f32 %v496, %v497
        %641 = vadd.xlane.f32.xlu0 %v640
        %v642 = vpop.xlane.xlu0 %641
        %v643 = vadd.f32 %v498, %v499
        %644 = vadd.xlane.f32.xlu0 %v643
        %v645 = vpop.xlane.xlu0 %644
        %v646 = vadd.f32 %v500, %v501
        %647 = vadd.xlane.f32.xlu0 %v646
        %v648 = vpop.xlane.xlu0 %647
        %v649 = vadd.f32 %v502, %v503
        %650 = vadd.xlane.f32.xlu0 %v649
        %v651 = vpop.xlane.xlu0 %650
        %v652 = vadd.f32 %v504, %v505
        %653 = vadd.xlane.f32.xlu0 %v652
        %v654 = vpop.xlane.xlu0 %653
        %v655 = vadd.f32 %v506, %v507
        %656 = vadd.xlane.f32.xlu0 %v655
        %v657 = vpop.xlane.xlu0 %656
        %v658 = vadd.f32 %v508, %v509
        %659 = vadd.xlane.f32.xlu0 %v658
        %v660 = vpop.xlane.xlu0 %659
        %v661 = vadd.f32 %v510, %v511
        %662 = vadd.xlane.f32.xlu0 %v661
        %v663 = vpop.xlane.xlu0 %662
        %v664 = vadd.f32 %v512, %v513
        %665 = vadd.xlane.f32.xlu0 %v664
        %v666 = vpop.xlane.xlu0 %665
        %v667 = vadd.f32 %v514, %v515
        %668 = vadd.xlane.f32.xlu0 %v667
        %v669 = vpop.xlane.xlu0 %668
        %v670 = vadd.f32 %v516, %v517
        %671 = vadd.xlane.f32.xlu0 %v670
        %v672 = vpop.xlane.xlu0 %671
        %v673 = vadd.f32 %v518, %v519
        %674 = vadd.xlane.f32.xlu0 %v673
        %v675 = vpop.xlane.xlu0 %674
        %v676 = vadd.f32 %v520, %v521
        %677 = vadd.xlane.f32.xlu0 %v676
        %v678 = vpop.xlane.xlu0 %677
        %v679 = vadd.f32 %v522, %v523
        %680 = vadd.xlane.f32.xlu0 %v679
        %v681 = vpop.xlane.xlu0 %680
        %v682 = vadd.f32 %v524, %v525
        %683 = vadd.xlane.f32.xlu0 %v682
        %v684 = vpop.xlane.xlu0 %683
        %v685 = vadd.f32 %v526, %v527
        %686 = vadd.xlane.f32.xlu0 %v685
        %v687 = vpop.xlane.xlu0 %686
        %v688 = vadd.f32 %v528, %v529
        %689 = vadd.xlane.f32.xlu0 %v688
        %v690 = vpop.xlane.xlu0 %689
        %v691 = vadd.f32 %v530, %v531
        %692 = vadd.xlane.f32.xlu0 %v691
        %v693 = vpop.xlane.xlu0 %692
        %v694 = vadd.f32 %v532, %v533
        %695 = vadd.xlane.f32.xlu0 %v694
        %v696 = vpop.xlane.xlu0 %695
        %v697 = vadd.f32 %v534, %v535
        %698 = vadd.xlane.f32.xlu0 %v697
        %v699 = vpop.xlane.xlu0 %698
        %v700 = vadd.f32 %v536, %v537
        %701 = vadd.xlane.f32.xlu0 %v700
        %v702 = vpop.xlane.xlu0 %701
        %v703 = vadd.f32 %v538, %v539
        %704 = vadd.xlane.f32.xlu0 %v703
        %v705 = vpop.xlane.xlu0 %704
        %v706 = vadd.f32 %v540, %v541
        %707 = vadd.xlane.f32.xlu0 %v706
        %v708 = vpop.xlane.xlu0 %707
        %v709 = vadd.f32 %v542, %v543
        %710 = vadd.xlane.f32.xlu0 %v709
        %v711 = vpop.xlane.xlu0 %710
        %v712 = vadd.f32 %v544, %v545
        %713 = vadd.xlane.f32.xlu0 %v712
        %v714 = vpop.xlane.xlu0 %713
        %v715 = vadd.f32 %v546, %v547
        %716 = vadd.xlane.f32.xlu0 %v715
        %v717 = vpop.xlane.xlu0 %716
        %v718 = vadd.f32 %v548, %v549
        %719 = vadd.xlane.f32.xlu0 %v718
        %v720 = vpop.xlane.xlu0 %719
        %v721 = vadd.f32 %v550, %v551
        %722 = vadd.xlane.f32.xlu0 %v721
        %v723 = vpop.xlane.xlu0 %722
        %v724 = vadd.f32 %v552, %v553
        %725 = vadd.xlane.f32.xlu0 %v724
        %v726 = vpop.xlane.xlu0 %725
        %v727 = vadd.f32 %v554, %v555
        %728 = vadd.xlane.f32.xlu0 %v727
        %v729 = vpop.xlane.xlu0 %728
        %v730 = vadd.f32 %v556, %v557
        %731 = vadd.xlane.f32.xlu0 %v730
        %v732 = vpop.xlane.xlu0 %731
        %v733 = vadd.f32 %v558, %v559
        %734 = vadd.xlane.f32.xlu0 %v733
        %v735 = vpop.xlane.xlu0 %734
        %v736 = vadd.f32 %v560, %v561
        %737 = vadd.xlane.f32.xlu0 %v736
        %v738 = vpop.xlane.xlu0 %737
        %v739 = vadd.f32 %v562, %v563
        %740 = vadd.xlane.f32.xlu0 %v739
        %v741 = vpop.xlane.xlu0 %740
        %v742 = vadd.f32 %v564, %v565
        %743 = vadd.xlane.f32.xlu0 %v742
        %v744 = vpop.xlane.xlu0 %743
        %v745 = vadd.f32 %v566, %v567
        %746 = vadd.xlane.f32.xlu0 %v745
        %v747 = vpop.xlane.xlu0 %746
        %v748 = vadd.f32 %v568, %v569
        %749 = vadd.xlane.f32.xlu0 %v748
        %v750 = vpop.xlane.xlu0 %749
        %v751 = vadd.f32 %v570, %v571
        %752 = vadd.xlane.f32.xlu0 %v751
        %v753 = vpop.xlane.xlu0 %752
        %v754 = vadd.f32 %v572, %v573
        %755 = vadd.xlane.f32.xlu0 %v754
        %v756 = vpop.xlane.xlu0 %755
        %v757 = vadd.f32 %v574, %v575
        %758 = vadd.xlane.f32.xlu0 %v757
        %v759 = vpop.xlane.xlu0 %758
        %v760 = vadd.f32 %v576, %v577
        %761 = vadd.xlane.f32.xlu0 %v760
        %v762 = vpop.xlane.xlu0 %761
        %v763 = vadd.f32 %v578, %v579
        %764 = vadd.xlane.f32.xlu0 %v763
        %v765 = vpop.xlane.xlu0 %764
        %v766 = vadd.f32 %v580, %v581
        %767 = vadd.xlane.f32.xlu0 %v766
        %v768 = vpop.xlane.xlu0 %767
        %v769 = vadd.f32 %v582, %v583
        %770 = vadd.xlane.f32.xlu0 %v769
        %v771 = vpop.xlane.xlu0 %770
        %v772 = vadd.f32 %v584, %v585
        %773 = vadd.xlane.f32.xlu0 %v772
        %v774 = vpop.xlane.xlu0 %773
        %v775 = vadd.f32 %v586, %v587
        %776 = vadd.xlane.f32.xlu0 %v775
        %v777 = vpop.xlane.xlu0 %776
        %v778 = vadd.f32 %v588, %v589
        %779 = vadd.xlane.f32.xlu0 %v778
        %v780 = vpop.xlane.xlu0 %779
        %v781 = vadd.f32 %v590, %v591
        %782 = vadd.xlane.f32.xlu0 %v781
        %v783 = vpop.xlane.xlu0 %782
        %v784 = vrcp.pop 256.0
        %v785 = vmul.f32 %v594, %v784
        %v786 = vmul.f32 %v597, %v784
        %v787 = vmul.f32 %v600, %v784
        %v788 = vmul.f32 %v603, %v784
        %v789 = vmul.f32 %v606, %v784
        %v790 = vmul.f32 %v609, %v784
        %v791 = vmul.f32 %v612, %v784
        %v792 = vmul.f32 %v615, %v784
        %v793 = vmul.f32 %v618, %v784
        %v794 = vmul.f32 %v621, %v784
        %v795 = vmul.f32 %v624, %v784
        %v796 = vmul.f32 %v627, %v784
        %v797 = vmul.f32 %v630, %v784
        %v798 = vmul.f32 %v633, %v784
        %v799 = vmul.f32 %v636, %v784
        %v800 = vmul.f32 %v639, %v784
        %v801 = vmul.f32 %v642, %v784
        %v802 = vmul.f32 %v645, %v784
        %v803 = vmul.f32 %v648, %v784
        %v804 = vmul.f32 %v651, %v784
        %v805 = vmul.f32 %v654, %v784
        %v806 = vmul.f32 %v657, %v784
        %v807 = vmul.f32 %v660, %v784
        %v808 = vmul.f32 %v663, %v784
        %v809 = vmul.f32 %v666, %v784
        %v810 = vmul.f32 %v669, %v784
        %v811 = vmul.f32 %v672, %v784
        %v812 = vmul.f32 %v675, %v784
        %v813 = vmul.f32 %v678, %v784
        %v814 = vmul.f32 %v681, %v784
        %v815 = vmul.f32 %v684, %v784
        %v816 = vmul.f32 %v687, %v784
        %v817 = vmul.f32 %v690, %v784
        %v818 = vmul.f32 %v693, %v784
        %v819 = vmul.f32 %v696, %v784
        %v820 = vmul.f32 %v699, %v784
        %v821 = vmul.f32 %v702, %v784
        %v822 = vmul.f32 %v705, %v784
        %v823 = vmul.f32 %v708, %v784
        %v824 = vmul.f32 %v711, %v784
        %v825 = vmul.f32 %v714, %v784
        %v826 = vmul.f32 %v717, %v784
        %v827 = vmul.f32 %v720, %v784
        %v828 = vmul.f32 %v723, %v784
        %v829 = vmul.f32 %v726, %v784
        %v830 = vmul.f32 %v729, %v784
        %v831 = vmul.f32 %v732, %v784
        %v832 = vmul.f32 %v735, %v784
        %v833 = vmul.f32 %v738, %v784
        %v834 = vmul.f32 %v741, %v784
        %v835 = vmul.f32 %v744, %v784
        %v836 = vmul.f32 %v747, %v784
        %v837 = vmul.f32 %v750, %v784
        %v838 = vmul.f32 %v753, %v784
        %v839 = vmul.f32 %v756, %v784
        %v840 = vmul.f32 %v759, %v784
        %v841 = vmul.f32 %v762, %v784
        %v842 = vmul.f32 %v765, %v784
        %v843 = vmul.f32 %v768, %v784
        %v844 = vmul.f32 %v771, %v784
        %v845 = vmul.f32 %v774, %v784
        %v846 = vmul.f32 %v777, %v784
        %v847 = vmul.f32 %v780, %v784
        %v848 = vmul.f32 %v783, %v784
        %v849 = vadd.f32 %v785, 1.1920929e-07
        %v850 = vadd.f32 %v786, 1.1920929e-07
        %v851 = vadd.f32 %v787, 1.1920929e-07
        %v852 = vadd.f32 %v788, 1.1920929e-07
        %v853 = vadd.f32 %v789, 1.1920929e-07
        %v854 = vadd.f32 %v790, 1.1920929e-07
        %v855 = vadd.f32 %v791, 1.1920929e-07
        %v856 = vadd.f32 %v792, 1.1920929e-07
        %v857 = vadd.f32 %v793, 1.1920929e-07
        %v858 = vadd.f32 %v794, 1.1920929e-07
        %v859 = vadd.f32 %v795, 1.1920929e-07
        %v860 = vadd.f32 %v796, 1.1920929e-07
        %v861 = vadd.f32 %v797, 1.1920929e-07
        %v862 = vadd.f32 %v798, 1.1920929e-07
        %v863 = vadd.f32 %v799, 1.1920929e-07
        %v864 = vadd.f32 %v800, 1.1920929e-07
        %v865 = vadd.f32 %v801, 1.1920929e-07
        %v866 = vadd.f32 %v802, 1.1920929e-07
        %v867 = vadd.f32 %v803, 1.1920929e-07
        %v868 = vadd.f32 %v804, 1.1920929e-07
        %v869 = vadd.f32 %v805, 1.1920929e-07
        %v870 = vadd.f32 %v806, 1.1920929e-07
        %v871 = vadd.f32 %v807, 1.1920929e-07
        %v872 = vadd.f32 %v808, 1.1920929e-07
        %v873 = vadd.f32 %v809, 1.1920929e-07
        %v874 = vadd.f32 %v810, 1.1920929e-07
        %v875 = vadd.f32 %v811, 1.1920929e-07
        %v876 = vadd.f32 %v812, 1.1920929e-07
        %v877 = vadd.f32 %v813, 1.1920929e-07
        %v878 = vadd.f32 %v814, 1.1920929e-07
        %v879 = vadd.f32 %v815, 1.1920929e-07
        %v880 = vadd.f32 %v816, 1.1920929e-07
        %v881 = vadd.f32 %v817, 1.1920929e-07
        %v882 = vadd.f32 %v818, 1.1920929e-07
        %v883 = vadd.f32 %v819, 1.1920929e-07
        %v884 = vadd.f32 %v820, 1.1920929e-07
        %v885 = vadd.f32 %v821, 1.1920929e-07
        %v886 = vadd.f32 %v822, 1.1920929e-07
        %v887 = vadd.f32 %v823, 1.1920929e-07
        %v888 = vadd.f32 %v824, 1.1920929e-07
        %v889 = vadd.f32 %v825, 1.1920929e-07
        %v890 = vadd.f32 %v826, 1.1920929e-07
        %v891 = vadd.f32 %v827, 1.1920929e-07
        %v892 = vadd.f32 %v828, 1.1920929e-07
        %v893 = vadd.f32 %v829, 1.1920929e-07
        %v894 = vadd.f32 %v830, 1.1920929e-07
        %v895 = vadd.f32 %v831, 1.1920929e-07
        %v896 = vadd.f32 %v832, 1.1920929e-07
        %v897 = vadd.f32 %v833, 1.1920929e-07
        %v898 = vadd.f32 %v834, 1.1920929e-07
        %v899 = vadd.f32 %v835, 1.1920929e-07
        %v900 = vadd.f32 %v836, 1.1920929e-07
        %v901 = vadd.f32 %v837, 1.1920929e-07
        %v902 = vadd.f32 %v838, 1.1920929e-07
        %v903 = vadd.f32 %v839, 1.1920929e-07
        %v904 = vadd.f32 %v840, 1.1920929e-07
        %v905 = vadd.f32 %v841, 1.1920929e-07
        %v906 = vadd.f32 %v842, 1.1920929e-07
        %v907 = vadd.f32 %v843, 1.1920929e-07
        %v908 = vadd.f32 %v844, 1.1920929e-07
        %v909 = vadd.f32 %v845, 1.1920929e-07
        %v910 = vadd.f32 %v846, 1.1920929e-07
        %v911 = vadd.f32 %v847, 1.1920929e-07
        %v912 = vadd.f32 %v848, 1.1920929e-07
        %v913 = vrsqrt.pop %v849
        %v914 = vrsqrt.pop %v850
        %v915 = vrsqrt.pop %v851
        %v916 = vrsqrt.pop %v852
        %v917 = vrsqrt.pop %v853
        %v918 = vrsqrt.pop %v854
        %v919 = vrsqrt.pop %v855
        %v920 = vrsqrt.pop %v856
        %v921 = vrsqrt.pop %v857
        %v922 = vrsqrt.pop %v858
        %v923 = vrsqrt.pop %v859
        %v924 = vrsqrt.pop %v860
        %v925 = vrsqrt.pop %v861
        %v926 = vrsqrt.pop %v862
        %v927 = vrsqrt.pop %v863
        %v928 = vrsqrt.pop %v864
        %v929 = vrsqrt.pop %v865
        %v930 = vrsqrt.pop %v866
        %v931 = vrsqrt.pop %v867
        %v932 = vrsqrt.pop %v868
        %v933 = vrsqrt.pop %v869
        %v934 = vrsqrt.pop %v870
        %v935 = vrsqrt.pop %v871
        %v936 = vrsqrt.pop %v872
        %v937 = vrsqrt.pop %v873
        %v938 = vrsqrt.pop %v874
        %v939 = vrsqrt.pop %v875
        %v940 = vrsqrt.pop %v876
        %v941 = vrsqrt.pop %v877
        %v942 = vrsqrt.pop %v878
        %v943 = vrsqrt.pop %v879
        %v944 = vrsqrt.pop %v880
        %v945 = vrsqrt.pop %v881
        %v946 = vrsqrt.pop %v882
        %v947 = vrsqrt.pop %v883
        %v948 = vrsqrt.pop %v884
        %v949 = vrsqrt.pop %v885
        %v950 = vrsqrt.pop %v886
        %v951 = vrsqrt.pop %v887
        %v952 = vrsqrt.pop %v888
        %v953 = vrsqrt.pop %v889
        %v954 = vrsqrt.pop %v890
        %v955 = vrsqrt.pop %v891
        %v956 = vrsqrt.pop %v892
        %v957 = vrsqrt.pop %v893
        %v958 = vrsqrt.pop %v894
        %v959 = vrsqrt.pop %v895
        %v960 = vrsqrt.pop %v896
        %v961 = vrsqrt.pop %v897
        %v962 = vrsqrt.pop %v898
        %v963 = vrsqrt.pop %v899
        %v964 = vrsqrt.pop %v900
        %v965 = vrsqrt.pop %v901
        %v966 = vrsqrt.pop %v902
        %v967 = vrsqrt.pop %v903
        %v968 = vrsqrt.pop %v904
        %v969 = vrsqrt.pop %v905
        %v970 = vrsqrt.pop %v906
        %v971 = vrsqrt.pop %v907
        %v972 = vrsqrt.pop %v908
        %v973 = vrsqrt.pop %v909
        %v974 = vrsqrt.pop %v910
        %v975 = vrsqrt.pop %v911
        %v976 = vrsqrt.pop %v912
        %v977 = vmul.f32 %v336, %v913
        %v978 = vmul.f32 %v337, %v913
        %v979 = vmul.f32 %v338, %v914
        %v980 = vmul.f32 %v339, %v914
        %v981 = vmul.f32 %v340, %v915
        %v982 = vmul.f32 %v341, %v915
        %v983 = vmul.f32 %v342, %v916
        %v984 = vmul.f32 %v343, %v916
        %v985 = vmul.f32 %v344, %v917
        %v986 = vmul.f32 %v345, %v917
        %v987 = vmul.f32 %v346, %v918
        %v988 = vmul.f32 %v347, %v918
        %v989 = vmul.f32 %v348, %v919
        %v990 = vmul.f32 %v349, %v919
        %v991 = vmul.f32 %v350, %v920
        %v992 = vmul.f32 %v351, %v920
        %v993 = vmul.f32 %v352, %v921
        %v994 = vmul.f32 %v353, %v921
        %v995 = vmul.f32 %v354, %v922
        %v996 = vmul.f32 %v355, %v922
        %v997 = vmul.f32 %v356, %v923
        %v998 = vmul.f32 %v357, %v923
        %v999 = vmul.f32 %v358, %v924
        %v1000 = vmul.f32 %v359, %v924
        %v1001 = vmul.f32 %v360, %v925
        %v1002 = vmul.f32 %v361, %v925
        %v1003 = vmul.f32 %v362, %v926
        %v1004 = vmul.f32 %v363, %v926
        %v1005 = vmul.f32 %v364, %v927
        %v1006 = vmul.f32 %v365, %v927
        %v1007 = vmul.f32 %v366, %v928
        %v1008 = vmul.f32 %v367, %v928
        %v1009 = vmul.f32 %v368, %v929
        %v1010 = vmul.f32 %v369, %v929
        %v1011 = vmul.f32 %v370, %v930
        %v1012 = vmul.f32 %v371, %v930
        %v1013 = vmul.f32 %v372, %v931
        %v1014 = vmul.f32 %v373, %v931
        %v1015 = vmul.f32 %v374, %v932
        %v1016 = vmul.f32 %v375, %v932
        %v1017 = vmul.f32 %v376, %v933
        %v1018 = vmul.f32 %v377, %v933
        %v1019 = vmul.f32 %v378, %v934
        %v1020 = vmul.f32 %v379, %v934
        %v1021 = vmul.f32 %v380, %v935
        %v1022 = vmul.f32 %v381, %v935
        %v1023 = vmul.f32 %v382, %v936
        %v1024 = vmul.f32 %v383, %v936
        %v1025 = vmul.f32 %v384, %v937
        %v1026 = vmul.f32 %v385, %v937
        %v1027 = vmul.f32 %v386, %v938
        %v1028 = vmul.f32 %v387, %v938
        %v1029 = vmul.f32 %v388, %v939
        %v1030 = vmul.f32 %v389, %v939
        %v1031 = vmul.f32 %v390, %v940
        %v1032 = vmul.f32 %v391, %v940
        %v1033 = vmul.f32 %v392, %v941
        %v1034 = vmul.f32 %v393, %v941
        %v1035 = vmul.f32 %v394, %v942
        %v1036 = vmul.f32 %v395, %v942
        %v1037 = vmul.f32 %v396, %v943
        %v1038 = vmul.f32 %v397, %v943
        %v1039 = vmul.f32 %v398, %v944
        %v1040 = vmul.f32 %v399, %v944
        %v1041 = vmul.f32 %v400, %v945
        %v1042 = vmul.f32 %v401, %v945
        %v1043 = vmul.f32 %v402, %v946
        %v1044 = vmul.f32 %v403, %v946
        %v1045 = vmul.f32 %v404, %v947
        %v1046 = vmul.f32 %v405, %v947
        %v1047 = vmul.f32 %v406, %v948
        %v1048 = vmul.f32 %v407, %v948
        %v1049 = vmul.f32 %v408, %v949
        %v1050 = vmul.f32 %v409, %v949
        %v1051 = vmul.f32 %v410, %v950
        %v1052 = vmul.f32 %v411, %v950
        %v1053 = vmul.f32 %v412, %v951
        %v1054 = vmul.f32 %v413, %v951
        %v1055 = vmul.f32 %v414, %v952
        %v1056 = vmul.f32 %v415, %v952
        %v1057 = vmul.f32 %v416, %v953
        %v1058 = vmul.f32 %v417, %v953
        %v1059 = vmul.f32 %v418, %v954
        %v1060 = vmul.f32 %v419, %v954
        %v1061 = vmul.f32 %v420, %v955
        %v1062 = vmul.f32 %v421, %v955
        %v1063 = vmul.f32 %v422, %v956
        %v1064 = vmul.f32 %v423, %v956
        %v1065 = vmul.f32 %v424, %v957
        %v1066 = vmul.f32 %v425, %v957
        %v1067 = vmul.f32 %v426, %v958
        %v1068 = vmul.f32 %v427, %v958
        %v1069 = vmul.f32 %v428, %v959
        %v1070 = vmul.f32 %v429, %v959
        %v1071 = vmul.f32 %v430, %v960
        %v1072 = vmul.f32 %v431, %v960
        %v1073 = vmul.f32 %v432, %v961
        %v1074 = vmul.f32 %v433, %v961
        %v1075 = vmul.f32 %v434, %v962
        %v1076 = vmul.f32 %v435, %v962
        %v1077 = vmul.f32 %v436, %v963
        %v1078 = vmul.f32 %v437, %v963
        %v1079 = vmul.f32 %v438, %v964
        %v1080 = vmul.f32 %v439, %v964
        %v1081 = vmul.f32 %v440, %v965
        %v1082 = vmul.f32 %v441, %v965
        %v1083 = vmul.f32 %v442, %v966
        %v1084 = vmul.f32 %v443, %v966
        %v1085 = vmul.f32 %v444, %v967
        %v1086 = vmul.f32 %v445, %v967
        %v1087 = vmul.f32 %v446, %v968
        %v1088 = vmul.f32 %v447, %v968
        %v1089 = vmul.f32 %v448, %v969
        %v1090 = vmul.f32 %v449, %v969
        %v1091 = vmul.f32 %v450, %v970
        %v1092 = vmul.f32 %v451, %v970
        %v1093 = vmul.f32 %v452, %v971
        %v1094 = vmul.f32 %v453, %v971
        %v1095 = vmul.f32 %v454, %v972
        %v1096 = vmul.f32 %v455, %v972
        %v1097 = vmul.f32 %v456, %v973
        %v1098 = vmul.f32 %v457, %v973
        %v1099 = vmul.f32 %v458, %v974
        %v1100 = vmul.f32 %v459, %v974
        %v1101 = vmul.f32 %v460, %v975
        %v1102 = vmul.f32 %v461, %v975
        %v1103 = vmul.f32 %v462, %v976
        %v1104 = vmul.f32 %v463, %v976
        %v1105 = vld [vmem:[%s270] sm:$0xf]
        %v1106 = vunpack.c.l.bf16 %v1105
        %v1107 = vadd.f32 %v1106, 1.0
        %v1109 = vlaneseq
        %v1110 = vshrl.u32 %v1109, 7
        %v1111 = vsub.s32 0, %v1110
        %v1112 = vrot.slane %v1107, %v1111
        %v1113 = vlaneseq
        %v1114 = vshrl.u32 %v1113, 7
        %v1115 = vsub.s32 4, %v1114
        %v1116 = vrot.slane %v1107, %v1115
        %v1119 = vlaneseq
        %v1120 = vshrl.u32 %v1119, 7
        %v1121 = vsub.s32 0, %v1120
        %v1122 = vrot.slane %v1112, %v1121
        %v1123 = vlaneseq
        %v1124 = vshrl.u32 %v1123, 7
        %v1125 = vsub.s32 0, %v1124
        %v1126 = vrot.slane %v1116, %v1125
        %v1127 = vmul.f32 %v977, %v1122
        %v1128 = vmul.f32 %v978, %v1126
        %v1129 = vmul.f32 %v979, %v1122
        %v1130 = vmul.f32 %v980, %v1126
        %v1131 = vmul.f32 %v981, %v1122
        %v1132 = vmul.f32 %v982, %v1126
        %v1133 = vmul.f32 %v983, %v1122
        %v1134 = vmul.f32 %v984, %v1126
        %v1135 = vmul.f32 %v985, %v1122
        %v1136 = vmul.f32 %v986, %v1126
        %v1137 = vmul.f32 %v987, %v1122
        %v1138 = vmul.f32 %v988, %v1126
        %v1139 = vmul.f32 %v989, %v1122
        %v1140 = vmul.f32 %v990, %v1126
        %v1141 = vmul.f32 %v991, %v1122
        %v1142 = vmul.f32 %v992, %v1126
        %v1143 = vmul.f32 %v993, %v1122
        %v1144 = vmul.f32 %v994, %v1126
        %v1145 = vmul.f32 %v995, %v1122
        %v1146 = vmul.f32 %v996, %v1126
        %v1147 = vmul.f32 %v997, %v1122
        %v1148 = vmul.f32 %v998, %v1126
        %v1149 = vmul.f32 %v999, %v1122
        %v1150 = vmul.f32 %v1000, %v1126
        %v1151 = vmul.f32 %v1001, %v1122
        %v1152 = vmul.f32 %v1002, %v1126
        %v1153 = vmul.f32 %v1003, %v1122
        %v1154 = vmul.f32 %v1004, %v1126
        %v1155 = vmul.f32 %v1005, %v1122
        %v1156 = vmul.f32 %v1006, %v1126
        %v1157 = vmul.f32 %v1007, %v1122
        %v1158 = vmul.f32 %v1008, %v1126
        %v1159 = vmul.f32 %v1009, %v1122
        %v1160 = vmul.f32 %v1010, %v1126
        %v1161 = vmul.f32 %v1011, %v1122
        %v1162 = vmul.f32 %v1012, %v1126
        %v1163 = vmul.f32 %v1013, %v1122
        %v1164 = vmul.f32 %v1014, %v1126
        %v1165 = vmul.f32 %v1015, %v1122
        %v1166 = vmul.f32 %v1016, %v1126
        %v1167 = vmul.f32 %v1017, %v1122
        %v1168 = vmul.f32 %v1018, %v1126
        %v1169 = vmul.f32 %v1019, %v1122
        %v1170 = vmul.f32 %v1020, %v1126
        %v1171 = vmul.f32 %v1021, %v1122
        %v1172 = vmul.f32 %v1022, %v1126
        %v1173 = vmul.f32 %v1023, %v1122
        %v1174 = vmul.f32 %v1024, %v1126
        %v1175 = vmul.f32 %v1025, %v1122
        %v1176 = vmul.f32 %v1026, %v1126
        %v1177 = vmul.f32 %v1027, %v1122
        %v1178 = vmul.f32 %v1028, %v1126
        %v1179 = vmul.f32 %v1029, %v1122
        %v1180 = vmul.f32 %v1030, %v1126
        %v1181 = vmul.f32 %v1031, %v1122
        %v1182 = vmul.f32 %v1032, %v1126
        %v1183 = vmul.f32 %v1033, %v1122
        %v1184 = vmul.f32 %v1034, %v1126
        %v1185 = vmul.f32 %v1035, %v1122
        %v1186 = vmul.f32 %v1036, %v1126
        %v1187 = vmul.f32 %v1037, %v1122
        %v1188 = vmul.f32 %v1038, %v1126
        %v1189 = vmul.f32 %v1039, %v1122
        %v1190 = vmul.f32 %v1040, %v1126
        %v1191 = vmul.f32 %v1041, %v1122
        %v1192 = vmul.f32 %v1042, %v1126
        %v1193 = vmul.f32 %v1043, %v1122
        %v1194 = vmul.f32 %v1044, %v1126
        %v1195 = vmul.f32 %v1045, %v1122
        %v1196 = vmul.f32 %v1046, %v1126
        %v1197 = vmul.f32 %v1047, %v1122
        %v1198 = vmul.f32 %v1048, %v1126
        %v1199 = vmul.f32 %v1049, %v1122
        %v1200 = vmul.f32 %v1050, %v1126
        %v1201 = vmul.f32 %v1051, %v1122
        %v1202 = vmul.f32 %v1052, %v1126
        %v1203 = vmul.f32 %v1053, %v1122
        %v1204 = vmul.f32 %v1054, %v1126
        %v1205 = vmul.f32 %v1055, %v1122
        %v1206 = vmul.f32 %v1056, %v1126
        %v1207 = vmul.f32 %v1057, %v1122
        %v1208 = vmul.f32 %v1058, %v1126
        %v1209 = vmul.f32 %v1059, %v1122
        %v1210 = vmul.f32 %v1060, %v1126
        %v1211 = vmul.f32 %v1061, %v1122
        %v1212 = vmul.f32 %v1062, %v1126
        %v1213 = vmul.f32 %v1063, %v1122
        %v1214 = vmul.f32 %v1064, %v1126
        %v1215 = vmul.f32 %v1065, %v1122
        %v1216 = vmul.f32 %v1066, %v1126
        %v1217 = vmul.f32 %v1067, %v1122
        %v1218 = vmul.f32 %v1068, %v1126
        %v1219 = vmul.f32 %v1069, %v1122
        %v1220 = vmul.f32 %v1070, %v1126
        %v1221 = vmul.f32 %v1071, %v1122
        %v1222 = vmul.f32 %v1072, %v1126
        %v1223 = vmul.f32 %v1073, %v1122
        %v1224 = vmul.f32 %v1074, %v1126
        %v1225 = vmul.f32 %v1075, %v1122
        %v1226 = vmul.f32 %v1076, %v1126
        %v1227 = vmul.f32 %v1077, %v1122
        %v1228 = vmul.f32 %v1078, %v1126
        %v1229 = vmul.f32 %v1079, %v1122
        %v1230 = vmul.f32 %v1080, %v1126
        %v1231 = vmul.f32 %v1081, %v1122
        %v1232 = vmul.f32 %v1082, %v1126
        %v1233 = vmul.f32 %v1083, %v1122
        %v1234 = vmul.f32 %v1084, %v1126
        %v1235 = vmul.f32 %v1085, %v1122
        %v1236 = vmul.f32 %v1086, %v1126
        %v1237 = vmul.f32 %v1087, %v1122
        %v1238 = vmul.f32 %v1088, %v1126
        %v1239 = vmul.f32 %v1089, %v1122
        %v1240 = vmul.f32 %v1090, %v1126
        %v1241 = vmul.f32 %v1091, %v1122
        %v1242 = vmul.f32 %v1092, %v1126
        %v1243 = vmul.f32 %v1093, %v1122
        %v1244 = vmul.f32 %v1094, %v1126
        %v1245 = vmul.f32 %v1095, %v1122
        %v1246 = vmul.f32 %v1096, %v1126
        %v1247 = vmul.f32 %v1097, %v1122
        %v1248 = vmul.f32 %v1098, %v1126
        %v1249 = vmul.f32 %v1099, %v1122
        %v1250 = vmul.f32 %v1100, %v1126
        %v1251 = vmul.f32 %v1101, %v1122
        %v1252 = vmul.f32 %v1102, %v1126
        %v1253 = vmul.f32 %v1103, %v1122
        %v1254 = vmul.f32 %v1104, %v1126
        %v1256 = vlaneseq
        %v1257 = vshrl.u32 %v1256, 7
        %v1258 = vsub.s32 1, %v1257
        %v1259 = vrot.slane %v1106, %v1258
        %v1260 = vlaneseq
        %v1261 = vshrl.u32 %v1260, 7
        %v1262 = vsub.s32 5, %v1261
        %v1263 = vrot.slane %v1106, %v1262
        %v1266 = vlaneseq
        %v1267 = vshrl.u32 %v1266, 7
        %v1268 = vsub.s32 1, %v1267
        %v1269 = vrot.slane %v1259, %v1268
        %v1270 = vlaneseq
        %v1271 = vshrl.u32 %v1270, 7
        %v1272 = vsub.s32 1, %v1271
        %v1273 = vrot.slane %v1263, %v1272
        %v1274 = vadd.f32 %v1127, %v1269
        %v1275 = vadd.f32 %v1128, %v1273
        %v1276 = vadd.f32 %v1129, %v1269
        %v1277 = vadd.f32 %v1130, %v1273
        %v1278 = vadd.f32 %v1131, %v1269
        %v1279 = vadd.f32 %v1132, %v1273
        %v1280 = vadd.f32 %v1133, %v1269
        %v1281 = vadd.f32 %v1134, %v1273
        %v1282 = vadd.f32 %v1135, %v1269
        %v1283 = vadd.f32 %v1136, %v1273
        %v1284 = vadd.f32 %v1137, %v1269
        %v1285 = vadd.f32 %v1138, %v1273
        %v1286 = vadd.f32 %v1139, %v1269
        %v1287 = vadd.f32 %v1140, %v1273
        %v1288 = vadd.f32 %v1141, %v1269
        %v1289 = vadd.f32 %v1142, %v1273
        %v1290 = vadd.f32 %v1143, %v1269
        %v1291 = vadd.f32 %v1144, %v1273
        %v1292 = vadd.f32 %v1145, %v1269
        %v1293 = vadd.f32 %v1146, %v1273
        %v1294 = vadd.f32 %v1147, %v1269
        %v1295 = vadd.f32 %v1148, %v1273
        %v1296 = vadd.f32 %v1149, %v1269
        %v1297 = vadd.f32 %v1150, %v1273
        %v1298 = vadd.f32 %v1151, %v1269
        %v1299 = vadd.f32 %v1152, %v1273
        %v1300 = vadd.f32 %v1153, %v1269
        %v1301 = vadd.f32 %v1154, %v1273
        %v1302 = vadd.f32 %v1155, %v1269
        %v1303 = vadd.f32 %v1156, %v1273
        %v1304 = vadd.f32 %v1157, %v1269
        %v1305 = vadd.f32 %v1158, %v1273
        %v1306 = vadd.f32 %v1159, %v1269
        %v1307 = vadd.f32 %v1160, %v1273
        %v1308 = vadd.f32 %v1161, %v1269
        %v1309 = vadd.f32 %v1162, %v1273
        %v1310 = vadd.f32 %v1163, %v1269
        %v1311 = vadd.f32 %v1164, %v1273
        %v1312 = vadd.f32 %v1165, %v1269
        %v1313 = vadd.f32 %v1166, %v1273
        %v1314 = vadd.f32 %v1167, %v1269
        %v1315 = vadd.f32 %v1168, %v1273
        %v1316 = vadd.f32 %v1169, %v1269
        %v1317 = vadd.f32 %v1170, %v1273
        %v1318 = vadd.f32 %v1171, %v1269
        %v1319 = vadd.f32 %v1172, %v1273
        %v1320 = vadd.f32 %v1173, %v1269
        %v1321 = vadd.f32 %v1174, %v1273
        %v1322 = vadd.f32 %v1175, %v1269
        %v1323 = vadd.f32 %v1176, %v1273
        %v1324 = vadd.f32 %v1177, %v1269
        %v1325 = vadd.f32 %v1178, %v1273
        %v1326 = vadd.f32 %v1179, %v1269
        %v1327 = vadd.f32 %v1180, %v1273
        %v1328 = vadd.f32 %v1181, %v1269
        %v1329 = vadd.f32 %v1182, %v1273
        %v1330 = vadd.f32 %v1183, %v1269
        %v1331 = vadd.f32 %v1184, %v1273
        %v1332 = vadd.f32 %v1185, %v1269
        %v1333 = vadd.f32 %v1186, %v1273
        %v1334 = vadd.f32 %v1187, %v1269
        %v1335 = vadd.f32 %v1188, %v1273
        %v1336 = vadd.f32 %v1189, %v1269
        %v1337 = vadd.f32 %v1190, %v1273
        %v1338 = vadd.f32 %v1191, %v1269
        %v1339 = vadd.f32 %v1192, %v1273
        %v1340 = vadd.f32 %v1193, %v1269
        %v1341 = vadd.f32 %v1194, %v1273
        %v1342 = vadd.f32 %v1195, %v1269
        %v1343 = vadd.f32 %v1196, %v1273
        %v1344 = vadd.f32 %v1197, %v1269
        %v1345 = vadd.f32 %v1198, %v1273
        %v1346 = vadd.f32 %v1199, %v1269
        %v1347 = vadd.f32 %v1200, %v1273
        %v1348 = vadd.f32 %v1201, %v1269
        %v1349 = vadd.f32 %v1202, %v1273
        %v1350 = vadd.f32 %v1203, %v1269
        %v1351 = vadd.f32 %v1204, %v1273
        %v1352 = vadd.f32 %v1205, %v1269
        %v1353 = vadd.f32 %v1206, %v1273
        %v1354 = vadd.f32 %v1207, %v1269
        %v1355 = vadd.f32 %v1208, %v1273
        %v1356 = vadd.f32 %v1209, %v1269
        %v1357 = vadd.f32 %v1210, %v1273
        %v1358 = vadd.f32 %v1211, %v1269
        %v1359 = vadd.f32 %v1212, %v1273
        %v1360 = vadd.f32 %v1213, %v1269
        %v1361 = vadd.f32 %v1214, %v1273
        %v1362 = vadd.f32 %v1215, %v1269
        %v1363 = vadd.f32 %v1216, %v1273
        %v1364 = vadd.f32 %v1217, %v1269
        %v1365 = vadd.f32 %v1218, %v1273
        %v1366 = vadd.f32 %v1219, %v1269
        %v1367 = vadd.f32 %v1220, %v1273
        %v1368 = vadd.f32 %v1221, %v1269
        %v1369 = vadd.f32 %v1222, %v1273
        %v1370 = vadd.f32 %v1223, %v1269
        %v1371 = vadd.f32 %v1224, %v1273
        %v1372 = vadd.f32 %v1225, %v1269
        %v1373 = vadd.f32 %v1226, %v1273
        %v1374 = vadd.f32 %v1227, %v1269
        %v1375 = vadd.f32 %v1228, %v1273
        %v1376 = vadd.f32 %v1229, %v1269
        %v1377 = vadd.f32 %v1230, %v1273
        %v1378 = vadd.f32 %v1231, %v1269
        %v1379 = vadd.f32 %v1232, %v1273
        %v1380 = vadd.f32 %v1233, %v1269
        %v1381 = vadd.f32 %v1234, %v1273
        %v1382 = vadd.f32 %v1235, %v1269
        %v1383 = vadd.f32 %v1236, %v1273
        %v1384 = vadd.f32 %v1237, %v1269
        %v1385 = vadd.f32 %v1238, %v1273
        %v1386 = vadd.f32 %v1239, %v1269
        %v1387 = vadd.f32 %v1240, %v1273
        %v1388 = vadd.f32 %v1241, %v1269
        %v1389 = vadd.f32 %v1242, %v1273
        %v1390 = vadd.f32 %v1243, %v1269
        %v1391 = vadd.f32 %v1244, %v1273
        %v1392 = vadd.f32 %v1245, %v1269
        %v1393 = vadd.f32 %v1246, %v1273
        %v1394 = vadd.f32 %v1247, %v1269
        %v1395 = vadd.f32 %v1248, %v1273
        %v1396 = vadd.f32 %v1249, %v1269
        %v1397 = vadd.f32 %v1250, %v1273
        %v1398 = vadd.f32 %v1251, %v1269
        %v1399 = vadd.f32 %v1252, %v1273
        %v1400 = vadd.f32 %v1253, %v1269
        %v1401 = vadd.f32 %v1254, %v1273
        %v1402 = vpack.c.bf16 %v1276, %v1274
        %v1403 = vpack.c.bf16 %v1277, %v1275
        %v1404 = vpack.c.bf16 %v1280, %v1278
        %v1405 = vpack.c.bf16 %v1281, %v1279
        %v1406 = vpack.c.bf16 %v1284, %v1282
        %v1407 = vpack.c.bf16 %v1285, %v1283
        %v1408 = vpack.c.bf16 %v1288, %v1286
        %v1409 = vpack.c.bf16 %v1289, %v1287
        %v1410 = vpack.c.bf16 %v1292, %v1290
        %v1411 = vpack.c.bf16 %v1293, %v1291
        %v1412 = vpack.c.bf16 %v1296, %v1294
        %v1413 = vpack.c.bf16 %v1297, %v1295
        %v1414 = vpack.c.bf16 %v1300, %v1298
        %v1415 = vpack.c.bf16 %v1301, %v1299
        %v1416 = vpack.c.bf16 %v1304, %v1302
        %v1417 = vpack.c.bf16 %v1305, %v1303
        %v1418 = vpack.c.bf16 %v1308, %v1306
        %v1419 = vpack.c.bf16 %v1309, %v1307
        %v1420 = vpack.c.bf16 %v1312, %v1310
        %v1421 = vpack.c.bf16 %v1313, %v1311
        %v1422 = vpack.c.bf16 %v1316, %v1314
        %v1423 = vpack.c.bf16 %v1317, %v1315
        %v1424 = vpack.c.bf16 %v1320, %v1318
        %v1425 = vpack.c.bf16 %v1321, %v1319
        %v1426 = vpack.c.bf16 %v1324, %v1322
        %v1427 = vpack.c.bf16 %v1325, %v1323
        %v1428 = vpack.c.bf16 %v1328, %v1326
        %v1429 = vpack.c.bf16 %v1329, %v1327
        %v1430 = vpack.c.bf16 %v1332, %v1330
        %v1431 = vpack.c.bf16 %v1333, %v1331
        %v1432 = vpack.c.bf16 %v1336, %v1334
        %v1433 = vpack.c.bf16 %v1337, %v1335
        %v1434 = vpack.c.bf16 %v1340, %v1338
        %v1435 = vpack.c.bf16 %v1341, %v1339
        %v1436 = vpack.c.bf16 %v1344, %v1342
        %v1437 = vpack.c.bf16 %v1345, %v1343
        %v1438 = vpack.c.bf16 %v1348, %v1346
        %v1439 = vpack.c.bf16 %v1349, %v1347
        %v1440 = vpack.c.bf16 %v1352, %v1350
        %v1441 = vpack.c.bf16 %v1353, %v1351
        %v1442 = vpack.c.bf16 %v1356, %v1354
        %v1443 = vpack.c.bf16 %v1357, %v1355
        %v1444 = vpack.c.bf16 %v1360, %v1358
        %v1445 = vpack.c.bf16 %v1361, %v1359
        %v1446 = vpack.c.bf16 %v1364, %v1362
        %v1447 = vpack.c.bf16 %v1365, %v1363
        %v1448 = vpack.c.bf16 %v1368, %v1366
        %v1449 = vpack.c.bf16 %v1369, %v1367
        %v1450 = vpack.c.bf16 %v1372, %v1370
        %v1451 = vpack.c.bf16 %v1373, %v1371
        %v1452 = vpack.c.bf16 %v1376, %v1374
        %v1453 = vpack.c.bf16 %v1377, %v1375
        %v1454 = vpack.c.bf16 %v1380, %v1378
        %v1455 = vpack.c.bf16 %v1381, %v1379
        %v1456 = vpack.c.bf16 %v1384, %v1382
        %v1457 = vpack.c.bf16 %v1385, %v1383
        %v1458 = vpack.c.bf16 %v1388, %v1386
        %v1459 = vpack.c.bf16 %v1389, %v1387
        %v1460 = vpack.c.bf16 %v1392, %v1390
        %v1461 = vpack.c.bf16 %v1393, %v1391
        %v1462 = vpack.c.bf16 %v1396, %v1394
        %v1463 = vpack.c.bf16 %v1397, %v1395
        %v1464 = vpack.c.bf16 %v1400, %v1398
        %v1465 = vpack.c.bf16 %v1401, %v1399
        %v1466 = vld [vmem:[#allocation5] sm:$0xff]
        %v1467 = vld [vmem:[#allocation5 + $0x8] sm:$0xff]
        %v1468 = vld [vmem:[#allocation5 + $0x10] sm:$0xff]
        %v1469 = vld [vmem:[#allocation5 + $0x18] sm:$0xff]
        %v1470 = vld [vmem:[#allocation5 + $0x20] sm:$0xff]
        %v1471 = vld [vmem:[#allocation5 + $0x28] sm:$0xff]
        %v1472 = vld [vmem:[#allocation5 + $0x30] sm:$0xff]
        %v1473 = vld [vmem:[#allocation5 + $0x38] sm:$0xff]
        %v1474 = vld [vmem:[#allocation5 + $0x40] sm:$0xff]
        %v1475 = vld [vmem:[#allocation5 + $0x48] sm:$0xff]
        %v1476 = vld [vmem:[#allocation5 + $0x50] sm:$0xff]
        %v1477 = vld [vmem:[#allocation5 + $0x58] sm:$0xff]
        %v1478 = vld [vmem:[#allocation5 + $0x60] sm:$0xff]
        %v1479 = vld [vmem:[#allocation5 + $0x68] sm:$0xff]
        %v1480 = vld [vmem:[#allocation5 + $0x70] sm:$0xff]
        %v1481 = vld [vmem:[#allocation5 + $0x78] sm:$0xff]
        %v1482 = vld [vmem:[#allocation5 + $0x80] sm:$0xff]
        %v1483 = vld [vmem:[#allocation5 + $0x88] sm:$0xff]
        %v1484 = vld [vmem:[#allocation5 + $0x90] sm:$0xff]
        %v1485 = vld [vmem:[#allocation5 + $0x98] sm:$0xff]
        %v1486 = vld [vmem:[#allocation5 + $0xa0] sm:$0xff]
        %v1487 = vld [vmem:[#allocation5 + $0xa8] sm:$0xff]
        %v1488 = vld [vmem:[#allocation5 + $0xb0] sm:$0xff]
        %v1489 = vld [vmem:[#allocation5 + $0xb8] sm:$0xff]
        %v1490 = vld [vmem:[#allocation5 + $0xc0] sm:$0xff]
        %v1491 = vld [vmem:[#allocation5 + $0xc8] sm:$0xff]
        %v1492 = vld [vmem:[#allocation5 + $0xd0] sm:$0xff]
        %v1493 = vld [vmem:[#allocation5 + $0xd8] sm:$0xff]
        %v1494 = vld [vmem:[#allocation5 + $0xe0] sm:$0xff]
        %v1495 = vld [vmem:[#allocation5 + $0xe8] sm:$0xff]
        %v1496 = vld [vmem:[#allocation5 + $0xf0] sm:$0xff]
        %v1497 = vld [vmem:[#allocation5 + $0xf8] sm:$0xff]
        %v1498 = vld [vmem:[%s3] sm:$0x3]
        %v1499 = vunpack.c.l.bf16 %v1498
        %v1501 = vlaneseq
        %v1502 = vshrl.u32 %v1501, 7
        %v1503 = vsub.s32 0, %v1502
        %v1504 = vrot.slane %v1499, %v1503
        %v1505 = vlaneseq
        %v1506 = vshrl.u32 %v1505, 7
        %v1507 = vsub.s32 2, %v1506
        %v1508 = vrot.slane %v1499, %v1507
        %v1511 = vlaneseq
        %v1512 = vshrl.u32 %v1511, 7
        %v1513 = vsub.s32 0, %v1512
        %v1514 = vrot.slane %v1504, %v1513
        %v1515 = vlaneseq
        %v1516 = vshrl.u32 %v1515, 7
        %v1517 = vsub.s32 0, %v1516
        %v1518 = vrot.slane %v1508, %v1517
        %v1551 = vunpack.c.l.b16 %v1466
        %v1552 = vunpack.c.h.b16 %v1466
        %v1553 = vunpack.c.l.b16 %v1467
        %v1554 = vunpack.c.h.b16 %v1467
        %v1555 = vunpack.c.l.b16 %v1468
        %v1556 = vunpack.c.h.b16 %v1468
        %v1557 = vunpack.c.l.b16 %v1469
        %v1558 = vunpack.c.h.b16 %v1469
        %v1559 = vunpack.c.l.b16 %v1470
        %v1560 = vunpack.c.h.b16 %v1470
        %v1561 = vunpack.c.l.b16 %v1471
        %v1562 = vunpack.c.h.b16 %v1471
        %v1563 = vunpack.c.l.b16 %v1472
        %v1564 = vunpack.c.h.b16 %v1472
        %v1565 = vunpack.c.l.b16 %v1473
        %v1566 = vunpack.c.h.b16 %v1473
        %v1567 = vunpack.c.l.b16 %v1474
        %v1568 = vunpack.c.h.b16 %v1474
        %v1569 = vunpack.c.l.b16 %v1475
        %v1570 = vunpack.c.h.b16 %v1475
        %v1571 = vunpack.c.l.b16 %v1476
        %v1572 = vunpack.c.h.b16 %v1476
        %v1573 = vunpack.c.l.b16 %v1477
        %v1574 = vunpack.c.h.b16 %v1477
        %v1575 = vunpack.c.l.b16 %v1478
        %v1576 = vunpack.c.h.b16 %v1478
        %v1577 = vunpack.c.l.b16 %v1479
        %v1578 = vunpack.c.h.b16 %v1479
        %v1579 = vunpack.c.l.b16 %v1480
        %v1580 = vunpack.c.h.b16 %v1480
        %v1581 = vunpack.c.l.b16 %v1481
        %v1582 = vunpack.c.h.b16 %v1481
        %v1583 = vunpack.c.l.b16 %v1482
        %v1584 = vunpack.c.h.b16 %v1482
        %v1585 = vunpack.c.l.b16 %v1483
        %v1586 = vunpack.c.h.b16 %v1483
        %v1587 = vunpack.c.l.b16 %v1484
        %v1588 = vunpack.c.h.b16 %v1484
        %v1589 = vunpack.c.l.b16 %v1485
        %v1590 = vunpack.c.h.b16 %v1485
        %v1591 = vunpack.c.l.b16 %v1486
        %v1592 = vunpack.c.h.b16 %v1486
        %v1593 = vunpack.c.l.b16 %v1487
        %v1594 = vunpack.c.h.b16 %v1487
        %v1595 = vunpack.c.l.b16 %v1488
        %v1596 = vunpack.c.h.b16 %v1488
        %v1597 = vunpack.c.l.b16 %v1489
        %v1598 = vunpack.c.h.b16 %v1489
        %v1599 = vunpack.c.l.b16 %v1490
        %v1600 = vunpack.c.h.b16 %v1490
        %v1601 = vunpack.c.l.b16 %v1491
        %v1602 = vunpack.c.h.b16 %v1491
        %v1603 = vunpack.c.l.b16 %v1492
        %v1604 = vunpack.c.h.b16 %v1492
        %v1605 = vunpack.c.l.b16 %v1493
        %v1606 = vunpack.c.h.b16 %v1493
        %v1607 = vunpack.c.l.b16 %v1494
        %v1608 = vunpack.c.h.b16 %v1494
        %v1609 = vunpack.c.l.b16 %v1495
        %v1610 = vunpack.c.h.b16 %v1495
        %v1611 = vunpack.c.l.b16 %v1496
        %v1612 = vunpack.c.h.b16 %v1496
        %v1613 = vunpack.c.l.b16 %v1497
        %v1614 = vunpack.c.h.b16 %v1497
        %v1615 = vpack.c.b16 %v1553, %v1551
        %v1616 = vpack.c.b16 %v1554, %v1552
        %v1617 = vpack.c.b16 %v1557, %v1555
        %v1618 = vpack.c.b16 %v1558, %v1556
        %v1619 = vpack.c.b16 %v1561, %v1559
        %v1620 = vpack.c.b16 %v1562, %v1560
        %v1621 = vpack.c.b16 %v1565, %v1563
        %v1622 = vpack.c.b16 %v1566, %v1564
        %v1623 = vpack.c.b16 %v1569, %v1567
        %v1624 = vpack.c.b16 %v1570, %v1568
        %v1625 = vpack.c.b16 %v1573, %v1571
        %v1626 = vpack.c.b16 %v1574, %v1572
        %v1627 = vpack.c.b16 %v1577, %v1575
        %v1628 = vpack.c.b16 %v1578, %v1576
        %v1629 = vpack.c.b16 %v1581, %v1579
        %v1630 = vpack.c.b16 %v1582, %v1580
        %v1631 = vpack.c.b16 %v1585, %v1583
        %v1632 = vpack.c.b16 %v1586, %v1584
        %v1633 = vpack.c.b16 %v1589, %v1587
        %v1634 = vpack.c.b16 %v1590, %v1588
        %v1635 = vpack.c.b16 %v1593, %v1591
        %v1636 = vpack.c.b16 %v1594, %v1592
        %v1637 = vpack.c.b16 %v1597, %v1595
        %v1638 = vpack.c.b16 %v1598, %v1596
        %v1639 = vpack.c.b16 %v1601, %v1599
        %v1640 = vpack.c.b16 %v1602, %v1600
        %v1641 = vpack.c.b16 %v1605, %v1603
        %v1642 = vpack.c.b16 %v1606, %v1604
        %v1643 = vpack.c.b16 %v1609, %v1607
        %v1644 = vpack.c.b16 %v1610, %v1608
        %v1645 = vpack.c.b16 %v1613, %v1611
        %v1646 = vpack.c.b16 %v1614, %v1612
        %1679 = vmatprep.subr.bf16.mxu0 %v1630
        %1680 = vmatpush1.bf16.msra.mxu0 %v1629
        %1681 = vmatprep.subr.bf16.mxu0 %v1628
        %1682 = vmatpush1.bf16.msra.mxu0 %v1627
        %1683 = vmatprep.subr.bf16.mxu0 %v1626
        %1684 = vmatpush1.bf16.msra.mxu0 %v1625
        %1685 = vmatprep.subr.bf16.mxu0 %v1624
        %1686 = vmatpush1.bf16.msra.mxu0 %v1623
        %1687 = vmatprep.subr.bf16.mxu0 %v1622
        %1688 = vmatpush1.bf16.msra.mxu0 %v1621
        %1689 = vmatprep.subr.bf16.mxu0 %v1620
        %1690 = vmatpush1.bf16.msra.mxu0 %v1619
        %1691 = vmatprep.subr.bf16.mxu0 %v1618
        %1692 = vmatpush1.bf16.msra.mxu0 %v1617
        %1693 = vmatprep.subr.bf16.mxu0 %v1616
        %1694 = vmatpush1.bf16.msra.mxu0 %v1615
        %1695 = vmatprep.subr.bf16.mxu0 %v1646
        %1696 = vmatpush2.bf16.msra.mxu0 %v1645
        %1697 = vmatprep.subr.bf16.mxu0 %v1644
        %1698 = vmatpush2.bf16.msra.mxu0 %v1643
        %1699 = vmatprep.subr.bf16.mxu0 %v1642
        %1700 = vmatpush2.bf16.msra.mxu0 %v1641
        %1701 = vmatprep.subr.bf16.mxu0 %v1640
        %1702 = vmatpush2.bf16.msra.mxu0 %v1639
        %1703 = vmatprep.subr.bf16.mxu0 %v1638
        %1704 = vmatpush2.bf16.msra.mxu0 %v1637
        %1705 = vmatprep.subr.bf16.mxu0 %v1636
        %1706 = vmatpush2.bf16.msra.mxu0 %v1635
        %1707 = vmatprep.subr.bf16.mxu0 %v1634
        %1708 = vmatpush2.bf16.msra.mxu0 %v1633
        %1709 = vmatprep.subr.bf16.mxu0 %v1632
        %1710 = vmatpush2.bf16.msra.mxu0 %v1631
        %1711 = vmatprep.mubr.bf16.mxu0 %v1403
        %1712 = vmatmul.mubr.bf16.gmra.mxu0 %v1402
        %v1713 = vpop.f32.mrf.mxu0
        %v1714 = vadd.f32 %v1514, %v1713
        %v1715 = vpop.f32.mrf.mxu0
        %v1716 = vadd.f32 %v1518, %v1715
        %v1717 = vpop.f32.mrf.mxu0
        %v1718 = vadd.f32 %v1514, %v1717
        %v1719 = vpop.f32.mrf.mxu0
        %v1720 = vadd.f32 %v1518, %v1719
        %1721 = vmatprep.mubr.bf16.mxu0 %v1405
        %1722 = vmatmul.mubr.bf16.gmra.mxu0 %v1404
        %v1723 = vpop.f32.mrf.mxu0
        %v1724 = vadd.f32 %v1514, %v1723
        %v1725 = vpop.f32.mrf.mxu0
        %v1726 = vadd.f32 %v1518, %v1725
        %v1727 = vpop.f32.mrf.mxu0
        %v1728 = vadd.f32 %v1514, %v1727
        %v1729 = vpop.f32.mrf.mxu0
        %v1730 = vadd.f32 %v1518, %v1729
        %1731 = vmatprep.mubr.bf16.mxu0 %v1407
        %1732 = vmatmul.mubr.bf16.gmra.mxu0 %v1406
        %v1733 = vpop.f32.mrf.mxu0
        %v1734 = vadd.f32 %v1514, %v1733
        %v1735 = vpop.f32.mrf.mxu0
        %v1736 = vadd.f32 %v1518, %v1735
        %v1737 = vpop.f32.mrf.mxu0
        %v1738 = vadd.f32 %v1514, %v1737
        %v1739 = vpop.f32.mrf.mxu0
        %v1740 = vadd.f32 %v1518, %v1739
        %1741 = vmatprep.mubr.bf16.mxu0 %v1409
        %1742 = vmatmul.mubr.bf16.gmra.mxu0 %v1408
        %v1743 = vpop.f32.mrf.mxu0
        %v1744 = vadd.f32 %v1514, %v1743
        %v1745 = vpop.f32.mrf.mxu0
        %v1746 = vadd.f32 %v1518, %v1745
        %v1747 = vpop.f32.mrf.mxu0
        %v1748 = vadd.f32 %v1514, %v1747
        %v1749 = vpop.f32.mrf.mxu0
        %v1750 = vadd.f32 %v1518, %v1749
        %1751 = vmatprep.mubr.bf16.mxu0 %v1411
        %1752 = vmatmul.mubr.bf16.gmra.mxu0 %v1410
        %v1753 = vpop.f32.mrf.mxu0
        %v1754 = vadd.f32 %v1514, %v1753
        %v1755 = vpop.f32.mrf.mxu0
        %v1756 = vadd.f32 %v1518, %v1755
        %v1757 = vpop.f32.mrf.mxu0
        %v1758 = vadd.f32 %v1514, %v1757
        %v1759 = vpop.f32.mrf.mxu0
        %v1760 = vadd.f32 %v1518, %v1759
        %1761 = vmatprep.mubr.bf16.mxu0 %v1413
        %1762 = vmatmul.mubr.bf16.gmra.mxu0 %v1412
        %v1763 = vpop.f32.mrf.mxu0
        %v1764 = vadd.f32 %v1514, %v1763
        %v1765 = vpop.f32.mrf.mxu0
        %v1766 = vadd.f32 %v1518, %v1765
        %v1767 = vpop.f32.mrf.mxu0
        %v1768 = vadd.f32 %v1514, %v1767
        %v1769 = vpop.f32.mrf.mxu0
        %v1770 = vadd.f32 %v1518, %v1769
        %1771 = vmatprep.mubr.bf16.mxu0 %v1415
        %1772 = vmatmul.mubr.bf16.gmra.mxu0 %v1414
        %v1773 = vpop.f32.mrf.mxu0
        %v1774 = vadd.f32 %v1514, %v1773
        %v1775 = vpop.f32.mrf.mxu0
        %v1776 = vadd.f32 %v1518, %v1775
        %v1777 = vpop.f32.mrf.mxu0
        %v1778 = vadd.f32 %v1514, %v1777
        %v1779 = vpop.f32.mrf.mxu0
        %v1780 = vadd.f32 %v1518, %v1779
        %1781 = vmatprep.mubr.bf16.mxu0 %v1417
        %1782 = vmatmul.mubr.bf16.gmra.mxu0 %v1416
        %v1783 = vpop.f32.mrf.mxu0
        %v1784 = vadd.f32 %v1514, %v1783
        %v1785 = vpop.f32.mrf.mxu0
        %v1786 = vadd.f32 %v1518, %v1785
        %v1787 = vpop.f32.mrf.mxu0
        %v1788 = vadd.f32 %v1514, %v1787
        %v1789 = vpop.f32.mrf.mxu0
        %v1790 = vadd.f32 %v1518, %v1789
        %1791 = vmatprep.mubr.bf16.mxu0 %v1419
        %1792 = vmatmul.mubr.bf16.gmra.mxu0 %v1418
        %v1793 = vpop.f32.mrf.mxu0
        %v1794 = vadd.f32 %v1514, %v1793
        %v1795 = vpop.f32.mrf.mxu0
        %v1796 = vadd.f32 %v1518, %v1795
        %v1797 = vpop.f32.mrf.mxu0
        %v1798 = vadd.f32 %v1514, %v1797
        %v1799 = vpop.f32.mrf.mxu0
        %v1800 = vadd.f32 %v1518, %v1799
        %1801 = vmatprep.mubr.bf16.mxu0 %v1421
        %1802 = vmatmul.mubr.bf16.gmra.mxu0 %v1420
        %v1803 = vpop.f32.mrf.mxu0
        %v1804 = vadd.f32 %v1514, %v1803
        %v1805 = vpop.f32.mrf.mxu0
        %v1806 = vadd.f32 %v1518, %v1805
        %v1807 = vpop.f32.mrf.mxu0
        %v1808 = vadd.f32 %v1514, %v1807
        %v1809 = vpop.f32.mrf.mxu0
        %v1810 = vadd.f32 %v1518, %v1809
        %1811 = vmatprep.mubr.bf16.mxu0 %v1423
        %1812 = vmatmul.mubr.bf16.gmra.mxu0 %v1422
        %v1813 = vpop.f32.mrf.mxu0
        %v1814 = vadd.f32 %v1514, %v1813
        %v1815 = vpop.f32.mrf.mxu0
        %v1816 = vadd.f32 %v1518, %v1815
        %v1817 = vpop.f32.mrf.mxu0
        %v1818 = vadd.f32 %v1514, %v1817
        %v1819 = vpop.f32.mrf.mxu0
        %v1820 = vadd.f32 %v1518, %v1819
        %1821 = vmatprep.mubr.bf16.mxu0 %v1425
        %1822 = vmatmul.mubr.bf16.gmra.mxu0 %v1424
        %v1823 = vpop.f32.mrf.mxu0
        %v1824 = vadd.f32 %v1514, %v1823
        %v1825 = vpop.f32.mrf.mxu0
        %v1826 = vadd.f32 %v1518, %v1825
        %v1827 = vpop.f32.mrf.mxu0
        %v1828 = vadd.f32 %v1514, %v1827
        %v1829 = vpop.f32.mrf.mxu0
        %v1830 = vadd.f32 %v1518, %v1829
        %1831 = vmatprep.mubr.bf16.mxu0 %v1427
        %1832 = vmatmul.mubr.bf16.gmra.mxu0 %v1426
        %v1833 = vpop.f32.mrf.mxu0
        %v1834 = vadd.f32 %v1514, %v1833
        %v1835 = vpop.f32.mrf.mxu0
        %v1836 = vadd.f32 %v1518, %v1835
        %v1837 = vpop.f32.mrf.mxu0
        %v1838 = vadd.f32 %v1514, %v1837
        %v1839 = vpop.f32.mrf.mxu0
        %v1840 = vadd.f32 %v1518, %v1839
        %1841 = vmatprep.mubr.bf16.mxu0 %v1429
        %1842 = vmatmul.mubr.bf16.gmra.mxu0 %v1428
        %v1843 = vpop.f32.mrf.mxu0
        %v1844 = vadd.f32 %v1514, %v1843
        %v1845 = vpop.f32.mrf.mxu0
        %v1846 = vadd.f32 %v1518, %v1845
        %v1847 = vpop.f32.mrf.mxu0
        %v1848 = vadd.f32 %v1514, %v1847
        %v1849 = vpop.f32.mrf.mxu0
        %v1850 = vadd.f32 %v1518, %v1849
        %1851 = vmatprep.mubr.bf16.mxu0 %v1431
        %1852 = vmatmul.mubr.bf16.gmra.mxu0 %v1430
        %v1853 = vpop.f32.mrf.mxu0
        %v1854 = vadd.f32 %v1514, %v1853
        %v1855 = vpop.f32.mrf.mxu0
        %v1856 = vadd.f32 %v1518, %v1855
        %v1857 = vpop.f32.mrf.mxu0
        %v1858 = vadd.f32 %v1514, %v1857
        %v1859 = vpop.f32.mrf.mxu0
        %v1860 = vadd.f32 %v1518, %v1859
        %1861 = vmatprep.mubr.bf16.mxu0 %v1433
        %1862 = vmatmul.mubr.bf16.gmra.mxu0 %v1432
        %v1863 = vpop.f32.mrf.mxu0
        %v1864 = vadd.f32 %v1514, %v1863
        %v1865 = vpop.f32.mrf.mxu0
        %v1866 = vadd.f32 %v1518, %v1865
        %v1867 = vpop.f32.mrf.mxu0
        %v1868 = vadd.f32 %v1514, %v1867
        %v1869 = vpop.f32.mrf.mxu0
        %v1870 = vadd.f32 %v1518, %v1869
        %1871 = vmatprep.mubr.bf16.mxu0 %v1435
        %1872 = vmatmul.mubr.bf16.gmra.mxu0 %v1434
        %v1873 = vpop.f32.mrf.mxu0
        %v1874 = vadd.f32 %v1514, %v1873
        %v1875 = vpop.f32.mrf.mxu0
        %v1876 = vadd.f32 %v1518, %v1875
        %v1877 = vpop.f32.mrf.mxu0
        %v1878 = vadd.f32 %v1514, %v1877
        %v1879 = vpop.f32.mrf.mxu0
        %v1880 = vadd.f32 %v1518, %v1879
        %1881 = vmatprep.mubr.bf16.mxu0 %v1437
        %1882 = vmatmul.mubr.bf16.gmra.mxu0 %v1436
        %v1883 = vpop.f32.mrf.mxu0
        %v1884 = vadd.f32 %v1514, %v1883
        %v1885 = vpop.f32.mrf.mxu0
        %v1886 = vadd.f32 %v1518, %v1885
        %v1887 = vpop.f32.mrf.mxu0
        %v1888 = vadd.f32 %v1514, %v1887
        %v1889 = vpop.f32.mrf.mxu0
        %v1890 = vadd.f32 %v1518, %v1889
        %1891 = vmatprep.mubr.bf16.mxu0 %v1439
        %1892 = vmatmul.mubr.bf16.gmra.mxu0 %v1438
        %v1893 = vpop.f32.mrf.mxu0
        %v1894 = vadd.f32 %v1514, %v1893
        %v1895 = vpop.f32.mrf.mxu0
        %v1896 = vadd.f32 %v1518, %v1895
        %v1897 = vpop.f32.mrf.mxu0
        %v1898 = vadd.f32 %v1514, %v1897
        %v1899 = vpop.f32.mrf.mxu0
        %v1900 = vadd.f32 %v1518, %v1899
        %1901 = vmatprep.mubr.bf16.mxu0 %v1441
        %1902 = vmatmul.mubr.bf16.gmra.mxu0 %v1440
        %v1903 = vpop.f32.mrf.mxu0
        %v1904 = vadd.f32 %v1514, %v1903
        %v1905 = vpop.f32.mrf.mxu0
        %v1906 = vadd.f32 %v1518, %v1905
        %v1907 = vpop.f32.mrf.mxu0
        %v1908 = vadd.f32 %v1514, %v1907
        %v1909 = vpop.f32.mrf.mxu0
        %v1910 = vadd.f32 %v1518, %v1909
        %1911 = vmatprep.mubr.bf16.mxu0 %v1443
        %1912 = vmatmul.mubr.bf16.gmra.mxu0 %v1442
        %v1913 = vpop.f32.mrf.mxu0
        %v1914 = vadd.f32 %v1514, %v1913
        %v1915 = vpop.f32.mrf.mxu0
        %v1916 = vadd.f32 %v1518, %v1915
        %v1917 = vpop.f32.mrf.mxu0
        %v1918 = vadd.f32 %v1514, %v1917
        %v1919 = vpop.f32.mrf.mxu0
        %v1920 = vadd.f32 %v1518, %v1919
        %1921 = vmatprep.mubr.bf16.mxu0 %v1445
        %1922 = vmatmul.mubr.bf16.gmra.mxu0 %v1444
        %v1923 = vpop.f32.mrf.mxu0
        %v1924 = vadd.f32 %v1514, %v1923
        %v1925 = vpop.f32.mrf.mxu0
        %v1926 = vadd.f32 %v1518, %v1925
        %v1927 = vpop.f32.mrf.mxu0
        %v1928 = vadd.f32 %v1514, %v1927
        %v1929 = vpop.f32.mrf.mxu0
        %v1930 = vadd.f32 %v1518, %v1929
        %1931 = vmatprep.mubr.bf16.mxu0 %v1447
        %1932 = vmatmul.mubr.bf16.gmra.mxu0 %v1446
        %v1933 = vpop.f32.mrf.mxu0
        %v1934 = vadd.f32 %v1514, %v1933
        %v1935 = vpop.f32.mrf.mxu0
        %v1936 = vadd.f32 %v1518, %v1935
        %v1937 = vpop.f32.mrf.mxu0
        %v1938 = vadd.f32 %v1514, %v1937
        %v1939 = vpop.f32.mrf.mxu0
        %v1940 = vadd.f32 %v1518, %v1939
        %1941 = vmatprep.mubr.bf16.mxu0 %v1449
        %1942 = vmatmul.mubr.bf16.gmra.mxu0 %v1448
        %v1943 = vpop.f32.mrf.mxu0
        %v1944 = vadd.f32 %v1514, %v1943
        %v1945 = vpop.f32.mrf.mxu0
        %v1946 = vadd.f32 %v1518, %v1945
        %v1947 = vpop.f32.mrf.mxu0
        %v1948 = vadd.f32 %v1514, %v1947
        %v1949 = vpop.f32.mrf.mxu0
        %v1950 = vadd.f32 %v1518, %v1949
        %1951 = vmatprep.mubr.bf16.mxu0 %v1451
        %1952 = vmatmul.mubr.bf16.gmra.mxu0 %v1450
        %v1953 = vpop.f32.mrf.mxu0
        %v1954 = vadd.f32 %v1514, %v1953
        %v1955 = vpop.f32.mrf.mxu0
        %v1956 = vadd.f32 %v1518, %v1955
        %v1957 = vpop.f32.mrf.mxu0
        %v1958 = vadd.f32 %v1514, %v1957
        %v1959 = vpop.f32.mrf.mxu0
        %v1960 = vadd.f32 %v1518, %v1959
        %1961 = vmatprep.mubr.bf16.mxu0 %v1453
        %1962 = vmatmul.mubr.bf16.gmra.mxu0 %v1452
        %v1963 = vpop.f32.mrf.mxu0
        %v1964 = vadd.f32 %v1514, %v1963
        %v1965 = vpop.f32.mrf.mxu0
        %v1966 = vadd.f32 %v1518, %v1965
        %v1967 = vpop.f32.mrf.mxu0
        %v1968 = vadd.f32 %v1514, %v1967
        %v1969 = vpop.f32.mrf.mxu0
        %v1970 = vadd.f32 %v1518, %v1969
        %1971 = vmatprep.mubr.bf16.mxu0 %v1455
        %1972 = vmatmul.mubr.bf16.gmra.mxu0 %v1454
        %v1973 = vpop.f32.mrf.mxu0
        %v1974 = vadd.f32 %v1514, %v1973
        %v1975 = vpop.f32.mrf.mxu0
        %v1976 = vadd.f32 %v1518, %v1975
        %v1977 = vpop.f32.mrf.mxu0
        %v1978 = vadd.f32 %v1514, %v1977
        %v1979 = vpop.f32.mrf.mxu0
        %v1980 = vadd.f32 %v1518, %v1979
        %1981 = vmatprep.mubr.bf16.mxu0 %v1457
        %1982 = vmatmul.mubr.bf16.gmra.mxu0 %v1456
        %v1983 = vpop.f32.mrf.mxu0
        %v1984 = vadd.f32 %v1514, %v1983
        %v1985 = vpop.f32.mrf.mxu0
        %v1986 = vadd.f32 %v1518, %v1985
        %v1987 = vpop.f32.mrf.mxu0
        %v1988 = vadd.f32 %v1514, %v1987
        %v1989 = vpop.f32.mrf.mxu0
        %v1990 = vadd.f32 %v1518, %v1989
        %1991 = vmatprep.mubr.bf16.mxu0 %v1459
        %1992 = vmatmul.mubr.bf16.gmra.mxu0 %v1458
        %v1993 = vpop.f32.mrf.mxu0
        %v1994 = vadd.f32 %v1514, %v1993
        %v1995 = vpop.f32.mrf.mxu0
        %v1996 = vadd.f32 %v1518, %v1995
        %v1997 = vpop.f32.mrf.mxu0
        %v1998 = vadd.f32 %v1514, %v1997
        %v1999 = vpop.f32.mrf.mxu0
        %v2000 = vadd.f32 %v1518, %v1999
        %2001 = vmatprep.mubr.bf16.mxu0 %v1461
        %2002 = vmatmul.mubr.bf16.gmra.mxu0 %v1460
        %v2003 = vpop.f32.mrf.mxu0
        %v2004 = vadd.f32 %v1514, %v2003
        %v2005 = vpop.f32.mrf.mxu0
        %v2006 = vadd.f32 %v1518, %v2005
        %v2007 = vpop.f32.mrf.mxu0
        %v2008 = vadd.f32 %v1514, %v2007
        %v2009 = vpop.f32.mrf.mxu0
        %v2010 = vadd.f32 %v1518, %v2009
        %2011 = vmatprep.mubr.bf16.mxu0 %v1463
        %2012 = vmatmul.mubr.bf16.gmra.mxu0 %v1462
        %v2013 = vpop.f32.mrf.mxu0
        %v2014 = vadd.f32 %v1514, %v2013
        %v2015 = vpop.f32.mrf.mxu0
        %v2016 = vadd.f32 %v1518, %v2015
        %v2017 = vpop.f32.mrf.mxu0
        %v2018 = vadd.f32 %v1514, %v2017
        %v2019 = vpop.f32.mrf.mxu0
        %v2020 = vadd.f32 %v1518, %v2019
        %2021 = vmatprep.mubr.bf16.mxu0 %v1465
        %2022 = vmatmul.mubr.bf16.gmra.mxu0 %v1464
        %v2023 = vpop.f32.mrf.mxu0
        %v2024 = vadd.f32 %v1514, %v2023
        %v2025 = vpop.f32.mrf.mxu0
        %v2026 = vadd.f32 %v1518, %v2025
        %v2027 = vpop.f32.mrf.mxu0
        %v2028 = vadd.f32 %v1514, %v2027
        %v2029 = vpop.f32.mrf.mxu0
        %v2030 = vadd.f32 %v1518, %v2029
        %2031 = vdwg.mxu0
        %v2032 = vlaneseq
        %v2033 = vshrl.u32 %v2032, 7
        %v2034 = vsub.s32 2, %v2033
        %v2035 = vrot.slane %v1106, %v2034
        %v2036 = vlaneseq
        %v2037 = vshrl.u32 %v2036, 7
        %v2038 = vsub.s32 6, %v2037
        %v2039 = vrot.slane %v1106, %v2038
        %v2042 = vlaneseq
        %v2043 = vshrl.u32 %v2042, 7
        %v2044 = vsub.s32 2, %v2043
        %v2045 = vrot.slane %v2035, %v2044
        %v2046 = vlaneseq
        %v2047 = vshrl.u32 %v2046, 7
        %v2048 = vsub.s32 2, %v2047
        %v2049 = vrot.slane %v2039, %v2048
        %v2050 = vmul.f32 %v1714, %v2045
        %v2051 = vmul.f32 %v1716, %v2049
        %v2052 = vmul.f32 %v1718, %v2045
        %v2053 = vmul.f32 %v1720, %v2049
        %v2054 = vmul.f32 %v1724, %v2045
        %v2055 = vmul.f32 %v1726, %v2049
        %v2056 = vmul.f32 %v1728, %v2045
        %v2057 = vmul.f32 %v1730, %v2049
        %v2058 = vmul.f32 %v1734, %v2045
        %v2059 = vmul.f32 %v1736, %v2049
        %v2060 = vmul.f32 %v1738, %v2045
        %v2061 = vmul.f32 %v1740, %v2049
        %v2062 = vmul.f32 %v1744, %v2045
        %v2063 = vmul.f32 %v1746, %v2049
        %v2064 = vmul.f32 %v1748, %v2045
        %v2065 = vmul.f32 %v1750, %v2049
        %v2066 = vmul.f32 %v1754, %v2045
        %v2067 = vmul.f32 %v1756, %v2049
        %v2068 = vmul.f32 %v1758, %v2045
        %v2069 = vmul.f32 %v1760, %v2049
        %v2070 = vmul.f32 %v1764, %v2045
        %v2071 = vmul.f32 %v1766, %v2049
        %v2072 = vmul.f32 %v1768, %v2045
        %v2073 = vmul.f32 %v1770, %v2049
        %v2074 = vmul.f32 %v1774, %v2045
        %v2075 = vmul.f32 %v1776, %v2049
        %v2076 = vmul.f32 %v1778, %v2045
        %v2077 = vmul.f32 %v1780, %v2049
        %v2078 = vmul.f32 %v1784, %v2045
        %v2079 = vmul.f32 %v1786, %v2049
        %v2080 = vmul.f32 %v1788, %v2045
        %v2081 = vmul.f32 %v1790, %v2049
        %v2082 = vmul.f32 %v1794, %v2045
        %v2083 = vmul.f32 %v1796, %v2049
        %v2084 = vmul.f32 %v1798, %v2045
        %v2085 = vmul.f32 %v1800, %v2049
        %v2086 = vmul.f32 %v1804, %v2045
        %v2087 = vmul.f32 %v1806, %v2049
        %v2088 = vmul.f32 %v1808, %v2045
        %v2089 = vmul.f32 %v1810, %v2049
        %v2090 = vmul.f32 %v1814, %v2045
        %v2091 = vmul.f32 %v1816, %v2049
        %v2092 = vmul.f32 %v1818, %v2045
        %v2093 = vmul.f32 %v1820, %v2049
        %v2094 = vmul.f32 %v1824, %v2045
        %v2095 = vmul.f32 %v1826, %v2049
        %v2096 = vmul.f32 %v1828, %v2045
        %v2097 = vmul.f32 %v1830, %v2049
        %v2098 = vmul.f32 %v1834, %v2045
        %v2099 = vmul.f32 %v1836, %v2049
        %v2100 = vmul.f32 %v1838, %v2045
        %v2101 = vmul.f32 %v1840, %v2049
        %v2102 = vmul.f32 %v1844, %v2045
        %v2103 = vmul.f32 %v1846, %v2049
        %v2104 = vmul.f32 %v1848, %v2045
        %v2105 = vmul.f32 %v1850, %v2049
        %v2106 = vmul.f32 %v1854, %v2045
        %v2107 = vmul.f32 %v1856, %v2049
        %v2108 = vmul.f32 %v1858, %v2045
        %v2109 = vmul.f32 %v1860, %v2049
        %v2110 = vmul.f32 %v1864, %v2045
        %v2111 = vmul.f32 %v1866, %v2049
        %v2112 = vmul.f32 %v1868, %v2045
        %v2113 = vmul.f32 %v1870, %v2049
        %v2114 = vmul.f32 %v1874, %v2045
        %v2115 = vmul.f32 %v1876, %v2049
        %v2116 = vmul.f32 %v1878, %v2045
        %v2117 = vmul.f32 %v1880, %v2049
        %v2118 = vmul.f32 %v1884, %v2045
        %v2119 = vmul.f32 %v1886, %v2049
        %v2120 = vmul.f32 %v1888, %v2045
        %v2121 = vmul.f32 %v1890, %v2049
        %v2122 = vmul.f32 %v1894, %v2045
        %v2123 = vmul.f32 %v1896, %v2049
        %v2124 = vmul.f32 %v1898, %v2045
        %v2125 = vmul.f32 %v1900, %v2049
        %v2126 = vmul.f32 %v1904, %v2045
        %v2127 = vmul.f32 %v1906, %v2049
        %v2128 = vmul.f32 %v1908, %v2045
        %v2129 = vmul.f32 %v1910, %v2049
        %v2130 = vmul.f32 %v1914, %v2045
        %v2131 = vmul.f32 %v1916, %v2049
        %v2132 = vmul.f32 %v1918, %v2045
        %v2133 = vmul.f32 %v1920, %v2049
        %v2134 = vmul.f32 %v1924, %v2045
        %v2135 = vmul.f32 %v1926, %v2049
        %v2136 = vmul.f32 %v1928, %v2045
        %v2137 = vmul.f32 %v1930, %v2049
        %v2138 = vmul.f32 %v1934, %v2045
        %v2139 = vmul.f32 %v1936, %v2049
        %v2140 = vmul.f32 %v1938, %v2045
        %v2141 = vmul.f32 %v1940, %v2049
        %v2142 = vmul.f32 %v1944, %v2045
        %v2143 = vmul.f32 %v1946, %v2049
        %v2144 = vmul.f32 %v1948, %v2045
        %v2145 = vmul.f32 %v1950, %v2049
        %v2146 = vmul.f32 %v1954, %v2045
        %v2147 = vmul.f32 %v1956, %v2049
        %v2148 = vmul.f32 %v1958, %v2045
        %v2149 = vmul.f32 %v1960, %v2049
        %v2150 = vmul.f32 %v1964, %v2045
        %v2151 = vmul.f32 %v1966, %v2049
        %v2152 = vmul.f32 %v1968, %v2045
        %v2153 = vmul.f32 %v1970, %v2049
        %v2154 = vmul.f32 %v1974, %v2045
        %v2155 = vmul.f32 %v1976, %v2049
        %v2156 = vmul.f32 %v1978, %v2045
        %v2157 = vmul.f32 %v1980, %v2049
        %v2158 = vmul.f32 %v1984, %v2045
        %v2159 = vmul.f32 %v1986, %v2049
        %v2160 = vmul.f32 %v1988, %v2045
        %v2161 = vmul.f32 %v1990, %v2049
        %v2162 = vmul.f32 %v1994, %v2045
        %v2163 = vmul.f32 %v1996, %v2049
        %v2164 = vmul.f32 %v1998, %v2045
        %v2165 = vmul.f32 %v2000, %v2049
        %v2166 = vmul.f32 %v2004, %v2045
        %v2167 = vmul.f32 %v2006, %v2049
        %v2168 = vmul.f32 %v2008, %v2045
        %v2169 = vmul.f32 %v2010, %v2049
        %v2170 = vmul.f32 %v2014, %v2045
        %v2171 = vmul.f32 %v2016, %v2049
        %v2172 = vmul.f32 %v2018, %v2045
        %v2173 = vmul.f32 %v2020, %v2049
        %v2174 = vmul.f32 %v2024, %v2045
        %v2175 = vmul.f32 %v2026, %v2049
        %v2176 = vmul.f32 %v2028, %v2045
        %v2177 = vmul.f32 %v2030, %v2049
        %v2178 = vadd.f32 %v336, %v2050
        %v2179 = vadd.f32 %v337, %v2051
        %v2180 = vadd.f32 %v338, %v2052
        %v2181 = vadd.f32 %v339, %v2053
        %v2182 = vadd.f32 %v340, %v2054
        %v2183 = vadd.f32 %v341, %v2055
        %v2184 = vadd.f32 %v342, %v2056
        %v2185 = vadd.f32 %v343, %v2057
        %v2186 = vadd.f32 %v344, %v2058
        %v2187 = vadd.f32 %v345, %v2059
        %v2188 = vadd.f32 %v346, %v2060
        %v2189 = vadd.f32 %v347, %v2061
        %v2190 = vadd.f32 %v348, %v2062
        %v2191 = vadd.f32 %v349, %v2063
        %v2192 = vadd.f32 %v350, %v2064
        %v2193 = vadd.f32 %v351, %v2065
        %v2194 = vadd.f32 %v352, %v2066
        %v2195 = vadd.f32 %v353, %v2067
        %v2196 = vadd.f32 %v354, %v2068
        %v2197 = vadd.f32 %v355, %v2069
        %v2198 = vadd.f32 %v356, %v2070
        %v2199 = vadd.f32 %v357, %v2071
        %v2200 = vadd.f32 %v358, %v2072
        %v2201 = vadd.f32 %v359, %v2073
        %v2202 = vadd.f32 %v360, %v2074
        %v2203 = vadd.f32 %v361, %v2075
        %v2204 = vadd.f32 %v362, %v2076
        %v2205 = vadd.f32 %v363, %v2077
        %v2206 = vadd.f32 %v364, %v2078
        %v2207 = vadd.f32 %v365, %v2079
        %v2208 = vadd.f32 %v366, %v2080
        %v2209 = vadd.f32 %v367, %v2081
        %v2210 = vadd.f32 %v368, %v2082
        %v2211 = vadd.f32 %v369, %v2083
        %v2212 = vadd.f32 %v370, %v2084
        %v2213 = vadd.f32 %v371, %v2085
        %v2214 = vadd.f32 %v372, %v2086
        %v2215 = vadd.f32 %v373, %v2087
        %v2216 = vadd.f32 %v374, %v2088
        %v2217 = vadd.f32 %v375, %v2089
        %v2218 = vadd.f32 %v376, %v2090
        %v2219 = vadd.f32 %v377, %v2091
        %v2220 = vadd.f32 %v378, %v2092
        %v2221 = vadd.f32 %v379, %v2093
        %v2222 = vadd.f32 %v380, %v2094
        %v2223 = vadd.f32 %v381, %v2095
        %v2224 = vadd.f32 %v382, %v2096
        %v2225 = vadd.f32 %v383, %v2097
        %v2226 = vadd.f32 %v384, %v2098
        %v2227 = vadd.f32 %v385, %v2099
        %v2228 = vadd.f32 %v386, %v2100
        %v2229 = vadd.f32 %v387, %v2101
        %v2230 = vadd.f32 %v388, %v2102
        %v2231 = vadd.f32 %v389, %v2103
        %v2232 = vadd.f32 %v390, %v2104
        %v2233 = vadd.f32 %v391, %v2105
        %v2234 = vadd.f32 %v392, %v2106
        %v2235 = vadd.f32 %v393, %v2107
        %v2236 = vadd.f32 %v394, %v2108
        %v2237 = vadd.f32 %v395, %v2109
        %v2238 = vadd.f32 %v396, %v2110
        %v2239 = vadd.f32 %v397, %v2111
        %v2240 = vadd.f32 %v398, %v2112
        %v2241 = vadd.f32 %v399, %v2113
        %v2242 = vadd.f32 %v400, %v2114
        %v2243 = vadd.f32 %v401, %v2115
        %v2244 = vadd.f32 %v402, %v2116
        %v2245 = vadd.f32 %v403, %v2117
        %v2246 = vadd.f32 %v404, %v2118
        %v2247 = vadd.f32 %v405, %v2119
        %v2248 = vadd.f32 %v406, %v2120
        %v2249 = vadd.f32 %v407, %v2121
        %v2250 = vadd.f32 %v408, %v2122
        %v2251 = vadd.f32 %v409, %v2123
        %v2252 = vadd.f32 %v410, %v2124
        %v2253 = vadd.f32 %v411, %v2125
        %v2254 = vadd.f32 %v412, %v2126
        %v2255 = vadd.f32 %v413, %v2127
        %v2256 = vadd.f32 %v414, %v2128
        %v2257 = vadd.f32 %v415, %v2129
        %v2258 = vadd.f32 %v416, %v2130
        %v2259 = vadd.f32 %v417, %v2131
        %v2260 = vadd.f32 %v418, %v2132
        %v2261 = vadd.f32 %v419, %v2133
        %v2262 = vadd.f32 %v420, %v2134
        %v2263 = vadd.f32 %v421, %v2135
        %v2264 = vadd.f32 %v422, %v2136
        %v2265 = vadd.f32 %v423, %v2137
        %v2266 = vadd.f32 %v424, %v2138
        %v2267 = vadd.f32 %v425, %v2139
        %v2268 = vadd.f32 %v426, %v2140
        %v2269 = vadd.f32 %v427, %v2141
        %v2270 = vadd.f32 %v428, %v2142
        %v2271 = vadd.f32 %v429, %v2143
        %v2272 = vadd.f32 %v430, %v2144
        %v2273 = vadd.f32 %v431, %v2145
        %v2274 = vadd.f32 %v432, %v2146
        %v2275 = vadd.f32 %v433, %v2147
        %v2276 = vadd.f32 %v434, %v2148
        %v2277 = vadd.f32 %v435, %v2149
        %v2278 = vadd.f32 %v436, %v2150
        %v2279 = vadd.f32 %v437, %v2151
        %v2280 = vadd.f32 %v438, %v2152
        %v2281 = vadd.f32 %v439, %v2153
        %v2282 = vadd.f32 %v440, %v2154
        %v2283 = vadd.f32 %v441, %v2155
        %v2284 = vadd.f32 %v442, %v2156
        %v2285 = vadd.f32 %v443, %v2157
        %v2286 = vadd.f32 %v444, %v2158
        %v2287 = vadd.f32 %v445, %v2159
        %v2288 = vadd.f32 %v446, %v2160
        %v2289 = vadd.f32 %v447, %v2161
        %v2290 = vadd.f32 %v448, %v2162
        %v2291 = vadd.f32 %v449, %v2163
        %v2292 = vadd.f32 %v450, %v2164
        %v2293 = vadd.f32 %v451, %v2165
        %v2294 = vadd.f32 %v452, %v2166
        %v2295 = vadd.f32 %v453, %v2167
        %v2296 = vadd.f32 %v454, %v2168
        %v2297 = vadd.f32 %v455, %v2169
        %v2298 = vadd.f32 %v456, %v2170
        %v2299 = vadd.f32 %v457, %v2171
        %v2300 = vadd.f32 %v458, %v2172
        %v2301 = vadd.f32 %v459, %v2173
        %v2302 = vadd.f32 %v460, %v2174
        %v2303 = vadd.f32 %v461, %v2175
        %v2304 = vadd.f32 %v462, %v2176
        %v2305 = vadd.f32 %v463, %v2177
        %v2306 = vpack.c.bf16 %v2180, %v2178
        %v2307 = vpack.c.bf16 %v2181, %v2179
        %v2308 = vpack.c.bf16 %v2184, %v2182
        %v2309 = vpack.c.bf16 %v2185, %v2183
        %v2310 = vpack.c.bf16 %v2188, %v2186
        %v2311 = vpack.c.bf16 %v2189, %v2187
        %v2312 = vpack.c.bf16 %v2192, %v2190
        %v2313 = vpack.c.bf16 %v2193, %v2191
        %v2314 = vpack.c.bf16 %v2196, %v2194
        %v2315 = vpack.c.bf16 %v2197, %v2195
        %v2316 = vpack.c.bf16 %v2200, %v2198
        %v2317 = vpack.c.bf16 %v2201, %v2199
        %v2318 = vpack.c.bf16 %v2204, %v2202
        %v2319 = vpack.c.bf16 %v2205, %v2203
        %v2320 = vpack.c.bf16 %v2208, %v2206
        %v2321 = vpack.c.bf16 %v2209, %v2207
        %v2322 = vpack.c.bf16 %v2212, %v2210
        %v2323 = vpack.c.bf16 %v2213, %v2211
        %v2324 = vpack.c.bf16 %v2216, %v2214
        %v2325 = vpack.c.bf16 %v2217, %v2215
        %v2326 = vpack.c.bf16 %v2220, %v2218
        %v2327 = vpack.c.bf16 %v2221, %v2219
        %v2328 = vpack.c.bf16 %v2224, %v2222
        %v2329 = vpack.c.bf16 %v2225, %v2223
        %v2330 = vpack.c.bf16 %v2228, %v2226
        %v2331 = vpack.c.bf16 %v2229, %v2227
        %v2332 = vpack.c.bf16 %v2232, %v2230
        %v2333 = vpack.c.bf16 %v2233, %v2231
        %v2334 = vpack.c.bf16 %v2236, %v2234
        %v2335 = vpack.c.bf16 %v2237, %v2235
        %v2336 = vpack.c.bf16 %v2240, %v2238
        %v2337 = vpack.c.bf16 %v2241, %v2239
        %v2338 = vpack.c.bf16 %v2244, %v2242
        %v2339 = vpack.c.bf16 %v2245, %v2243
        %v2340 = vpack.c.bf16 %v2248, %v2246
        %v2341 = vpack.c.bf16 %v2249, %v2247
        %v2342 = vpack.c.bf16 %v2252, %v2250
        %v2343 = vpack.c.bf16 %v2253, %v2251
        %v2344 = vpack.c.bf16 %v2256, %v2254
        %v2345 = vpack.c.bf16 %v2257, %v2255
        %v2346 = vpack.c.bf16 %v2260, %v2258
        %v2347 = vpack.c.bf16 %v2261, %v2259
        %v2348 = vpack.c.bf16 %v2264, %v2262
        %v2349 = vpack.c.bf16 %v2265, %v2263
        %v2350 = vpack.c.bf16 %v2268, %v2266
        %v2351 = vpack.c.bf16 %v2269, %v2267
        %v2352 = vpack.c.bf16 %v2272, %v2270
        %v2353 = vpack.c.bf16 %v2273, %v2271
        %v2354 = vpack.c.bf16 %v2276, %v2274
        %v2355 = vpack.c.bf16 %v2277, %v2275
        %v2356 = vpack.c.bf16 %v2280, %v2278
        %v2357 = vpack.c.bf16 %v2281, %v2279
        %v2358 = vpack.c.bf16 %v2284, %v2282
        %v2359 = vpack.c.bf16 %v2285, %v2283
        %v2360 = vpack.c.bf16 %v2288, %v2286
        %v2361 = vpack.c.bf16 %v2289, %v2287
        %v2362 = vpack.c.bf16 %v2292, %v2290
        %v2363 = vpack.c.bf16 %v2293, %v2291
        %v2364 = vpack.c.bf16 %v2296, %v2294
        %v2365 = vpack.c.bf16 %v2297, %v2295
        %v2366 = vpack.c.bf16 %v2300, %v2298
        %v2367 = vpack.c.bf16 %v2301, %v2299
        %v2368 = vpack.c.bf16 %v2304, %v2302
        %v2369 = vpack.c.bf16 %v2305, %v2303
        %v2434 = vunpack.c.l.b16 %v2306
        %v2435 = vunpack.c.l.b16 %v2307
        %v2436 = vunpack.c.h.b16 %v2306
        %v2437 = vunpack.c.h.b16 %v2307
        %v2438 = vunpack.c.l.b16 %v2308
        %v2439 = vunpack.c.l.b16 %v2309
        %v2440 = vunpack.c.h.b16 %v2308
        %v2441 = vunpack.c.h.b16 %v2309
        %v2442 = vunpack.c.l.b16 %v2310
        %v2443 = vunpack.c.l.b16 %v2311
        %v2444 = vunpack.c.h.b16 %v2310
        %v2445 = vunpack.c.h.b16 %v2311
        %v2446 = vunpack.c.l.b16 %v2312
        %v2447 = vunpack.c.l.b16 %v2313
        %v2448 = vunpack.c.h.b16 %v2312
        %v2449 = vunpack.c.h.b16 %v2313
        %v2450 = vunpack.c.l.b16 %v2314
        %v2451 = vunpack.c.l.b16 %v2315
        %v2452 = vunpack.c.h.b16 %v2314
        %v2453 = vunpack.c.h.b16 %v2315
        %v2454 = vunpack.c.l.b16 %v2316
        %v2455 = vunpack.c.l.b16 %v2317
        %v2456 = vunpack.c.h.b16 %v2316
        %v2457 = vunpack.c.h.b16 %v2317
        %v2458 = vunpack.c.l.b16 %v2318
        %v2459 = vunpack.c.l.b16 %v2319
        %v2460 = vunpack.c.h.b16 %v2318
        %v2461 = vunpack.c.h.b16 %v2319
        %v2462 = vunpack.c.l.b16 %v2320
        %v2463 = vunpack.c.l.b16 %v2321
        %v2464 = vunpack.c.h.b16 %v2320
        %v2465 = vunpack.c.h.b16 %v2321
        %v2466 = vunpack.c.l.b16 %v2322
        %v2467 = vunpack.c.l.b16 %v2323
        %v2468 = vunpack.c.h.b16 %v2322
        %v2469 = vunpack.c.h.b16 %v2323
        %v2470 = vunpack.c.l.b16 %v2324
        %v2471 = vunpack.c.l.b16 %v2325
        %v2472 = vunpack.c.h.b16 %v2324
        %v2473 = vunpack.c.h.b16 %v2325
        %v2474 = vunpack.c.l.b16 %v2326
        %v2475 = vunpack.c.l.b16 %v2327
        %v2476 = vunpack.c.h.b16 %v2326
        %v2477 = vunpack.c.h.b16 %v2327
        %v2478 = vunpack.c.l.b16 %v2328
        %v2479 = vunpack.c.l.b16 %v2329
        %v2480 = vunpack.c.h.b16 %v2328
        %v2481 = vunpack.c.h.b16 %v2329
        %v2482 = vunpack.c.l.b16 %v2330
        %v2483 = vunpack.c.l.b16 %v2331
        %v2484 = vunpack.c.h.b16 %v2330
        %v2485 = vunpack.c.h.b16 %v2331
        %v2486 = vunpack.c.l.b16 %v2332
        %v2487 = vunpack.c.l.b16 %v2333
        %v2488 = vunpack.c.h.b16 %v2332
        %v2489 = vunpack.c.h.b16 %v2333
        %v2490 = vunpack.c.l.b16 %v2334
        %v2491 = vunpack.c.l.b16 %v2335
        %v2492 = vunpack.c.h.b16 %v2334
        %v2493 = vunpack.c.h.b16 %v2335
        %v2494 = vunpack.c.l.b16 %v2336
        %v2495 = vunpack.c.l.b16 %v2337
        %v2496 = vunpack.c.h.b16 %v2336
        %v2497 = vunpack.c.h.b16 %v2337
        %v2498 = vunpack.c.l.b16 %v2338
        %v2499 = vunpack.c.l.b16 %v2339
        %v2500 = vunpack.c.h.b16 %v2338
        %v2501 = vunpack.c.h.b16 %v2339
        %v2502 = vunpack.c.l.b16 %v2340
        %v2503 = vunpack.c.l.b16 %v2341
        %v2504 = vunpack.c.h.b16 %v2340
        %v2505 = vunpack.c.h.b16 %v2341
        %v2506 = vunpack.c.l.b16 %v2342
        %v2507 = vunpack.c.l.b16 %v2343
        %v2508 = vunpack.c.h.b16 %v2342
        %v2509 = vunpack.c.h.b16 %v2343
        %v2510 = vunpack.c.l.b16 %v2344
        %v2511 = vunpack.c.l.b16 %v2345
        %v2512 = vunpack.c.h.b16 %v2344
        %v2513 = vunpack.c.h.b16 %v2345
        %v2514 = vunpack.c.l.b16 %v2346
        %v2515 = vunpack.c.l.b16 %v2347
        %v2516 = vunpack.c.h.b16 %v2346
        %v2517 = vunpack.c.h.b16 %v2347
        %v2518 = vunpack.c.l.b16 %v2348
        %v2519 = vunpack.c.l.b16 %v2349
        %v2520 = vunpack.c.h.b16 %v2348
        %v2521 = vunpack.c.h.b16 %v2349
        %v2522 = vunpack.c.l.b16 %v2350
        %v2523 = vunpack.c.l.b16 %v2351
        %v2524 = vunpack.c.h.b16 %v2350
        %v2525 = vunpack.c.h.b16 %v2351
        %v2526 = vunpack.c.l.b16 %v2352
        %v2527 = vunpack.c.l.b16 %v2353
        %v2528 = vunpack.c.h.b16 %v2352
        %v2529 = vunpack.c.h.b16 %v2353
        %v2530 = vunpack.c.l.b16 %v2354
        %v2531 = vunpack.c.l.b16 %v2355
        %v2532 = vunpack.c.h.b16 %v2354
        %v2533 = vunpack.c.h.b16 %v2355
        %v2534 = vunpack.c.l.b16 %v2356
        %v2535 = vunpack.c.l.b16 %v2357
        %v2536 = vunpack.c.h.b16 %v2356
        %v2537 = vunpack.c.h.b16 %v2357
        %v2538 = vunpack.c.l.b16 %v2358
        %v2539 = vunpack.c.l.b16 %v2359
        %v2540 = vunpack.c.h.b16 %v2358
        %v2541 = vunpack.c.h.b16 %v2359
        %v2542 = vunpack.c.l.b16 %v2360
        %v2543 = vunpack.c.l.b16 %v2361
        %v2544 = vunpack.c.h.b16 %v2360
        %v2545 = vunpack.c.h.b16 %v2361
        %v2546 = vunpack.c.l.b16 %v2362
        %v2547 = vunpack.c.l.b16 %v2363
        %v2548 = vunpack.c.h.b16 %v2362
        %v2549 = vunpack.c.h.b16 %v2363
        %v2550 = vunpack.c.l.b16 %v2364
        %v2551 = vunpack.c.l.b16 %v2365
        %v2552 = vunpack.c.h.b16 %v2364
        %v2553 = vunpack.c.h.b16 %v2365
        %v2554 = vunpack.c.l.b16 %v2366
        %v2555 = vunpack.c.l.b16 %v2367
        %v2556 = vunpack.c.h.b16 %v2366
        %v2557 = vunpack.c.h.b16 %v2367
        %v2558 = vunpack.c.l.b16 %v2368
        %v2559 = vunpack.c.l.b16 %v2369
        %v2560 = vunpack.c.h.b16 %v2368
        %v2561 = vunpack.c.h.b16 %v2369
        %v2562 = vpack.c.b16 %v2435, %v2434
        %v2563 = vpack.c.b16 %v2437, %v2436
        %v2564 = vpack.c.b16 %v2439, %v2438
        %v2565 = vpack.c.b16 %v2441, %v2440
        %v2566 = vpack.c.b16 %v2443, %v2442
        %v2567 = vpack.c.b16 %v2445, %v2444
        %v2568 = vpack.c.b16 %v2447, %v2446
        %v2569 = vpack.c.b16 %v2449, %v2448
        %v2570 = vpack.c.b16 %v2451, %v2450
        %v2571 = vpack.c.b16 %v2453, %v2452
        %v2572 = vpack.c.b16 %v2455, %v2454
        %v2573 = vpack.c.b16 %v2457, %v2456
        %v2574 = vpack.c.b16 %v2459, %v2458
        %v2575 = vpack.c.b16 %v2461, %v2460
        %v2576 = vpack.c.b16 %v2463, %v2462
        %v2577 = vpack.c.b16 %v2465, %v2464
        %v2578 = vpack.c.b16 %v2467, %v2466
        %v2579 = vpack.c.b16 %v2469, %v2468
        %v2580 = vpack.c.b16 %v2471, %v2470
        %v2581 = vpack.c.b16 %v2473, %v2472
        %v2582 = vpack.c.b16 %v2475, %v2474
        %v2583 = vpack.c.b16 %v2477, %v2476
        %v2584 = vpack.c.b16 %v2479, %v2478
        %v2585 = vpack.c.b16 %v2481, %v2480
        %v2586 = vpack.c.b16 %v2483, %v2482
        %v2587 = vpack.c.b16 %v2485, %v2484
        %v2588 = vpack.c.b16 %v2487, %v2486
        %v2589 = vpack.c.b16 %v2489, %v2488
        %v2590 = vpack.c.b16 %v2491, %v2490
        %v2591 = vpack.c.b16 %v2493, %v2492
        %v2592 = vpack.c.b16 %v2495, %v2494
        %v2593 = vpack.c.b16 %v2497, %v2496
        %v2594 = vpack.c.b16 %v2499, %v2498
        %v2595 = vpack.c.b16 %v2501, %v2500
        %v2596 = vpack.c.b16 %v2503, %v2502
        %v2597 = vpack.c.b16 %v2505, %v2504
        %v2598 = vpack.c.b16 %v2507, %v2506
        %v2599 = vpack.c.b16 %v2509, %v2508
        %v2600 = vpack.c.b16 %v2511, %v2510
        %v2601 = vpack.c.b16 %v2513, %v2512
        %v2602 = vpack.c.b16 %v2515, %v2514
        %v2603 = vpack.c.b16 %v2517, %v2516
        %v2604 = vpack.c.b16 %v2519, %v2518
        %v2605 = vpack.c.b16 %v2521, %v2520
        %v2606 = vpack.c.b16 %v2523, %v2522
        %v2607 = vpack.c.b16 %v2525, %v2524
        %v2608 = vpack.c.b16 %v2527, %v2526
        %v2609 = vpack.c.b16 %v2529, %v2528
        %v2610 = vpack.c.b16 %v2531, %v2530
        %v2611 = vpack.c.b16 %v2533, %v2532
        %v2612 = vpack.c.b16 %v2535, %v2534
        %v2613 = vpack.c.b16 %v2537, %v2536
        %v2614 = vpack.c.b16 %v2539, %v2538
        %v2615 = vpack.c.b16 %v2541, %v2540
        %v2616 = vpack.c.b16 %v2543, %v2542
        %v2617 = vpack.c.b16 %v2545, %v2544
        %v2618 = vpack.c.b16 %v2547, %v2546
        %v2619 = vpack.c.b16 %v2549, %v2548
        %v2620 = vpack.c.b16 %v2551, %v2550
        %v2621 = vpack.c.b16 %v2553, %v2552
        %v2622 = vpack.c.b16 %v2555, %v2554
        %v2623 = vpack.c.b16 %v2557, %v2556
        %v2624 = vpack.c.b16 %v2559, %v2558
        %v2625 = vpack.c.b16 %v2561, %v2560
        %2690 = vst [vmem:[%s264] sm:$0xff] %v2562
        %2691 = vst [vmem:[%s264 + $0x8] sm:$0xff] %v2563
        %2692 = vst [vmem:[%s264 + $0x10] sm:$0xff] %v2564
        %2693 = vst [vmem:[%s264 + $0x18] sm:$0xff] %v2565
        %2694 = vst [vmem:[%s264 + $0x20] sm:$0xff] %v2566
        %2695 = vst [vmem:[%s264 + $0x28] sm:$0xff] %v2567
        %2696 = vst [vmem:[%s264 + $0x30] sm:$0xff] %v2568
        %2697 = vst [vmem:[%s264 + $0x38] sm:$0xff] %v2569
        %2698 = vst [vmem:[%s264 + $0x40] sm:$0xff] %v2570
        %2699 = vst [vmem:[%s264 + $0x48] sm:$0xff] %v2571
        %2700 = vst [vmem:[%s264 + $0x50] sm:$0xff] %v2572
        %2701 = vst [vmem:[%s264 + $0x58] sm:$0xff] %v2573
        %2702 = vst [vmem:[%s264 + $0x60] sm:$0xff] %v2574
        %2703 = vst [vmem:[%s264 + $0x68] sm:$0xff] %v2575
        %2704 = vst [vmem:[%s264 + $0x70] sm:$0xff] %v2576
        %2705 = vst [vmem:[%s264 + $0x78] sm:$0xff] %v2577
        %2706 = vst [vmem:[%s264 + $0x80] sm:$0xff] %v2578
        %2707 = vst [vmem:[%s264 + $0x88] sm:$0xff] %v2579
        %2708 = vst [vmem:[%s264 + $0x90] sm:$0xff] %v2580
        %2709 = vst [vmem:[%s264 + $0x98] sm:$0xff] %v2581
        %2710 = vst [vmem:[%s264 + $0xa0] sm:$0xff] %v2582
        %2711 = vst [vmem:[%s264 + $0xa8] sm:$0xff] %v2583
        %2712 = vst [vmem:[%s264 + $0xb0] sm:$0xff] %v2584
        %2713 = vst [vmem:[%s264 + $0xb8] sm:$0xff] %v2585
        %2714 = vst [vmem:[%s264 + $0xc0] sm:$0xff] %v2586
        %2715 = vst [vmem:[%s264 + $0xc8] sm:$0xff] %v2587
        %2716 = vst [vmem:[%s264 + $0xd0] sm:$0xff] %v2588
        %2717 = vst [vmem:[%s264 + $0xd8] sm:$0xff] %v2589
        %2718 = vst [vmem:[%s264 + $0xe0] sm:$0xff] %v2590
        %2719 = vst [vmem:[%s264 + $0xe8] sm:$0xff] %v2591
        %2720 = vst [vmem:[%s264 + $0xf0] sm:$0xff] %v2592
        %2721 = vst [vmem:[%s264 + $0xf8] sm:$0xff] %v2593
        %2722 = vst [vmem:[%s264 + $0x100] sm:$0xff] %v2594
        %2723 = vst [vmem:[%s264 + $0x108] sm:$0xff] %v2595
        %2724 = vst [vmem:[%s264 + $0x110] sm:$0xff] %v2596
        %2725 = vst [vmem:[%s264 + $0x118] sm:$0xff] %v2597
        %2726 = vst [vmem:[%s264 + $0x120] sm:$0xff] %v2598
        %2727 = vst [vmem:[%s264 + $0x128] sm:$0xff] %v2599
        %2728 = vst [vmem:[%s264 + $0x130] sm:$0xff] %v2600
        %2729 = vst [vmem:[%s264 + $0x138] sm:$0xff] %v2601
        %2730 = vst [vmem:[%s264 + $0x140] sm:$0xff] %v2602
        %2731 = vst [vmem:[%s264 + $0x148] sm:$0xff] %v2603
        %2732 = vst [vmem:[%s264 + $0x150] sm:$0xff] %v2604
        %2733 = vst [vmem:[%s264 + $0x158] sm:$0xff] %v2605
        %2734 = vst [vmem:[%s264 + $0x160] sm:$0xff] %v2606
        %2735 = vst [vmem:[%s264 + $0x168] sm:$0xff] %v2607
        %2736 = vst [vmem:[%s264 + $0x170] sm:$0xff] %v2608
        %2737 = vst [vmem:[%s264 + $0x178] sm:$0xff] %v2609
        %2738 = vst [vmem:[%s264 + $0x180] sm:$0xff] %v2610
        %2739 = vst [vmem:[%s264 + $0x188] sm:$0xff] %v2611
        %2740 = vst [vmem:[%s264 + $0x190] sm:$0xff] %v2612
        %2741 = vst [vmem:[%s264 + $0x198] sm:$0xff] %v2613
        %2742 = vst [vmem:[%s264 + $0x1a0] sm:$0xff] %v2614
        %2743 = vst [vmem:[%s264 + $0x1a8] sm:$0xff] %v2615
        %2744 = vst [vmem:[%s264 + $0x1b0] sm:$0xff] %v2616
        %2745 = vst [vmem:[%s264 + $0x1b8] sm:$0xff] %v2617
        %2746 = vst [vmem:[%s264 + $0x1c0] sm:$0xff] %v2618
        %2747 = vst [vmem:[%s264 + $0x1c8] sm:$0xff] %v2619
        %2748 = vst [vmem:[%s264 + $0x1d0] sm:$0xff] %v2620
        %2749 = vst [vmem:[%s264 + $0x1d8] sm:$0xff] %v2621
        %2750 = vst [vmem:[%s264 + $0x1e0] sm:$0xff] %v2622
        %2751 = vst [vmem:[%s264 + $0x1e8] sm:$0xff] %v2623
        %2752 = vst [vmem:[%s264 + $0x1f0] sm:$0xff] %v2624
        %2753 = vst [vmem:[%s264 + $0x1f8] sm:$0xff] %v2625
        %s2754 = sand.u32 %s140, 1
        %s2755 = scalar_lea.sflag [#allocation4], %s2754
        %s2756 = sand.u32 %s140, 1
        %s2757 = smul.addr %s2756, 512
        %s2758 = scalar_lea.vmem [#allocation7], %s2757
        // Predicated region
        $region45: #{tpu_custom_call.1} parent=35 // pred_check
          %p2759 = pneg %p150
        $region46: #{tpu_custom_call.1} parent=35 // pred_check_branch
          %2761 = sbr.rel (%p2759) target = $region48
        $region47: #{tpu_custom_call.1} parent=35 // pred_region
          %s2762 = smul.u32 64, %s26
          %s2764 = ssub.s32 8192, 8192
          %2765 = vsyncadd %s2755, %s2764
          %s2766 = smul.addr %s2762, 2
          %s2767 = smul.addr %s27, 256
          %s2768 = sadd.s32 %s2766, %s2767
          %s2769 = smul.addr %s2768, 64
          %s2770 = scalar_lea.hbm %s4, %s2769
          %s2771 = sshll.u32 %s2758, 4
          %s2772 = int_to_ptr.vmem [resolvable:$true] %s2771
          %2777 = dma.vmem_to_hbm [thread:$0]  %s2772, 8192, %s2770, %s2755, 128, 128, 8
        $region48: #{tpu_custom_call.1} parent=35 // pred_fallthru
          _
      $region36: #{tpu_custom_call.1} parent=5 // pred_fallthru
        _
      %p2778 = scmp.le.s32.totalorder 2, %s17
      // Predicated region
      $region49: #{tpu_custom_call.1} parent=5 // pred_check
        %p2779 = pneg %p2778
      $region50: #{tpu_custom_call.1} parent=5 // pred_check_branch
        %2781 = sbr.rel (%p2779) target = $region52
      $region51: #{tpu_custom_call.1} parent=5 // pred_region
        %s2782 = ssub.s32 %s17, 2
        // Predicated region
        $region53: #{tpu_custom_call.1} parent=51 // pred_check
          %p2783 = pneg %p156
        $region54: #{tpu_custom_call.1} parent=51 // pred_check_branch
          %2785 = sbr.rel (%p2783) target = $region56
        $region55: #{tpu_custom_call.1} parent=51 // pred_region
          %s2786 = sand.u32 %s141, 1
          %s2787 = scalar_lea.sflag [#allocation4], %s2786
          %s2788 = sand.u32 %s141, 1
          %s2789 = smul.addr %s2788, 512
          %s2790 = scalar_lea.vmem [#allocation7], %s2789
          %2791 = dma.done %s2787, 8192
        $region56: #{tpu_custom_call.1} parent=51 // pred_fallthru
          _
      $region52: #{tpu_custom_call.1} parent=5 // pred_fallthru
        _
    $region6: #{tpu_custom_call.1} parent=1 // loop_footer
      %s21 = sadd.s32 1, %s17
    $region7: #{tpu_custom_call.1} parent=1 // loop_footer_branch
      %16 = sbr.rel target = $region3
    $region8: #{tpu_custom_call.1} parent=1 // loop_exit
      _
    %2792 = vsyncpa [#allocation3], 1
    %s2793 = scalar_lea.sflag [#allocation3], 1
    %2794 = vsyncpa %s2793, 1
    %2795 = vsyncpa [#allocation6], 1
    %2796 = vsyncpa [#allocation4], 1
    %s2797 = scalar_lea.sflag [#allocation4], 1
    %2798 = vsyncpa %s2797, 1

</llo_original>
